<compile_context>
chip_gen: v5e
topology: v5e:2x2
jax: 0.10.0
libtpu: 0.0.40
codegen_flags: <defaults>
</compile_context>

<pallas_src>
import numpy as np
import jax
import jax.numpy as jnp
from jax import lax
from jax.experimental import pallas as pl
from jax.experimental.pallas import tpu as pltpu

_VMEM = pl.BlockSpec(memory_space=pltpu.MemorySpace.VMEM)


def _gru_unpack(g):
    return g["wi"], g["wh"], g["bi"], g["bhn"]


# --------------------------------------------------------------------------
# Fused forward kernel (grid=(), every array is a full-array VMEM block)
# --------------------------------------------------------------------------
def _gated_long_rec_kernel(
        item_emb_ref, cate_emb_ref,
        xs_idx_ref, cs_idx_ref, xl_idx_ref, gs_ref, gl_ref,
        wi_c_ref, wh_c_ref, bi_c_ref, bhn_c_ref,
        wi_l_ref, wh_l_ref, bi_l_ref, bhn_l_ref,
        wi_s_ref, wh_s_ref, bi_s_ref, bhn_s_ref,
        h2o_b_ref, fc_wl_ref, fc_ws_ref, fc_b_ref,
        act_ref, cate_ref):
    f32 = jnp.float32
    B = gs_ref.shape[0]

    def embed(idx_ref, emb_ref):
        # one-hot @ table: embedding gather as an MXU matmul, fully in VMEM.
        n = idx_ref.shape[0]
        v = emb_ref.shape[0]
        iota = lax.broadcasted_iota(jnp.int32, (n, v), 1)
        onehot = (idx_ref[...] == iota).astype(f32)
        return jnp.dot(onehot, emb_ref[...], preferred_element_type=f32)

    def run_gru(x_emb, wi_ref, wh_ref, bi_ref, bhn_ref, gather_idx):
        # x_emb: (T*B, E), time-major (row = t*B + b).  PyTorch GRU semantics,
        # gate order r|z|n, h0 = 0.  Returns seq_output[b, gather_idx[b], :].
        T = x_emb.shape[0] // B
        H = wh_ref.shape[0]
        # Hoisted input projection with folded biases: one big matmul.
        ix = jnp.dot(x_emb, wi_ref[...], preferred_element_type=f32) + bi_ref[...]
        wh = wh_ref[...]
        bhn = jnp.broadcast_to(bhn_ref[...], (B, H))     # hoisted broadcast
        h = jnp.zeros((B, H), f32)
        out = jnp.zeros((B, H), f32)
        for t in range(T):                                # small static T: unrolled
            ix_t = ix[t * B:(t + 1) * B, :]               # (B, 3H) static slice
            gh = jnp.dot(h, wh, preferred_element_type=f32)   # only per-step MXU op
            r = jax.nn.sigmoid(ix_t[:, 0:H] + gh[:, 0:H])
            z = jax.nn.sigmoid(ix_t[:, H:2 * H] + gh[:, H:2 * H])
            n = jnp.tanh(ix_t[:, 2 * H:3 * H] + r * (gh[:, 2 * H:3 * H] + bhn))
            h = (1.0 - z) * n + z * h
            out = jnp.where(gather_idx == t, h, out)      # pick h at xnum[b]
        return out

    gs = gs_ref[...]      # (B, 1) xnum_short
    gl = gl_ref[...]      # (B, 1) xnum_masked_long

    out_cate = run_gru(embed(cs_idx_ref, cate_emb_ref),
                       wi_c_ref, wh_c_ref, bi_c_ref, bhn_c_ref, gs)
    out_long = run_gru(embed(xl_idx_ref, item_emb_ref),
                       wi_l_ref, wh_l_ref, bi_l_ref, bhn_l_ref, gl)
    out_short = run_gru(embed(xs_idx_ref, item_emb_ref),
                        wi_s_ref, wh_s_ref, bi_s_ref, bhn_s_ref, gs)

    # m_cate_h2o (weight tied to cate embedding): out_cate @ emb.T + b
    cate_ref[...] = lax.dot_general(
        out_cate, cate_emb_ref[...],
        dimension_numbers=(((1,), (1,)), ((), ())),
        preferred_element_type=f32) + h2o_b_ref[...]

    # fc(cat([long, short], dim=1)) == long @ W[:, :H].T + short @ W[:, H:].T + b
    act_ref[...] = (jnp.dot(out_long, fc_wl_ref[...], preferred_element_type=f32)
                    + jnp.dot(out_short, fc_ws_ref[...], preferred_element_type=f32)
                    + fc_b_ref[...])


# --------------------------------------------------------------------------
# Forward wrapper (tiny int32 index prep in XLA, everything else in the kernel)
# --------------------------------------------------------------------------
def gated_long_rec_forward(params, x_long, xnum_long, c_long, cnum_long,
                           x_short, xnum_short, c_short, y, z,
                           train_test_flag="test"):
    del cnum_long, y, train_test_flag
    B, Ts = x_short.shape
    Tl = x_long.shape[2]

    # ITEMNN long path: x_long[c_long == z].  The PyTorch boolean mask has a
    # data-dependent shape; by construction exactly one long session matches z
    # per batch row, so we take the first matching row per column.
    mask_c = (c_long == z[None, :])                      # (cnum_long, B)
    sel = jnp.argmax(mask_c, axis=0)                     # (B,) first match
    bidx = jnp.arange(B)
    x_masked_long = x_long[sel, bidx]                    # (B, Tl)
    xnum_masked_long = xnum_long[sel, bidx]              # (B,)

    # time-major flattened int32 indices (a few hundred bytes; fuses under jit)
    xs_idx = jnp.transpose(x_short).reshape(Ts * B, 1).astype(jnp.int32)
    cs_idx = jnp.transpose(c_short).reshape(Ts * B, 1).astype(jnp.int32)
    xl_idx = jnp.transpose(x_masked_long).reshape(Tl * B, 1).astype(jnp.int32)
    gs = xnum_short.astype(jnp.int32).reshape(B, 1)
    gl = xnum_masked_long.astype(jnp.int32).reshape(B, 1)

    H = params["long_gru"]["wh"].shape[0]
    Nc = params["cate_emb"].shape[0]

    args = (params["item_emb"], params["cate_emb"],
            xs_idx, cs_idx, xl_idx, gs, gl,
            *_gru_unpack(params["cate_gru"]),
            *_gru_unpack(params["long_gru"]),
            *_gru_unpack(params["short_gru"]),
            params["cate_h2o_b"], params["fc_wt_long"],
            params["fc_wt_short"], params["fc_b"])

    logit_action, logit_cate = pl.pallas_call(
        _gated_long_rec_kernel,
        out_shape=(jax.ShapeDtypeStruct((B, H), jnp.float32),
                   jax.ShapeDtypeStruct((B, Nc), jnp.float32)),
        in_specs=[_VMEM] * len(args),
        out_specs=(_VMEM, _VMEM),
    )(*args)
    return logit_action, logit_cate


# --------------------------------------------------------------------------
# Parameter init (fused / pre-transposed, mirrors nn.GRU + nn.Linear shapes)
# --------------------------------------------------------------------------
def init_gru(key, in_dim, hid):
    ks = jax.random.split(key, 4)
    w_ih = jax.random.normal(ks[0], (3 * hid, in_dim), jnp.float32) * 0.1   # r|z|n
    w_hh = jax.random.normal(ks[1], (3 * hid, hid), jnp.float32) * 0.1
    b_ih = jax.random.normal(ks[2], (3 * hid,), jnp.float32) * 0.1
    b_hh = jax.random.normal(ks[3], (3 * hid,), jnp.float32) * 0.1
    # r/z hidden biases fold into the hoisted input projection; the n-gate
    # hidden bias must stay inside the r * (...) term.
    b_hh_fold = b_hh.at[2 * hid:].set(0.0)
    return dict(
        wi=jnp.transpose(w_ih),                        # (E, 3H) fused input weight
        wh=jnp.transpose(w_hh),                        # (H, 3H) fused hidden weight
        bi=(b_ih + b_hh_fold).reshape(1, 3 * hid),     # folded biases
        bhn=b_hh[2 * hid:].reshape(1, hid),            # n-gate hidden bias
    )


# --------------------------------------------------------------------------
# Pure-JAX reference (same fused parameterisation) for a correctness check
# --------------------------------------------------------------------------
def _gru_ref(x_bte, gru, idx):
    wi, wh, bi, bhn = _gru_unpack(gru)
    B, T, _ = x_bte.shape
    H = wh.shape[0]
    h = jnp.zeros((B, H), jnp.float32)
    outs = []
    for t in range(T):
        ix = x_bte[:, t, :] @ wi + bi
        gh = h @ wh
        r = jax.nn.sigmoid(ix[:, :H] + gh[:, :H])
        zz = jax.nn.sigmoid(ix[:, H:2 * H] + gh[:, H:2 * H])
        n = jnp.tanh(ix[:, 2 * H:] + r * (gh[:, 2 * H:] + bhn))
        h = (1.0 - zz) * n + zz * h
        outs.append(h)
    seq = jnp.stack(outs, axis=1)
    return seq[jnp.arange(B), idx]


def reference_forward(params, x_long, xnum_long, c_long, x_short, xnum_short,
                      c_short, z):
    B = x_short.shape[0]
    mask_c = (c_long == z[None, :])
    sel = jnp.argmax(mask_c, axis=0)
    bidx = jnp.arange(B)
    xl = x_long[sel, bidx]
    xnl = xnum_long[sel, bidx]
    out_cate = _gru_ref(params["cate_emb"][c_short], params["cate_gru"], xnum_short)
    logit_cate = out_cate @ params["cate_emb"].T + params["cate_h2o_b"]
    out_long = _gru_ref(params["item_emb"][xl], params["long_gru"], xnl)
    out_short = _gru_ref(params["item_emb"][x_short], params["short_gru"], xnum_short)
    logit_action = (out_long @ params["fc_wt_long"]
                    + out_short @ params["fc_wt_short"] + params["fc_b"])
    return logit_action, logit_cate


# --------------------------------------------------------------------------
if __name__ == "__main__":
    key = jax.random.PRNGKey(0)

    B, Ts, Tl = 4, 8, 8
    cnum_long = 3
    input_size, embedding_dim, hidden_size = 50, 32, 32
    cate_input_size, cate_embedding_dim = 12, 16
    cate_hidden_size = cate_embedding_dim      # required by h2o weight tying
    cate_output_size = cate_input_size         # required by h2o weight tying

    keys = jax.random.split(key, 12)
    fc_w = jax.random.normal(keys[6], (hidden_size, 2 * hidden_size), jnp.float32) * 0.1
    params = dict(
        item_emb=jax.random.normal(keys[0], (input_size, embedding_dim),
                                   jnp.float32) * 0.1,
        cate_emb=jax.random.normal(keys[1], (cate_input_size, cate_embedding_dim),
                                   jnp.float32) * 0.1,
        cate_gru=init_gru(keys[2], cate_embedding_dim, cate_hidden_size),
        long_gru=init_gru(keys[3], embedding_dim, hidden_size),    # m_cate_session_gru
        short_gru=init_gru(keys[4], embedding_dim, hidden_size),   # m_short_gru
        cate_h2o_b=(jax.random.normal(keys[5], (cate_output_size,),
                                      jnp.float32) * 0.1).reshape(1, -1),
        fc_wt_long=jnp.transpose(fc_w[:, :hidden_size]),            # (H, H)
        fc_wt_short=jnp.transpose(fc_w[:, hidden_size:]),           # (H, H)
        fc_b=(jax.random.normal(keys[7], (hidden_size,),
                                jnp.float32) * 0.1).reshape(1, -1),
    )

    # synthetic inputs
    x_long = jax.random.randint(keys[8], (cnum_long, B, Tl), 0, input_size, jnp.int32)
    xnum_long = jax.random.randint(keys[9], (cnum_long, B), 0, Tl, jnp.int32)
    x_short = jax.random.randint(keys[10], (B, Ts), 0, input_size, jnp.int32)
    c_short = jax.random.randint(keys[11], (B, Ts), 0, cate_input_size, jnp.int32)
    xnum_short = jnp.asarray(np.arange(B) % Ts, dtype=jnp.int32)
    z = jnp.arange(B, dtype=jnp.int32) % cate_input_size
    # exactly one long session per batch row matches z (placed at row 0)
    c_long = (z[None, :] + jnp.arange(1, cnum_long + 1, dtype=jnp.int32)[:, None]) \
        % cate_input_size
    c_long = c_long.at[0, :].set(z)
    y = jnp.zeros((B,), jnp.int32)   # unused in forward

    fwd = jax.jit(lambda p, xl, xnl, cl, xs, xns, cs, yy, zz:
                  gated_long_rec_forward(p, xl, xnl, cl, cnum_long,
                                         xs, xns, cs, yy, zz, "test"))
    logit_action, logit_cate = fwd(params, x_long, xnum_long, c_long,
                                   x_short, xnum_short, c_short, y, z)
    jax.block_until_ready((logit_action, logit_cate))

    ref_action, ref_cate = reference_forward(params, x_long, xnum_long, c_long,
                                             x_short, xnum_short, c_short, z)

    assert logit_action.shape == (B, hidden_size)
    assert logit_cate.shape == (B, cate_output_size)
    assert bool(jnp.all(jnp.isfinite(logit_action)))
    assert bool(jnp.all(jnp.isfinite(logit_cate)))
    np.testing.assert_allclose(np.asarray(logit_action), np.asarray(ref_action),
                               rtol=1e-2, atol=1e-2)
    np.testing.assert_allclose(np.asarray(logit_cate), np.asarray(ref_cate),
                               rtol=1e-2, atol=1e-2)
    print("KERNEL_OK")
</pallas_src>

<mosaic_0001>
module attributes {stable_mosaic.version = 11 : i64} {
  func.func @_gated_long_rec_kernel(%arg0: memref<50x32xf32, #tpu.memory_space<vmem>>, %arg1: memref<12x16xf32, #tpu.memory_space<vmem>>, %arg2: memref<32x1xi32, #tpu.memory_space<vmem>>, %arg3: memref<32x1xi32, #tpu.memory_space<vmem>>, %arg4: memref<32x1xi32, #tpu.memory_space<vmem>>, %arg5: memref<4x1xi32, #tpu.memory_space<vmem>>, %arg6: memref<4x1xi32, #tpu.memory_space<vmem>>, %arg7: memref<16x48xf32, #tpu.memory_space<vmem>>, %arg8: memref<16x48xf32, #tpu.memory_space<vmem>>, %arg9: memref<1x48xf32, #tpu.memory_space<vmem>>, %arg10: memref<1x16xf32, #tpu.memory_space<vmem>>, %arg11: memref<32x96xf32, #tpu.memory_space<vmem>>, %arg12: memref<32x96xf32, #tpu.memory_space<vmem>>, %arg13: memref<1x96xf32, #tpu.memory_space<vmem>>, %arg14: memref<1x32xf32, #tpu.memory_space<vmem>>, %arg15: memref<32x96xf32, #tpu.memory_space<vmem>>, %arg16: memref<32x96xf32, #tpu.memory_space<vmem>>, %arg17: memref<1x96xf32, #tpu.memory_space<vmem>>, %arg18: memref<1x32xf32, #tpu.memory_space<vmem>>, %arg19: memref<1x12xf32, #tpu.memory_space<vmem>>, %arg20: memref<32x32xf32, #tpu.memory_space<vmem>>, %arg21: memref<32x32xf32, #tpu.memory_space<vmem>>, %arg22: memref<1x32xf32, #tpu.memory_space<vmem>>, %arg23: memref<4x32xf32, #tpu.memory_space<vmem>>, %arg24: memref<4x12xf32, #tpu.memory_space<vmem>>) attributes {dimension_semantics = [], scalar_prefetch = 0 : i64, scratch_operands = 0 : i64, tpu.core_type = #tpu.core_type<tc>} {
    %c0 = arith.constant 0 : index
    %c0_0 = arith.constant 0 : index
    %0 = vector.load %arg5[%c0, %c0_0] : memref<4x1xi32, #tpu.memory_space<vmem>>, vector<4x1xi32>
    %c0_1 = arith.constant 0 : index
    %c0_2 = arith.constant 0 : index
    %1 = vector.load %arg6[%c0_1, %c0_2] : memref<4x1xi32, #tpu.memory_space<vmem>>, vector<4x1xi32>
    %2 = tpu.iota {dimensions = array<i32: 1>} : vector<32x12xi32>
    %c0_3 = arith.constant 0 : index
    %c0_4 = arith.constant 0 : index
    %3 = vector.load %arg3[%c0_3, %c0_4] : memref<32x1xi32, #tpu.memory_space<vmem>>, vector<32x1xi32>
    %4 = vector.broadcast %3 : vector<32x1xi32> to vector<32x12xi32>
    %5 = arith.cmpi eq, %4, %2 : vector<32x12xi32>
    %6 = arith.extui %5 : vector<32x12xi1> to vector<32x12xi32>
    %7 = arith.sitofp %6 : vector<32x12xi32> to vector<32x12xf32>
    %c0_5 = arith.constant 0 : index
    %c0_6 = arith.constant 0 : index
    %8 = vector.load %arg1[%c0_5, %c0_6] : memref<12x16xf32, #tpu.memory_space<vmem>>, vector<12x16xf32>
    %cst = arith.constant dense<0.000000e+00> : vector<32x16xf32>
    %9 = tpu.matmul %7, %8, %cst {dimension_numbers = #tpu.dot_dimension_numbers<[1], [0], [0], [1], [0, 0, 1, 1], [], []>} : vector<32x12xf32>, vector<12x16xf32>, vector<32x16xf32> -> vector<32x16xf32>
    %c0_7 = arith.constant 0 : index
    %c0_8 = arith.constant 0 : index
    %10 = vector.load %arg7[%c0_7, %c0_8] : memref<16x48xf32, #tpu.memory_space<vmem>>, vector<16x48xf32>
    %cst_9 = arith.constant dense<0.000000e+00> : vector<32x48xf32>
    %11 = tpu.matmul %9, %10, %cst_9 {dimension_numbers = #tpu.dot_dimension_numbers<[1], [0], [0], [1], [0, 0, 1, 1], [], []>} : vector<32x16xf32>, vector<16x48xf32>, vector<32x48xf32> -> vector<32x48xf32>
    %c0_10 = arith.constant 0 : index
    %c0_11 = arith.constant 0 : index
    %12 = vector.load %arg9[%c0_10, %c0_11] : memref<1x48xf32, #tpu.memory_space<vmem>>, vector<1x48xf32>
    %13 = vector.broadcast %12 : vector<1x48xf32> to vector<32x48xf32>
    %14 = arith.addf %11, %13 : vector<32x48xf32>
    %c0_12 = arith.constant 0 : index
    %c0_13 = arith.constant 0 : index
    %15 = vector.load %arg8[%c0_12, %c0_13] : memref<16x48xf32, #tpu.memory_space<vmem>>, vector<16x48xf32>
    %c0_14 = arith.constant 0 : index
    %c0_15 = arith.constant 0 : index
    %16 = vector.load %arg10[%c0_14, %c0_15] : memref<1x16xf32, #tpu.memory_space<vmem>>, vector<1x16xf32>
    %17 = vector.shape_cast %16 : vector<1x16xf32> to vector<1x16xf32>
    %18 = vector.broadcast %17 : vector<1x16xf32> to vector<4x16xf32>
    %cst_16 = arith.constant 0.000000e+00 : f32
    %19 = vector.broadcast %cst_16 : f32 to vector<4x16xf32>
    %cst_17 = arith.constant 0.000000e+00 : f32
    %20 = vector.broadcast %cst_17 : f32 to vector<4x16xf32>
    %21 = vector.extract_strided_slice %14 {offsets = [0, 0], sizes = [4, 48], strides = [1, 1]} : vector<32x48xf32> to vector<4x48xf32>
    %cst_18 = arith.constant dense<0.000000e+00> : vector<4x48xf32>
    %22 = tpu.matmul %19, %15, %cst_18 {dimension_numbers = #tpu.dot_dimension_numbers<[1], [0], [0], [1], [0, 0, 1, 1], [], []>} : vector<4x16xf32>, vector<16x48xf32>, vector<4x48xf32> -> vector<4x48xf32>
    %23 = vector.extract_strided_slice %21 {offsets = [0, 0], sizes = [4, 16], strides = [1, 1]} : vector<4x48xf32> to vector<4x16xf32>
    %24 = vector.extract_strided_slice %22 {offsets = [0, 0], sizes = [4, 16], strides = [1, 1]} : vector<4x48xf32> to vector<4x16xf32>
    %25 = arith.addf %23, %24 : vector<4x16xf32>
    %26 = arith.negf %25 : vector<4x16xf32>
    %27 = math.exp %26 : vector<4x16xf32>
    %cst_19 = arith.constant 1.000000e+00 : f32
    %28 = vector.broadcast %cst_19 : f32 to vector<4x16xf32>
    %29 = arith.addf %28, %27 : vector<4x16xf32>
    %30 = arith.divf %28, %29 : vector<4x16xf32>
    %31 = vector.extract_strided_slice %21 {offsets = [0, 16], sizes = [4, 16], strides = [1, 1]} : vector<4x48xf32> to vector<4x16xf32>
    %32 = vector.extract_strided_slice %22 {offsets = [0, 16], sizes = [4, 16], strides = [1, 1]} : vector<4x48xf32> to vector<4x16xf32>
    %33 = arith.addf %31, %32 : vector<4x16xf32>
    %34 = arith.negf %33 : vector<4x16xf32>
    %35 = math.exp %34 : vector<4x16xf32>
    %cst_20 = arith.constant 1.000000e+00 : f32
    %36 = vector.broadcast %cst_20 : f32 to vector<4x16xf32>
    %37 = arith.addf %36, %35 : vector<4x16xf32>
    %38 = arith.divf %36, %37 : vector<4x16xf32>
    %39 = vector.extract_strided_slice %21 {offsets = [0, 32], sizes = [4, 16], strides = [1, 1]} : vector<4x48xf32> to vector<4x16xf32>
    %40 = vector.extract_strided_slice %22 {offsets = [0, 32], sizes = [4, 16], strides = [1, 1]} : vector<4x48xf32> to vector<4x16xf32>
    %41 = arith.addf %40, %18 : vector<4x16xf32>
    %42 = arith.mulf %30, %41 : vector<4x16xf32>
    %43 = arith.addf %39, %42 : vector<4x16xf32>
    %44 = math.tanh %43 : vector<4x16xf32>
    %cst_21 = arith.constant 1.000000e+00 : f32
    %45 = vector.broadcast %cst_21 : f32 to vector<4x16xf32>
    %46 = arith.subf %45, %38 : vector<4x16xf32>
    %47 = arith.mulf %46, %44 : vector<4x16xf32>
    %48 = arith.mulf %38, %19 : vector<4x16xf32>
    %49 = arith.addf %47, %48 : vector<4x16xf32>
    %c0_i32 = arith.constant 0 : i32
    %50 = vector.broadcast %c0_i32 : i32 to vector<4x1xi32>
    %51 = arith.cmpi eq, %0, %50 : vector<4x1xi32>
    %52 = vector.shape_cast %51 : vector<4x1xi1> to vector<4x1xi1>
    %53 = vector.broadcast %52 : vector<4x1xi1> to vector<4x16xi1>
    %54 = arith.select %53, %49, %20 : vector<4x16xi1>, vector<4x16xf32>
    %55 = vector.extract_strided_slice %14 {offsets = [4, 0], sizes = [4, 48], strides = [1, 1]} : vector<32x48xf32> to vector<4x48xf32>
    %cst_22 = arith.constant dense<0.000000e+00> : vector<4x48xf32>
    %56 = tpu.matmul %49, %15, %cst_22 {dimension_numbers = #tpu.dot_dimension_numbers<[1], [0], [0], [1], [0, 0, 1, 1], [], []>} : vector<4x16xf32>, vector<16x48xf32>, vector<4x48xf32> -> vector<4x48xf32>
    %57 = vector.extract_strided_slice %55 {offsets = [0, 0], sizes = [4, 16], strides = [1, 1]} : vector<4x48xf32> to vector<4x16xf32>
    %58 = vector.extract_strided_slice %56 {offsets = [0, 0], sizes = [4, 16], strides = [1, 1]} : vector<4x48xf32> to vector<4x16xf32>
    %59 = arith.addf %57, %58 : vector<4x16xf32>
    %60 = arith.negf %59 : vector<4x16xf32>
    %61 = math.exp %60 : vector<4x16xf32>
    %cst_23 = arith.constant 1.000000e+00 : f32
    %62 = vector.broadcast %cst_23 : f32 to vector<4x16xf32>
    %63 = arith.addf %62, %61 : vector<4x16xf32>
    %64 = arith.divf %62, %63 : vector<4x16xf32>
    %65 = vector.extract_strided_slice %55 {offsets = [0, 16], sizes = [4, 16], strides = [1, 1]} : vector<4x48xf32> to vector<4x16xf32>
    %66 = vector.extract_strided_slice %56 {offsets = [0, 16], sizes = [4, 16], strides = [1, 1]} : vector<4x48xf32> to vector<4x16xf32>
    %67 = arith.addf %65, %66 : vector<4x16xf32>
    %68 = arith.negf %67 : vector<4x16xf32>
    %69 = math.exp %68 : vector<4x16xf32>
    %cst_24 = arith.constant 1.000000e+00 : f32
    %70 = vector.broadcast %cst_24 : f32 to vector<4x16xf32>
    %71 = arith.addf %70, %69 : vector<4x16xf32>
    %72 = arith.divf %70, %71 : vector<4x16xf32>
    %73 = vector.extract_strided_slice %55 {offsets = [0, 32], sizes = [4, 16], strides = [1, 1]} : vector<4x48xf32> to vector<4x16xf32>
    %74 = vector.extract_strided_slice %56 {offsets = [0, 32], sizes = [4, 16], strides = [1, 1]} : vector<4x48xf32> to vector<4x16xf32>
    %75 = arith.addf %74, %18 : vector<4x16xf32>
    %76 = arith.mulf %64, %75 : vector<4x16xf32>
    %77 = arith.addf %73, %76 : vector<4x16xf32>
    %78 = math.tanh %77 : vector<4x16xf32>
    %cst_25 = arith.constant 1.000000e+00 : f32
    %79 = vector.broadcast %cst_25 : f32 to vector<4x16xf32>
    %80 = arith.subf %79, %72 : vector<4x16xf32>
    %81 = arith.mulf %80, %78 : vector<4x16xf32>
    %82 = arith.mulf %72, %49 : vector<4x16xf32>
    %83 = arith.addf %81, %82 : vector<4x16xf32>
    %c1_i32 = arith.constant 1 : i32
    %84 = vector.broadcast %c1_i32 : i32 to vector<4x1xi32>
    %85 = arith.cmpi eq, %0, %84 : vector<4x1xi32>
    %86 = vector.shape_cast %85 : vector<4x1xi1> to vector<4x1xi1>
    %87 = vector.broadcast %86 : vector<4x1xi1> to vector<4x16xi1>
    %88 = arith.select %87, %83, %54 : vector<4x16xi1>, vector<4x16xf32>
    %89 = vector.extract_strided_slice %14 {offsets = [8, 0], sizes = [4, 48], strides = [1, 1]} : vector<32x48xf32> to vector<4x48xf32>
    %cst_26 = arith.constant dense<0.000000e+00> : vector<4x48xf32>
    %90 = tpu.matmul %83, %15, %cst_26 {dimension_numbers = #tpu.dot_dimension_numbers<[1], [0], [0], [1], [0, 0, 1, 1], [], []>} : vector<4x16xf32>, vector<16x48xf32>, vector<4x48xf32> -> vector<4x48xf32>
    %91 = vector.extract_strided_slice %89 {offsets = [0, 0], sizes = [4, 16], strides = [1, 1]} : vector<4x48xf32> to vector<4x16xf32>
    %92 = vector.extract_strided_slice %90 {offsets = [0, 0], sizes = [4, 16], strides = [1, 1]} : vector<4x48xf32> to vector<4x16xf32>
    %93 = arith.addf %91, %92 : vector<4x16xf32>
    %94 = arith.negf %93 : vector<4x16xf32>
    %95 = math.exp %94 : vector<4x16xf32>
    %cst_27 = arith.constant 1.000000e+00 : f32
    %96 = vector.broadcast %cst_27 : f32 to vector<4x16xf32>
    %97 = arith.addf %96, %95 : vector<4x16xf32>
    %98 = arith.divf %96, %97 : vector<4x16xf32>
    %99 = vector.extract_strided_slice %89 {offsets = [0, 16], sizes = [4, 16], strides = [1, 1]} : vector<4x48xf32> to vector<4x16xf32>
    %100 = vector.extract_strided_slice %90 {offsets = [0, 16], sizes = [4, 16], strides = [1, 1]} : vector<4x48xf32> to vector<4x16xf32>
    %101 = arith.addf %99, %100 : vector<4x16xf32>
    %102 = arith.negf %101 : vector<4x16xf32>
    %103 = math.exp %102 : vector<4x16xf32>
    %cst_28 = arith.constant 1.000000e+00 : f32
    %104 = vector.broadcast %cst_28 : f32 to vector<4x16xf32>
    %105 = arith.addf %104, %103 : vector<4x16xf32>
    %106 = arith.divf %104, %105 : vector<4x16xf32>
    %107 = vector.extract_strided_slice %89 {offsets = [0, 32], sizes = [4, 16], strides = [1, 1]} : vector<4x48xf32> to vector<4x16xf32>
    %108 = vector.extract_strided_slice %90 {offsets = [0, 32], sizes = [4, 16], strides = [1, 1]} : vector<4x48xf32> to vector<4x16xf32>
    %109 = arith.addf %108, %18 : vector<4x16xf32>
    %110 = arith.mulf %98, %109 : vector<4x16xf32>
    %111 = arith.addf %107, %110 : vector<4x16xf32>
    %112 = math.tanh %111 : vector<4x16xf32>
    %cst_29 = arith.constant 1.000000e+00 : f32
    %113 = vector.broadcast %cst_29 : f32 to vector<4x16xf32>
    %114 = arith.subf %113, %106 : vector<4x16xf32>
    %115 = arith.mulf %114, %112 : vector<4x16xf32>
    %116 = arith.mulf %106, %83 : vector<4x16xf32>
    %117 = arith.addf %115, %116 : vector<4x16xf32>
    %c2_i32 = arith.constant 2 : i32
    %118 = vector.broadcast %c2_i32 : i32 to vector<4x1xi32>
    %119 = arith.cmpi eq, %0, %118 : vector<4x1xi32>
    %120 = vector.shape_cast %119 : vector<4x1xi1> to vector<4x1xi1>
    %121 = vector.broadcast %120 : vector<4x1xi1> to vector<4x16xi1>
    %122 = arith.select %121, %117, %88 : vector<4x16xi1>, vector<4x16xf32>
    %123 = vector.extract_strided_slice %14 {offsets = [12, 0], sizes = [4, 48], strides = [1, 1]} : vector<32x48xf32> to vector<4x48xf32>
    %cst_30 = arith.constant dense<0.000000e+00> : vector<4x48xf32>
    %124 = tpu.matmul %117, %15, %cst_30 {dimension_numbers = #tpu.dot_dimension_numbers<[1], [0], [0], [1], [0, 0, 1, 1], [], []>} : vector<4x16xf32>, vector<16x48xf32>, vector<4x48xf32> -> vector<4x48xf32>
    %125 = vector.extract_strided_slice %123 {offsets = [0, 0], sizes = [4, 16], strides = [1, 1]} : vector<4x48xf32> to vector<4x16xf32>
    %126 = vector.extract_strided_slice %124 {offsets = [0, 0], sizes = [4, 16], strides = [1, 1]} : vector<4x48xf32> to vector<4x16xf32>
    %127 = arith.addf %125, %126 : vector<4x16xf32>
    %128 = arith.negf %127 : vector<4x16xf32>
    %129 = math.exp %128 : vector<4x16xf32>
    %cst_31 = arith.constant 1.000000e+00 : f32
    %130 = vector.broadcast %cst_31 : f32 to vector<4x16xf32>
    %131 = arith.addf %130, %129 : vector<4x16xf32>
    %132 = arith.divf %130, %131 : vector<4x16xf32>
    %133 = vector.extract_strided_slice %123 {offsets = [0, 16], sizes = [4, 16], strides = [1, 1]} : vector<4x48xf32> to vector<4x16xf32>
    %134 = vector.extract_strided_slice %124 {offsets = [0, 16], sizes = [4, 16], strides = [1, 1]} : vector<4x48xf32> to vector<4x16xf32>
    %135 = arith.addf %133, %134 : vector<4x16xf32>
    %136 = arith.negf %135 : vector<4x16xf32>
    %137 = math.exp %136 : vector<4x16xf32>
    %cst_32 = arith.constant 1.000000e+00 : f32
    %138 = vector.broadcast %cst_32 : f32 to vector<4x16xf32>
    %139 = arith.addf %138, %137 : vector<4x16xf32>
    %140 = arith.divf %138, %139 : vector<4x16xf32>
    %141 = vector.extract_strided_slice %123 {offsets = [0, 32], sizes = [4, 16], strides = [1, 1]} : vector<4x48xf32> to vector<4x16xf32>
    %142 = vector.extract_strided_slice %124 {offsets = [0, 32], sizes = [4, 16], strides = [1, 1]} : vector<4x48xf32> to vector<4x16xf32>
    %143 = arith.addf %142, %18 : vector<4x16xf32>
    %144 = arith.mulf %132, %143 : vector<4x16xf32>
    %145 = arith.addf %141, %144 : vector<4x16xf32>
    %146 = math.tanh %145 : vector<4x16xf32>
    %cst_33 = arith.constant 1.000000e+00 : f32
    %147 = vector.broadcast %cst_33 : f32 to vector<4x16xf32>
    %148 = arith.subf %147, %140 : vector<4x16xf32>
    %149 = arith.mulf %148, %146 : vector<4x16xf32>
    %150 = arith.mulf %140, %117 : vector<4x16xf32>
    %151 = arith.addf %149, %150 : vector<4x16xf32>
    %c3_i32 = arith.constant 3 : i32
    %152 = vector.broadcast %c3_i32 : i32 to vector<4x1xi32>
    %153 = arith.cmpi eq, %0, %152 : vector<4x1xi32>
    %154 = vector.shape_cast %153 : vector<4x1xi1> to vector<4x1xi1>
    %155 = vector.broadcast %154 : vector<4x1xi1> to vector<4x16xi1>
    %156 = arith.select %155, %151, %122 : vector<4x16xi1>, vector<4x16xf32>
    %157 = vector.extract_strided_slice %14 {offsets = [16, 0], sizes = [4, 48], strides = [1, 1]} : vector<32x48xf32> to vector<4x48xf32>
    %cst_34 = arith.constant dense<0.000000e+00> : vector<4x48xf32>
    %158 = tpu.matmul %151, %15, %cst_34 {dimension_numbers = #tpu.dot_dimension_numbers<[1], [0], [0], [1], [0, 0, 1, 1], [], []>} : vector<4x16xf32>, vector<16x48xf32>, vector<4x48xf32> -> vector<4x48xf32>
    %159 = vector.extract_strided_slice %157 {offsets = [0, 0], sizes = [4, 16], strides = [1, 1]} : vector<4x48xf32> to vector<4x16xf32>
    %160 = vector.extract_strided_slice %158 {offsets = [0, 0], sizes = [4, 16], strides = [1, 1]} : vector<4x48xf32> to vector<4x16xf32>
    %161 = arith.addf %159, %160 : vector<4x16xf32>
    %162 = arith.negf %161 : vector<4x16xf32>
    %163 = math.exp %162 : vector<4x16xf32>
    %cst_35 = arith.constant 1.000000e+00 : f32
    %164 = vector.broadcast %cst_35 : f32 to vector<4x16xf32>
    %165 = arith.addf %164, %163 : vector<4x16xf32>
    %166 = arith.divf %164, %165 : vector<4x16xf32>
    %167 = vector.extract_strided_slice %157 {offsets = [0, 16], sizes = [4, 16], strides = [1, 1]} : vector<4x48xf32> to vector<4x16xf32>
    %168 = vector.extract_strided_slice %158 {offsets = [0, 16], sizes = [4, 16], strides = [1, 1]} : vector<4x48xf32> to vector<4x16xf32>
    %169 = arith.addf %167, %168 : vector<4x16xf32>
    %170 = arith.negf %169 : vector<4x16xf32>
    %171 = math.exp %170 : vector<4x16xf32>
    %cst_36 = arith.constant 1.000000e+00 : f32
    %172 = vector.broadcast %cst_36 : f32 to vector<4x16xf32>
    %173 = arith.addf %172, %171 : vector<4x16xf32>
    %174 = arith.divf %172, %173 : vector<4x16xf32>
    %175 = vector.extract_strided_slice %157 {offsets = [0, 32], sizes = [4, 16], strides = [1, 1]} : vector<4x48xf32> to vector<4x16xf32>
    %176 = vector.extract_strided_slice %158 {offsets = [0, 32], sizes = [4, 16], strides = [1, 1]} : vector<4x48xf32> to vector<4x16xf32>
    %177 = arith.addf %176, %18 : vector<4x16xf32>
    %178 = arith.mulf %166, %177 : vector<4x16xf32>
    %179 = arith.addf %175, %178 : vector<4x16xf32>
    %180 = math.tanh %179 : vector<4x16xf32>
    %cst_37 = arith.constant 1.000000e+00 : f32
    %181 = vector.broadcast %cst_37 : f32 to vector<4x16xf32>
    %182 = arith.subf %181, %174 : vector<4x16xf32>
    %183 = arith.mulf %182, %180 : vector<4x16xf32>
    %184 = arith.mulf %174, %151 : vector<4x16xf32>
    %185 = arith.addf %183, %184 : vector<4x16xf32>
    %c4_i32 = arith.constant 4 : i32
    %186 = vector.broadcast %c4_i32 : i32 to vector<4x1xi32>
    %187 = arith.cmpi eq, %0, %186 : vector<4x1xi32>
    %188 = vector.shape_cast %187 : vector<4x1xi1> to vector<4x1xi1>
    %189 = vector.broadcast %188 : vector<4x1xi1> to vector<4x16xi1>
    %190 = arith.select %189, %185, %156 : vector<4x16xi1>, vector<4x16xf32>
    %191 = vector.extract_strided_slice %14 {offsets = [20, 0], sizes = [4, 48], strides = [1, 1]} : vector<32x48xf32> to vector<4x48xf32>
    %cst_38 = arith.constant dense<0.000000e+00> : vector<4x48xf32>
    %192 = tpu.matmul %185, %15, %cst_38 {dimension_numbers = #tpu.dot_dimension_numbers<[1], [0], [0], [1], [0, 0, 1, 1], [], []>} : vector<4x16xf32>, vector<16x48xf32>, vector<4x48xf32> -> vector<4x48xf32>
    %193 = vector.extract_strided_slice %191 {offsets = [0, 0], sizes = [4, 16], strides = [1, 1]} : vector<4x48xf32> to vector<4x16xf32>
    %194 = vector.extract_strided_slice %192 {offsets = [0, 0], sizes = [4, 16], strides = [1, 1]} : vector<4x48xf32> to vector<4x16xf32>
    %195 = arith.addf %193, %194 : vector<4x16xf32>
    %196 = arith.negf %195 : vector<4x16xf32>
    %197 = math.exp %196 : vector<4x16xf32>
    %cst_39 = arith.constant 1.000000e+00 : f32
    %198 = vector.broadcast %cst_39 : f32 to vector<4x16xf32>
    %199 = arith.addf %198, %197 : vector<4x16xf32>
    %200 = arith.divf %198, %199 : vector<4x16xf32>
    %201 = vector.extract_strided_slice %191 {offsets = [0, 16], sizes = [4, 16], strides = [1, 1]} : vector<4x48xf32> to vector<4x16xf32>
    %202 = vector.extract_strided_slice %192 {offsets = [0, 16], sizes = [4, 16], strides = [1, 1]} : vector<4x48xf32> to vector<4x16xf32>
    %203 = arith.addf %201, %202 : vector<4x16xf32>
    %204 = arith.negf %203 : vector<4x16xf32>
    %205 = math.exp %204 : vector<4x16xf32>
    %cst_40 = arith.constant 1.000000e+00 : f32
    %206 = vector.broadcast %cst_40 : f32 to vector<4x16xf32>
    %207 = arith.addf %206, %205 : vector<4x16xf32>
    %208 = arith.divf %206, %207 : vector<4x16xf32>
    %209 = vector.extract_strided_slice %191 {offsets = [0, 32], sizes = [4, 16], strides = [1, 1]} : vector<4x48xf32> to vector<4x16xf32>
    %210 = vector.extract_strided_slice %192 {offsets = [0, 32], sizes = [4, 16], strides = [1, 1]} : vector<4x48xf32> to vector<4x16xf32>
    %211 = arith.addf %210, %18 : vector<4x16xf32>
    %212 = arith.mulf %200, %211 : vector<4x16xf32>
    %213 = arith.addf %209, %212 : vector<4x16xf32>
    %214 = math.tanh %213 : vector<4x16xf32>
    %cst_41 = arith.constant 1.000000e+00 : f32
    %215 = vector.broadcast %cst_41 : f32 to vector<4x16xf32>
    %216 = arith.subf %215, %208 : vector<4x16xf32>
    %217 = arith.mulf %216, %214 : vector<4x16xf32>
    %218 = arith.mulf %208, %185 : vector<4x16xf32>
    %219 = arith.addf %217, %218 : vector<4x16xf32>
    %c5_i32 = arith.constant 5 : i32
    %220 = vector.broadcast %c5_i32 : i32 to vector<4x1xi32>
    %221 = arith.cmpi eq, %0, %220 : vector<4x1xi32>
    %222 = vector.shape_cast %221 : vector<4x1xi1> to vector<4x1xi1>
    %223 = vector.broadcast %222 : vector<4x1xi1> to vector<4x16xi1>
    %224 = arith.select %223, %219, %190 : vector<4x16xi1>, vector<4x16xf32>
    %225 = vector.extract_strided_slice %14 {offsets = [24, 0], sizes = [4, 48], strides = [1, 1]} : vector<32x48xf32> to vector<4x48xf32>
    %cst_42 = arith.constant dense<0.000000e+00> : vector<4x48xf32>
    %226 = tpu.matmul %219, %15, %cst_42 {dimension_numbers = #tpu.dot_dimension_numbers<[1], [0], [0], [1], [0, 0, 1, 1], [], []>} : vector<4x16xf32>, vector<16x48xf32>, vector<4x48xf32> -> vector<4x48xf32>
    %227 = vector.extract_strided_slice %225 {offsets = [0, 0], sizes = [4, 16], strides = [1, 1]} : vector<4x48xf32> to vector<4x16xf32>
    %228 = vector.extract_strided_slice %226 {offsets = [0, 0], sizes = [4, 16], strides = [1, 1]} : vector<4x48xf32> to vector<4x16xf32>
    %229 = arith.addf %227, %228 : vector<4x16xf32>
    %230 = arith.negf %229 : vector<4x16xf32>
    %231 = math.exp %230 : vector<4x16xf32>
    %cst_43 = arith.constant 1.000000e+00 : f32
    %232 = vector.broadcast %cst_43 : f32 to vector<4x16xf32>
    %233 = arith.addf %232, %231 : vector<4x16xf32>
    %234 = arith.divf %232, %233 : vector<4x16xf32>
    %235 = vector.extract_strided_slice %225 {offsets = [0, 16], sizes = [4, 16], strides = [1, 1]} : vector<4x48xf32> to vector<4x16xf32>
    %236 = vector.extract_strided_slice %226 {offsets = [0, 16], sizes = [4, 16], strides = [1, 1]} : vector<4x48xf32> to vector<4x16xf32>
    %237 = arith.addf %235, %236 : vector<4x16xf32>
    %238 = arith.negf %237 : vector<4x16xf32>
    %239 = math.exp %238 : vector<4x16xf32>
    %cst_44 = arith.constant 1.000000e+00 : f32
    %240 = vector.broadcast %cst_44 : f32 to vector<4x16xf32>
    %241 = arith.addf %240, %239 : vector<4x16xf32>
    %242 = arith.divf %240, %241 : vector<4x16xf32>
    %243 = vector.extract_strided_slice %225 {offsets = [0, 32], sizes = [4, 16], strides = [1, 1]} : vector<4x48xf32> to vector<4x16xf32>
    %244 = vector.extract_strided_slice %226 {offsets = [0, 32], sizes = [4, 16], strides = [1, 1]} : vector<4x48xf32> to vector<4x16xf32>
    %245 = arith.addf %244, %18 : vector<4x16xf32>
    %246 = arith.mulf %234, %245 : vector<4x16xf32>
    %247 = arith.addf %243, %246 : vector<4x16xf32>
    %248 = math.tanh %247 : vector<4x16xf32>
    %cst_45 = arith.constant 1.000000e+00 : f32
    %249 = vector.broadcast %cst_45 : f32 to vector<4x16xf32>
    %250 = arith.subf %249, %242 : vector<4x16xf32>
    %251 = arith.mulf %250, %248 : vector<4x16xf32>
    %252 = arith.mulf %242, %219 : vector<4x16xf32>
    %253 = arith.addf %251, %252 : vector<4x16xf32>
    %c6_i32 = arith.constant 6 : i32
    %254 = vector.broadcast %c6_i32 : i32 to vector<4x1xi32>
    %255 = arith.cmpi eq, %0, %254 : vector<4x1xi32>
    %256 = vector.shape_cast %255 : vector<4x1xi1> to vector<4x1xi1>
    %257 = vector.broadcast %256 : vector<4x1xi1> to vector<4x16xi1>
    %258 = arith.select %257, %253, %224 : vector<4x16xi1>, vector<4x16xf32>
    %259 = vector.extract_strided_slice %14 {offsets = [28, 0], sizes = [4, 48], strides = [1, 1]} : vector<32x48xf32> to vector<4x48xf32>
    %cst_46 = arith.constant dense<0.000000e+00> : vector<4x48xf32>
    %260 = tpu.matmul %253, %15, %cst_46 {dimension_numbers = #tpu.dot_dimension_numbers<[1], [0], [0], [1], [0, 0, 1, 1], [], []>} : vector<4x16xf32>, vector<16x48xf32>, vector<4x48xf32> -> vector<4x48xf32>
    %261 = vector.extract_strided_slice %259 {offsets = [0, 0], sizes = [4, 16], strides = [1, 1]} : vector<4x48xf32> to vector<4x16xf32>
    %262 = vector.extract_strided_slice %260 {offsets = [0, 0], sizes = [4, 16], strides = [1, 1]} : vector<4x48xf32> to vector<4x16xf32>
    %263 = arith.addf %261, %262 : vector<4x16xf32>
    %264 = arith.negf %263 : vector<4x16xf32>
    %265 = math.exp %264 : vector<4x16xf32>
    %cst_47 = arith.constant 1.000000e+00 : f32
    %266 = vector.broadcast %cst_47 : f32 to vector<4x16xf32>
    %267 = arith.addf %266, %265 : vector<4x16xf32>
    %268 = arith.divf %266, %267 : vector<4x16xf32>
    %269 = vector.extract_strided_slice %259 {offsets = [0, 16], sizes = [4, 16], strides = [1, 1]} : vector<4x48xf32> to vector<4x16xf32>
    %270 = vector.extract_strided_slice %260 {offsets = [0, 16], sizes = [4, 16], strides = [1, 1]} : vector<4x48xf32> to vector<4x16xf32>
    %271 = arith.addf %269, %270 : vector<4x16xf32>
    %272 = arith.negf %271 : vector<4x16xf32>
    %273 = math.exp %272 : vector<4x16xf32>
    %cst_48 = arith.constant 1.000000e+00 : f32
    %274 = vector.broadcast %cst_48 : f32 to vector<4x16xf32>
    %275 = arith.addf %274, %273 : vector<4x16xf32>
    %276 = arith.divf %274, %275 : vector<4x16xf32>
    %277 = vector.extract_strided_slice %259 {offsets = [0, 32], sizes = [4, 16], strides = [1, 1]} : vector<4x48xf32> to vector<4x16xf32>
    %278 = vector.extract_strided_slice %260 {offsets = [0, 32], sizes = [4, 16], strides = [1, 1]} : vector<4x48xf32> to vector<4x16xf32>
    %279 = arith.addf %278, %18 : vector<4x16xf32>
    %280 = arith.mulf %268, %279 : vector<4x16xf32>
    %281 = arith.addf %277, %280 : vector<4x16xf32>
    %282 = math.tanh %281 : vector<4x16xf32>
    %cst_49 = arith.constant 1.000000e+00 : f32
    %283 = vector.broadcast %cst_49 : f32 to vector<4x16xf32>
    %284 = arith.subf %283, %276 : vector<4x16xf32>
    %285 = arith.mulf %284, %282 : vector<4x16xf32>
    %286 = arith.mulf %276, %253 : vector<4x16xf32>
    %287 = arith.addf %285, %286 : vector<4x16xf32>
    %c7_i32 = arith.constant 7 : i32
    %288 = vector.broadcast %c7_i32 : i32 to vector<4x1xi32>
    %289 = arith.cmpi eq, %0, %288 : vector<4x1xi32>
    %290 = vector.shape_cast %289 : vector<4x1xi1> to vector<4x1xi1>
    %291 = vector.broadcast %290 : vector<4x1xi1> to vector<4x16xi1>
    %292 = arith.select %291, %287, %258 : vector<4x16xi1>, vector<4x16xf32>
    %293 = tpu.iota {dimensions = array<i32: 1>} : vector<32x50xi32>
    %c0_50 = arith.constant 0 : index
    %c0_51 = arith.constant 0 : index
    %294 = vector.load %arg4[%c0_50, %c0_51] : memref<32x1xi32, #tpu.memory_space<vmem>>, vector<32x1xi32>
    %295 = vector.broadcast %294 : vector<32x1xi32> to vector<32x50xi32>
    %296 = arith.cmpi eq, %295, %293 : vector<32x50xi32>
    %297 = arith.extui %296 : vector<32x50xi1> to vector<32x50xi32>
    %298 = arith.sitofp %297 : vector<32x50xi32> to vector<32x50xf32>
    %c0_52 = arith.constant 0 : index
    %c0_53 = arith.constant 0 : index
    %299 = vector.load %arg0[%c0_52, %c0_53] : memref<50x32xf32, #tpu.memory_space<vmem>>, vector<50x32xf32>
    %cst_54 = arith.constant dense<0.000000e+00> : vector<32x32xf32>
    %300 = tpu.matmul %298, %299, %cst_54 {dimension_numbers = #tpu.dot_dimension_numbers<[1], [0], [0], [1], [0, 0, 1, 1], [], []>} : vector<32x50xf32>, vector<50x32xf32>, vector<32x32xf32> -> vector<32x32xf32>
    %c0_55 = arith.constant 0 : index
    %c0_56 = arith.constant 0 : index
    %301 = vector.load %arg11[%c0_55, %c0_56] : memref<32x96xf32, #tpu.memory_space<vmem>>, vector<32x96xf32>
    %cst_57 = arith.constant dense<0.000000e+00> : vector<32x96xf32>
    %302 = tpu.matmul %300, %301, %cst_57 {dimension_numbers = #tpu.dot_dimension_numbers<[1], [0], [0], [1], [0, 0, 1, 1], [], []>} : vector<32x32xf32>, vector<32x96xf32>, vector<32x96xf32> -> vector<32x96xf32>
    %c0_58 = arith.constant 0 : index
    %c0_59 = arith.constant 0 : index
    %303 = vector.load %arg13[%c0_58, %c0_59] : memref<1x96xf32, #tpu.memory_space<vmem>>, vector<1x96xf32>
    %304 = vector.broadcast %303 : vector<1x96xf32> to vector<32x96xf32>
    %305 = arith.addf %302, %304 : vector<32x96xf32>
    %c0_60 = arith.constant 0 : index
    %c0_61 = arith.constant 0 : index
    %306 = vector.load %arg12[%c0_60, %c0_61] : memref<32x96xf32, #tpu.memory_space<vmem>>, vector<32x96xf32>
    %c0_62 = arith.constant 0 : index
    %c0_63 = arith.constant 0 : index
    %307 = vector.load %arg14[%c0_62, %c0_63] : memref<1x32xf32, #tpu.memory_space<vmem>>, vector<1x32xf32>
    %308 = vector.shape_cast %307 : vector<1x32xf32> to vector<1x32xf32>
    %309 = vector.broadcast %308 : vector<1x32xf32> to vector<4x32xf32>
    %cst_64 = arith.constant 0.000000e+00 : f32
    %310 = vector.broadcast %cst_64 : f32 to vector<4x32xf32>
    %cst_65 = arith.constant 0.000000e+00 : f32
    %311 = vector.broadcast %cst_65 : f32 to vector<4x32xf32>
    %312 = vector.extract_strided_slice %305 {offsets = [0, 0], sizes = [4, 96], strides = [1, 1]} : vector<32x96xf32> to vector<4x96xf32>
    %cst_66 = arith.constant dense<0.000000e+00> : vector<4x96xf32>
    %313 = tpu.matmul %310, %306, %cst_66 {dimension_numbers = #tpu.dot_dimension_numbers<[1], [0], [0], [1], [0, 0, 1, 1], [], []>} : vector<4x32xf32>, vector<32x96xf32>, vector<4x96xf32> -> vector<4x96xf32>
    %314 = vector.extract_strided_slice %312 {offsets = [0, 0], sizes = [4, 32], strides = [1, 1]} : vector<4x96xf32> to vector<4x32xf32>
    %315 = vector.extract_strided_slice %313 {offsets = [0, 0], sizes = [4, 32], strides = [1, 1]} : vector<4x96xf32> to vector<4x32xf32>
    %316 = arith.addf %314, %315 : vector<4x32xf32>
    %317 = arith.negf %316 : vector<4x32xf32>
    %318 = math.exp %317 : vector<4x32xf32>
    %cst_67 = arith.constant 1.000000e+00 : f32
    %319 = vector.broadcast %cst_67 : f32 to vector<4x32xf32>
    %320 = arith.addf %319, %318 : vector<4x32xf32>
    %321 = arith.divf %319, %320 : vector<4x32xf32>
    %322 = vector.extract_strided_slice %312 {offsets = [0, 32], sizes = [4, 32], strides = [1, 1]} : vector<4x96xf32> to vector<4x32xf32>
    %323 = vector.extract_strided_slice %313 {offsets = [0, 32], sizes = [4, 32], strides = [1, 1]} : vector<4x96xf32> to vector<4x32xf32>
    %324 = arith.addf %322, %323 : vector<4x32xf32>
    %325 = arith.negf %324 : vector<4x32xf32>
    %326 = math.exp %325 : vector<4x32xf32>
    %cst_68 = arith.constant 1.000000e+00 : f32
    %327 = vector.broadcast %cst_68 : f32 to vector<4x32xf32>
    %328 = arith.addf %327, %326 : vector<4x32xf32>
    %329 = arith.divf %327, %328 : vector<4x32xf32>
    %330 = vector.extract_strided_slice %312 {offsets = [0, 64], sizes = [4, 32], strides = [1, 1]} : vector<4x96xf32> to vector<4x32xf32>
    %331 = vector.extract_strided_slice %313 {offsets = [0, 64], sizes = [4, 32], strides = [1, 1]} : vector<4x96xf32> to vector<4x32xf32>
    %332 = arith.addf %331, %309 : vector<4x32xf32>
    %333 = arith.mulf %321, %332 : vector<4x32xf32>
    %334 = arith.addf %330, %333 : vector<4x32xf32>
    %335 = math.tanh %334 : vector<4x32xf32>
    %cst_69 = arith.constant 1.000000e+00 : f32
    %336 = vector.broadcast %cst_69 : f32 to vector<4x32xf32>
    %337 = arith.subf %336, %329 : vector<4x32xf32>
    %338 = arith.mulf %337, %335 : vector<4x32xf32>
    %339 = arith.mulf %329, %310 : vector<4x32xf32>
    %340 = arith.addf %338, %339 : vector<4x32xf32>
    %c0_i32_70 = arith.constant 0 : i32
    %341 = vector.broadcast %c0_i32_70 : i32 to vector<4x1xi32>
    %342 = arith.cmpi eq, %1, %341 : vector<4x1xi32>
    %343 = vector.shape_cast %342 : vector<4x1xi1> to vector<4x1xi1>
    %344 = vector.broadcast %343 : vector<4x1xi1> to vector<4x32xi1>
    %345 = arith.select %344, %340, %311 : vector<4x32xi1>, vector<4x32xf32>
    %346 = vector.extract_strided_slice %305 {offsets = [4, 0], sizes = [4, 96], strides = [1, 1]} : vector<32x96xf32> to vector<4x96xf32>
    %cst_71 = arith.constant dense<0.000000e+00> : vector<4x96xf32>
    %347 = tpu.matmul %340, %306, %cst_71 {dimension_numbers = #tpu.dot_dimension_numbers<[1], [0], [0], [1], [0, 0, 1, 1], [], []>} : vector<4x32xf32>, vector<32x96xf32>, vector<4x96xf32> -> vector<4x96xf32>
    %348 = vector.extract_strided_slice %346 {offsets = [0, 0], sizes = [4, 32], strides = [1, 1]} : vector<4x96xf32> to vector<4x32xf32>
    %349 = vector.extract_strided_slice %347 {offsets = [0, 0], sizes = [4, 32], strides = [1, 1]} : vector<4x96xf32> to vector<4x32xf32>
    %350 = arith.addf %348, %349 : vector<4x32xf32>
    %351 = arith.negf %350 : vector<4x32xf32>
    %352 = math.exp %351 : vector<4x32xf32>
    %cst_72 = arith.constant 1.000000e+00 : f32
    %353 = vector.broadcast %cst_72 : f32 to vector<4x32xf32>
    %354 = arith.addf %353, %352 : vector<4x32xf32>
    %355 = arith.divf %353, %354 : vector<4x32xf32>
    %356 = vector.extract_strided_slice %346 {offsets = [0, 32], sizes = [4, 32], strides = [1, 1]} : vector<4x96xf32> to vector<4x32xf32>
    %357 = vector.extract_strided_slice %347 {offsets = [0, 32], sizes = [4, 32], strides = [1, 1]} : vector<4x96xf32> to vector<4x32xf32>
    %358 = arith.addf %356, %357 : vector<4x32xf32>
    %359 = arith.negf %358 : vector<4x32xf32>
    %360 = math.exp %359 : vector<4x32xf32>
    %cst_73 = arith.constant 1.000000e+00 : f32
    %361 = vector.broadcast %cst_73 : f32 to vector<4x32xf32>
    %362 = arith.addf %361, %360 : vector<4x32xf32>
    %363 = arith.divf %361, %362 : vector<4x32xf32>
    %364 = vector.extract_strided_slice %346 {offsets = [0, 64], sizes = [4, 32], strides = [1, 1]} : vector<4x96xf32> to vector<4x32xf32>
    %365 = vector.extract_strided_slice %347 {offsets = [0, 64], sizes = [4, 32], strides = [1, 1]} : vector<4x96xf32> to vector<4x32xf32>
    %366 = arith.addf %365, %309 : vector<4x32xf32>
    %367 = arith.mulf %355, %366 : vector<4x32xf32>
    %368 = arith.addf %364, %367 : vector<4x32xf32>
    %369 = math.tanh %368 : vector<4x32xf32>
    %cst_74 = arith.constant 1.000000e+00 : f32
    %370 = vector.broadcast %cst_74 : f32 to vector<4x32xf32>
    %371 = arith.subf %370, %363 : vector<4x32xf32>
    %372 = arith.mulf %371, %369 : vector<4x32xf32>
    %373 = arith.mulf %363, %340 : vector<4x32xf32>
    %374 = arith.addf %372, %373 : vector<4x32xf32>
    %c1_i32_75 = arith.constant 1 : i32
    %375 = vector.broadcast %c1_i32_75 : i32 to vector<4x1xi32>
    %376 = arith.cmpi eq, %1, %375 : vector<4x1xi32>
    %377 = vector.shape_cast %376 : vector<4x1xi1> to vector<4x1xi1>
    %378 = vector.broadcast %377 : vector<4x1xi1> to vector<4x32xi1>
    %379 = arith.select %378, %374, %345 : vector<4x32xi1>, vector<4x32xf32>
    %380 = vector.extract_strided_slice %305 {offsets = [8, 0], sizes = [4, 96], strides = [1, 1]} : vector<32x96xf32> to vector<4x96xf32>
    %cst_76 = arith.constant dense<0.000000e+00> : vector<4x96xf32>
    %381 = tpu.matmul %374, %306, %cst_76 {dimension_numbers = #tpu.dot_dimension_numbers<[1], [0], [0], [1], [0, 0, 1, 1], [], []>} : vector<4x32xf32>, vector<32x96xf32>, vector<4x96xf32> -> vector<4x96xf32>
    %382 = vector.extract_strided_slice %380 {offsets = [0, 0], sizes = [4, 32], strides = [1, 1]} : vector<4x96xf32> to vector<4x32xf32>
    %383 = vector.extract_strided_slice %381 {offsets = [0, 0], sizes = [4, 32], strides = [1, 1]} : vector<4x96xf32> to vector<4x32xf32>
    %384 = arith.addf %382, %383 : vector<4x32xf32>
    %385 = arith.negf %384 : vector<4x32xf32>
    %386 = math.exp %385 : vector<4x32xf32>
    %cst_77 = arith.constant 1.000000e+00 : f32
    %387 = vector.broadcast %cst_77 : f32 to vector<4x32xf32>
    %388 = arith.addf %387, %386 : vector<4x32xf32>
    %389 = arith.divf %387, %388 : vector<4x32xf32>
    %390 = vector.extract_strided_slice %380 {offsets = [0, 32], sizes = [4, 32], strides = [1, 1]} : vector<4x96xf32> to vector<4x32xf32>
    %391 = vector.extract_strided_slice %381 {offsets = [0, 32], sizes = [4, 32], strides = [1, 1]} : vector<4x96xf32> to vector<4x32xf32>
    %392 = arith.addf %390, %391 : vector<4x32xf32>
    %393 = arith.negf %392 : vector<4x32xf32>
    %394 = math.exp %393 : vector<4x32xf32>
    %cst_78 = arith.constant 1.000000e+00 : f32
    %395 = vector.broadcast %cst_78 : f32 to vector<4x32xf32>
    %396 = arith.addf %395, %394 : vector<4x32xf32>
    %397 = arith.divf %395, %396 : vector<4x32xf32>
    %398 = vector.extract_strided_slice %380 {offsets = [0, 64], sizes = [4, 32], strides = [1, 1]} : vector<4x96xf32> to vector<4x32xf32>
    %399 = vector.extract_strided_slice %381 {offsets = [0, 64], sizes = [4, 32], strides = [1, 1]} : vector<4x96xf32> to vector<4x32xf32>
    %400 = arith.addf %399, %309 : vector<4x32xf32>
    %401 = arith.mulf %389, %400 : vector<4x32xf32>
    %402 = arith.addf %398, %401 : vector<4x32xf32>
    %403 = math.tanh %402 : vector<4x32xf32>
    %cst_79 = arith.constant 1.000000e+00 : f32
    %404 = vector.broadcast %cst_79 : f32 to vector<4x32xf32>
    %405 = arith.subf %404, %397 : vector<4x32xf32>
    %406 = arith.mulf %405, %403 : vector<4x32xf32>
    %407 = arith.mulf %397, %374 : vector<4x32xf32>
    %408 = arith.addf %406, %407 : vector<4x32xf32>
    %c2_i32_80 = arith.constant 2 : i32
    %409 = vector.broadcast %c2_i32_80 : i32 to vector<4x1xi32>
    %410 = arith.cmpi eq, %1, %409 : vector<4x1xi32>
    %411 = vector.shape_cast %410 : vector<4x1xi1> to vector<4x1xi1>
    %412 = vector.broadcast %411 : vector<4x1xi1> to vector<4x32xi1>
    %413 = arith.select %412, %408, %379 : vector<4x32xi1>, vector<4x32xf32>
    %414 = vector.extract_strided_slice %305 {offsets = [12, 0], sizes = [4, 96], strides = [1, 1]} : vector<32x96xf32> to vector<4x96xf32>
    %cst_81 = arith.constant dense<0.000000e+00> : vector<4x96xf32>
    %415 = tpu.matmul %408, %306, %cst_81 {dimension_numbers = #tpu.dot_dimension_numbers<[1], [0], [0], [1], [0, 0, 1, 1], [], []>} : vector<4x32xf32>, vector<32x96xf32>, vector<4x96xf32> -> vector<4x96xf32>
    %416 = vector.extract_strided_slice %414 {offsets = [0, 0], sizes = [4, 32], strides = [1, 1]} : vector<4x96xf32> to vector<4x32xf32>
    %417 = vector.extract_strided_slice %415 {offsets = [0, 0], sizes = [4, 32], strides = [1, 1]} : vector<4x96xf32> to vector<4x32xf32>
    %418 = arith.addf %416, %417 : vector<4x32xf32>
    %419 = arith.negf %418 : vector<4x32xf32>
    %420 = math.exp %419 : vector<4x32xf32>
    %cst_82 = arith.constant 1.000000e+00 : f32
    %421 = vector.broadcast %cst_82 : f32 to vector<4x32xf32>
    %422 = arith.addf %421, %420 : vector<4x32xf32>
    %423 = arith.divf %421, %422 : vector<4x32xf32>
    %424 = vector.extract_strided_slice %414 {offsets = [0, 32], sizes = [4, 32], strides = [1, 1]} : vector<4x96xf32> to vector<4x32xf32>
    %425 = vector.extract_strided_slice %415 {offsets = [0, 32], sizes = [4, 32], strides = [1, 1]} : vector<4x96xf32> to vector<4x32xf32>
    %426 = arith.addf %424, %425 : vector<4x32xf32>
    %427 = arith.negf %426 : vector<4x32xf32>
    %428 = math.exp %427 : vector<4x32xf32>
    %cst_83 = arith.constant 1.000000e+00 : f32
    %429 = vector.broadcast %cst_83 : f32 to vector<4x32xf32>
    %430 = arith.addf %429, %428 : vector<4x32xf32>
    %431 = arith.divf %429, %430 : vector<4x32xf32>
    %432 = vector.extract_strided_slice %414 {offsets = [0, 64], sizes = [4, 32], strides = [1, 1]} : vector<4x96xf32> to vector<4x32xf32>
    %433 = vector.extract_strided_slice %415 {offsets = [0, 64], sizes = [4, 32], strides = [1, 1]} : vector<4x96xf32> to vector<4x32xf32>
    %434 = arith.addf %433, %309 : vector<4x32xf32>
    %435 = arith.mulf %423, %434 : vector<4x32xf32>
    %436 = arith.addf %432, %435 : vector<4x32xf32>
    %437 = math.tanh %436 : vector<4x32xf32>
    %cst_84 = arith.constant 1.000000e+00 : f32
    %438 = vector.broadcast %cst_84 : f32 to vector<4x32xf32>
    %439 = arith.subf %438, %431 : vector<4x32xf32>
    %440 = arith.mulf %439, %437 : vector<4x32xf32>
    %441 = arith.mulf %431, %408 : vector<4x32xf32>
    %442 = arith.addf %440, %441 : vector<4x32xf32>
    %c3_i32_85 = arith.constant 3 : i32
    %443 = vector.broadcast %c3_i32_85 : i32 to vector<4x1xi32>
    %444 = arith.cmpi eq, %1, %443 : vector<4x1xi32>
    %445 = vector.shape_cast %444 : vector<4x1xi1> to vector<4x1xi1>
    %446 = vector.broadcast %445 : vector<4x1xi1> to vector<4x32xi1>
    %447 = arith.select %446, %442, %413 : vector<4x32xi1>, vector<4x32xf32>
    %448 = vector.extract_strided_slice %305 {offsets = [16, 0], sizes = [4, 96], strides = [1, 1]} : vector<32x96xf32> to vector<4x96xf32>
    %cst_86 = arith.constant dense<0.000000e+00> : vector<4x96xf32>
    %449 = tpu.matmul %442, %306, %cst_86 {dimension_numbers = #tpu.dot_dimension_numbers<[1], [0], [0], [1], [0, 0, 1, 1], [], []>} : vector<4x32xf32>, vector<32x96xf32>, vector<4x96xf32> -> vector<4x96xf32>
    %450 = vector.extract_strided_slice %448 {offsets = [0, 0], sizes = [4, 32], strides = [1, 1]} : vector<4x96xf32> to vector<4x32xf32>
    %451 = vector.extract_strided_slice %449 {offsets = [0, 0], sizes = [4, 32], strides = [1, 1]} : vector<4x96xf32> to vector<4x32xf32>
    %452 = arith.addf %450, %451 : vector<4x32xf32>
    %453 = arith.negf %452 : vector<4x32xf32>
    %454 = math.exp %453 : vector<4x32xf32>
    %cst_87 = arith.constant 1.000000e+00 : f32
    %455 = vector.broadcast %cst_87 : f32 to vector<4x32xf32>
    %456 = arith.addf %455, %454 : vector<4x32xf32>
    %457 = arith.divf %455, %456 : vector<4x32xf32>
    %458 = vector.extract_strided_slice %448 {offsets = [0, 32], sizes = [4, 32], strides = [1, 1]} : vector<4x96xf32> to vector<4x32xf32>
    %459 = vector.extract_strided_slice %449 {offsets = [0, 32], sizes = [4, 32], strides = [1, 1]} : vector<4x96xf32> to vector<4x32xf32>
    %460 = arith.addf %458, %459 : vector<4x32xf32>
    %461 = arith.negf %460 : vector<4x32xf32>
    %462 = math.exp %461 : vector<4x32xf32>
    %cst_88 = arith.constant 1.000000e+00 : f32
    %463 = vector.broadcast %cst_88 : f32 to vector<4x32xf32>
    %464 = arith.addf %463, %462 : vector<4x32xf32>
    %465 = arith.divf %463, %464 : vector<4x32xf32>
    %466 = vector.extract_strided_slice %448 {offsets = [0, 64], sizes = [4, 32], strides = [1, 1]} : vector<4x96xf32> to vector<4x32xf32>
    %467 = vector.extract_strided_slice %449 {offsets = [0, 64], sizes = [4, 32], strides = [1, 1]} : vector<4x96xf32> to vector<4x32xf32>
    %468 = arith.addf %467, %309 : vector<4x32xf32>
    %469 = arith.mulf %457, %468 : vector<4x32xf32>
    %470 = arith.addf %466, %469 : vector<4x32xf32>
    %471 = math.tanh %470 : vector<4x32xf32>
    %cst_89 = arith.constant 1.000000e+00 : f32
    %472 = vector.broadcast %cst_89 : f32 to vector<4x32xf32>
    %473 = arith.subf %472, %465 : vector<4x32xf32>
    %474 = arith.mulf %473, %471 : vector<4x32xf32>
    %475 = arith.mulf %465, %442 : vector<4x32xf32>
    %476 = arith.addf %474, %475 : vector<4x32xf32>
    %c4_i32_90 = arith.constant 4 : i32
    %477 = vector.broadcast %c4_i32_90 : i32 to vector<4x1xi32>
    %478 = arith.cmpi eq, %1, %477 : vector<4x1xi32>
    %479 = vector.shape_cast %478 : vector<4x1xi1> to vector<4x1xi1>
    %480 = vector.broadcast %479 : vector<4x1xi1> to vector<4x32xi1>
    %481 = arith.select %480, %476, %447 : vector<4x32xi1>, vector<4x32xf32>
    %482 = vector.extract_strided_slice %305 {offsets = [20, 0], sizes = [4, 96], strides = [1, 1]} : vector<32x96xf32> to vector<4x96xf32>
    %cst_91 = arith.constant dense<0.000000e+00> : vector<4x96xf32>
    %483 = tpu.matmul %476, %306, %cst_91 {dimension_numbers = #tpu.dot_dimension_numbers<[1], [0], [0], [1], [0, 0, 1, 1], [], []>} : vector<4x32xf32>, vector<32x96xf32>, vector<4x96xf32> -> vector<4x96xf32>
    %484 = vector.extract_strided_slice %482 {offsets = [0, 0], sizes = [4, 32], strides = [1, 1]} : vector<4x96xf32> to vector<4x32xf32>
    %485 = vector.extract_strided_slice %483 {offsets = [0, 0], sizes = [4, 32], strides = [1, 1]} : vector<4x96xf32> to vector<4x32xf32>
    %486 = arith.addf %484, %485 : vector<4x32xf32>
    %487 = arith.negf %486 : vector<4x32xf32>
    %488 = math.exp %487 : vector<4x32xf32>
    %cst_92 = arith.constant 1.000000e+00 : f32
    %489 = vector.broadcast %cst_92 : f32 to vector<4x32xf32>
    %490 = arith.addf %489, %488 : vector<4x32xf32>
    %491 = arith.divf %489, %490 : vector<4x32xf32>
    %492 = vector.extract_strided_slice %482 {offsets = [0, 32], sizes = [4, 32], strides = [1, 1]} : vector<4x96xf32> to vector<4x32xf32>
    %493 = vector.extract_strided_slice %483 {offsets = [0, 32], sizes = [4, 32], strides = [1, 1]} : vector<4x96xf32> to vector<4x32xf32>
    %494 = arith.addf %492, %493 : vector<4x32xf32>
    %495 = arith.negf %494 : vector<4x32xf32>
    %496 = math.exp %495 : vector<4x32xf32>
    %cst_93 = arith.constant 1.000000e+00 : f32
    %497 = vector.broadcast %cst_93 : f32 to vector<4x32xf32>
    %498 = arith.addf %497, %496 : vector<4x32xf32>
    %499 = arith.divf %497, %498 : vector<4x32xf32>
    %500 = vector.extract_strided_slice %482 {offsets = [0, 64], sizes = [4, 32], strides = [1, 1]} : vector<4x96xf32> to vector<4x32xf32>
    %501 = vector.extract_strided_slice %483 {offsets = [0, 64], sizes = [4, 32], strides = [1, 1]} : vector<4x96xf32> to vector<4x32xf32>
    %502 = arith.addf %501, %309 : vector<4x32xf32>
    %503 = arith.mulf %491, %502 : vector<4x32xf32>
    %504 = arith.addf %500, %503 : vector<4x32xf32>
    %505 = math.tanh %504 : vector<4x32xf32>
    %cst_94 = arith.constant 1.000000e+00 : f32
    %506 = vector.broadcast %cst_94 : f32 to vector<4x32xf32>
    %507 = arith.subf %506, %499 : vector<4x32xf32>
    %508 = arith.mulf %507, %505 : vector<4x32xf32>
    %509 = arith.mulf %499, %476 : vector<4x32xf32>
    %510 = arith.addf %508, %509 : vector<4x32xf32>
    %c5_i32_95 = arith.constant 5 : i32
    %511 = vector.broadcast %c5_i32_95 : i32 to vector<4x1xi32>
    %512 = arith.cmpi eq, %1, %511 : vector<4x1xi32>
    %513 = vector.shape_cast %512 : vector<4x1xi1> to vector<4x1xi1>
    %514 = vector.broadcast %513 : vector<4x1xi1> to vector<4x32xi1>
    %515 = arith.select %514, %510, %481 : vector<4x32xi1>, vector<4x32xf32>
    %516 = vector.extract_strided_slice %305 {offsets = [24, 0], sizes = [4, 96], strides = [1, 1]} : vector<32x96xf32> to vector<4x96xf32>
    %cst_96 = arith.constant dense<0.000000e+00> : vector<4x96xf32>
    %517 = tpu.matmul %510, %306, %cst_96 {dimension_numbers = #tpu.dot_dimension_numbers<[1], [0], [0], [1], [0, 0, 1, 1], [], []>} : vector<4x32xf32>, vector<32x96xf32>, vector<4x96xf32> -> vector<4x96xf32>
    %518 = vector.extract_strided_slice %516 {offsets = [0, 0], sizes = [4, 32], strides = [1, 1]} : vector<4x96xf32> to vector<4x32xf32>
    %519 = vector.extract_strided_slice %517 {offsets = [0, 0], sizes = [4, 32], strides = [1, 1]} : vector<4x96xf32> to vector<4x32xf32>
    %520 = arith.addf %518, %519 : vector<4x32xf32>
    %521 = arith.negf %520 : vector<4x32xf32>
    %522 = math.exp %521 : vector<4x32xf32>
    %cst_97 = arith.constant 1.000000e+00 : f32
    %523 = vector.broadcast %cst_97 : f32 to vector<4x32xf32>
    %524 = arith.addf %523, %522 : vector<4x32xf32>
    %525 = arith.divf %523, %524 : vector<4x32xf32>
    %526 = vector.extract_strided_slice %516 {offsets = [0, 32], sizes = [4, 32], strides = [1, 1]} : vector<4x96xf32> to vector<4x32xf32>
    %527 = vector.extract_strided_slice %517 {offsets = [0, 32], sizes = [4, 32], strides = [1, 1]} : vector<4x96xf32> to vector<4x32xf32>
    %528 = arith.addf %526, %527 : vector<4x32xf32>
    %529 = arith.negf %528 : vector<4x32xf32>
    %530 = math.exp %529 : vector<4x32xf32>
    %cst_98 = arith.constant 1.000000e+00 : f32
    %531 = vector.broadcast %cst_98 : f32 to vector<4x32xf32>
    %532 = arith.addf %531, %530 : vector<4x32xf32>
    %533 = arith.divf %531, %532 : vector<4x32xf32>
    %534 = vector.extract_strided_slice %516 {offsets = [0, 64], sizes = [4, 32], strides = [1, 1]} : vector<4x96xf32> to vector<4x32xf32>
    %535 = vector.extract_strided_slice %517 {offsets = [0, 64], sizes = [4, 32], strides = [1, 1]} : vector<4x96xf32> to vector<4x32xf32>
    %536 = arith.addf %535, %309 : vector<4x32xf32>
    %537 = arith.mulf %525, %536 : vector<4x32xf32>
    %538 = arith.addf %534, %537 : vector<4x32xf32>
    %539 = math.tanh %538 : vector<4x32xf32>
    %cst_99 = arith.constant 1.000000e+00 : f32
    %540 = vector.broadcast %cst_99 : f32 to vector<4x32xf32>
    %541 = arith.subf %540, %533 : vector<4x32xf32>
    %542 = arith.mulf %541, %539 : vector<4x32xf32>
    %543 = arith.mulf %533, %510 : vector<4x32xf32>
    %544 = arith.addf %542, %543 : vector<4x32xf32>
    %c6_i32_100 = arith.constant 6 : i32
    %545 = vector.broadcast %c6_i32_100 : i32 to vector<4x1xi32>
    %546 = arith.cmpi eq, %1, %545 : vector<4x1xi32>
    %547 = vector.shape_cast %546 : vector<4x1xi1> to vector<4x1xi1>
    %548 = vector.broadcast %547 : vector<4x1xi1> to vector<4x32xi1>
    %549 = arith.select %548, %544, %515 : vector<4x32xi1>, vector<4x32xf32>
    %550 = vector.extract_strided_slice %305 {offsets = [28, 0], sizes = [4, 96], strides = [1, 1]} : vector<32x96xf32> to vector<4x96xf32>
    %cst_101 = arith.constant dense<0.000000e+00> : vector<4x96xf32>
    %551 = tpu.matmul %544, %306, %cst_101 {dimension_numbers = #tpu.dot_dimension_numbers<[1], [0], [0], [1], [0, 0, 1, 1], [], []>} : vector<4x32xf32>, vector<32x96xf32>, vector<4x96xf32> -> vector<4x96xf32>
    %552 = vector.extract_strided_slice %550 {offsets = [0, 0], sizes = [4, 32], strides = [1, 1]} : vector<4x96xf32> to vector<4x32xf32>
    %553 = vector.extract_strided_slice %551 {offsets = [0, 0], sizes = [4, 32], strides = [1, 1]} : vector<4x96xf32> to vector<4x32xf32>
    %554 = arith.addf %552, %553 : vector<4x32xf32>
    %555 = arith.negf %554 : vector<4x32xf32>
    %556 = math.exp %555 : vector<4x32xf32>
    %cst_102 = arith.constant 1.000000e+00 : f32
    %557 = vector.broadcast %cst_102 : f32 to vector<4x32xf32>
    %558 = arith.addf %557, %556 : vector<4x32xf32>
    %559 = arith.divf %557, %558 : vector<4x32xf32>
    %560 = vector.extract_strided_slice %550 {offsets = [0, 32], sizes = [4, 32], strides = [1, 1]} : vector<4x96xf32> to vector<4x32xf32>
    %561 = vector.extract_strided_slice %551 {offsets = [0, 32], sizes = [4, 32], strides = [1, 1]} : vector<4x96xf32> to vector<4x32xf32>
    %562 = arith.addf %560, %561 : vector<4x32xf32>
    %563 = arith.negf %562 : vector<4x32xf32>
    %564 = math.exp %563 : vector<4x32xf32>
    %cst_103 = arith.constant 1.000000e+00 : f32
    %565 = vector.broadcast %cst_103 : f32 to vector<4x32xf32>
    %566 = arith.addf %565, %564 : vector<4x32xf32>
    %567 = arith.divf %565, %566 : vector<4x32xf32>
    %568 = vector.extract_strided_slice %550 {offsets = [0, 64], sizes = [4, 32], strides = [1, 1]} : vector<4x96xf32> to vector<4x32xf32>
    %569 = vector.extract_strided_slice %551 {offsets = [0, 64], sizes = [4, 32], strides = [1, 1]} : vector<4x96xf32> to vector<4x32xf32>
    %570 = arith.addf %569, %309 : vector<4x32xf32>
    %571 = arith.mulf %559, %570 : vector<4x32xf32>
    %572 = arith.addf %568, %571 : vector<4x32xf32>
    %573 = math.tanh %572 : vector<4x32xf32>
    %cst_104 = arith.constant 1.000000e+00 : f32
    %574 = vector.broadcast %cst_104 : f32 to vector<4x32xf32>
    %575 = arith.subf %574, %567 : vector<4x32xf32>
    %576 = arith.mulf %575, %573 : vector<4x32xf32>
    %577 = arith.mulf %567, %544 : vector<4x32xf32>
    %578 = arith.addf %576, %577 : vector<4x32xf32>
    %c7_i32_105 = arith.constant 7 : i32
    %579 = vector.broadcast %c7_i32_105 : i32 to vector<4x1xi32>
    %580 = arith.cmpi eq, %1, %579 : vector<4x1xi32>
    %581 = vector.shape_cast %580 : vector<4x1xi1> to vector<4x1xi1>
    %582 = vector.broadcast %581 : vector<4x1xi1> to vector<4x32xi1>
    %583 = arith.select %582, %578, %549 : vector<4x32xi1>, vector<4x32xf32>
    %584 = tpu.iota {dimensions = array<i32: 1>} : vector<32x50xi32>
    %c0_106 = arith.constant 0 : index
    %c0_107 = arith.constant 0 : index
    %585 = vector.load %arg2[%c0_106, %c0_107] : memref<32x1xi32, #tpu.memory_space<vmem>>, vector<32x1xi32>
    %586 = vector.broadcast %585 : vector<32x1xi32> to vector<32x50xi32>
    %587 = arith.cmpi eq, %586, %584 : vector<32x50xi32>
    %588 = arith.extui %587 : vector<32x50xi1> to vector<32x50xi32>
    %589 = arith.sitofp %588 : vector<32x50xi32> to vector<32x50xf32>
    %c0_108 = arith.constant 0 : index
    %c0_109 = arith.constant 0 : index
    %590 = vector.load %arg0[%c0_108, %c0_109] : memref<50x32xf32, #tpu.memory_space<vmem>>, vector<50x32xf32>
    %cst_110 = arith.constant dense<0.000000e+00> : vector<32x32xf32>
    %591 = tpu.matmul %589, %590, %cst_110 {dimension_numbers = #tpu.dot_dimension_numbers<[1], [0], [0], [1], [0, 0, 1, 1], [], []>} : vector<32x50xf32>, vector<50x32xf32>, vector<32x32xf32> -> vector<32x32xf32>
    %c0_111 = arith.constant 0 : index
    %c0_112 = arith.constant 0 : index
    %592 = vector.load %arg15[%c0_111, %c0_112] : memref<32x96xf32, #tpu.memory_space<vmem>>, vector<32x96xf32>
    %cst_113 = arith.constant dense<0.000000e+00> : vector<32x96xf32>
    %593 = tpu.matmul %591, %592, %cst_113 {dimension_numbers = #tpu.dot_dimension_numbers<[1], [0], [0], [1], [0, 0, 1, 1], [], []>} : vector<32x32xf32>, vector<32x96xf32>, vector<32x96xf32> -> vector<32x96xf32>
    %c0_114 = arith.constant 0 : index
    %c0_115 = arith.constant 0 : index
    %594 = vector.load %arg17[%c0_114, %c0_115] : memref<1x96xf32, #tpu.memory_space<vmem>>, vector<1x96xf32>
    %595 = vector.broadcast %594 : vector<1x96xf32> to vector<32x96xf32>
    %596 = arith.addf %593, %595 : vector<32x96xf32>
    %c0_116 = arith.constant 0 : index
    %c0_117 = arith.constant 0 : index
    %597 = vector.load %arg16[%c0_116, %c0_117] : memref<32x96xf32, #tpu.memory_space<vmem>>, vector<32x96xf32>
    %c0_118 = arith.constant 0 : index
    %c0_119 = arith.constant 0 : index
    %598 = vector.load %arg18[%c0_118, %c0_119] : memref<1x32xf32, #tpu.memory_space<vmem>>, vector<1x32xf32>
    %599 = vector.shape_cast %598 : vector<1x32xf32> to vector<1x32xf32>
    %600 = vector.broadcast %599 : vector<1x32xf32> to vector<4x32xf32>
    %cst_120 = arith.constant 0.000000e+00 : f32
    %601 = vector.broadcast %cst_120 : f32 to vector<4x32xf32>
    %cst_121 = arith.constant 0.000000e+00 : f32
    %602 = vector.broadcast %cst_121 : f32 to vector<4x32xf32>
    %603 = vector.extract_strided_slice %596 {offsets = [0, 0], sizes = [4, 96], strides = [1, 1]} : vector<32x96xf32> to vector<4x96xf32>
    %cst_122 = arith.constant dense<0.000000e+00> : vector<4x96xf32>
    %604 = tpu.matmul %601, %597, %cst_122 {dimension_numbers = #tpu.dot_dimension_numbers<[1], [0], [0], [1], [0, 0, 1, 1], [], []>} : vector<4x32xf32>, vector<32x96xf32>, vector<4x96xf32> -> vector<4x96xf32>
    %605 = vector.extract_strided_slice %603 {offsets = [0, 0], sizes = [4, 32], strides = [1, 1]} : vector<4x96xf32> to vector<4x32xf32>
    %606 = vector.extract_strided_slice %604 {offsets = [0, 0], sizes = [4, 32], strides = [1, 1]} : vector<4x96xf32> to vector<4x32xf32>
    %607 = arith.addf %605, %606 : vector<4x32xf32>
    %608 = arith.negf %607 : vector<4x32xf32>
    %609 = math.exp %608 : vector<4x32xf32>
    %cst_123 = arith.constant 1.000000e+00 : f32
    %610 = vector.broadcast %cst_123 : f32 to vector<4x32xf32>
    %611 = arith.addf %610, %609 : vector<4x32xf32>
    %612 = arith.divf %610, %611 : vector<4x32xf32>
    %613 = vector.extract_strided_slice %603 {offsets = [0, 32], sizes = [4, 32], strides = [1, 1]} : vector<4x96xf32> to vector<4x32xf32>
    %614 = vector.extract_strided_slice %604 {offsets = [0, 32], sizes = [4, 32], strides = [1, 1]} : vector<4x96xf32> to vector<4x32xf32>
    %615 = arith.addf %613, %614 : vector<4x32xf32>
    %616 = arith.negf %615 : vector<4x32xf32>
    %617 = math.exp %616 : vector<4x32xf32>
    %cst_124 = arith.constant 1.000000e+00 : f32
    %618 = vector.broadcast %cst_124 : f32 to vector<4x32xf32>
    %619 = arith.addf %618, %617 : vector<4x32xf32>
    %620 = arith.divf %618, %619 : vector<4x32xf32>
    %621 = vector.extract_strided_slice %603 {offsets = [0, 64], sizes = [4, 32], strides = [1, 1]} : vector<4x96xf32> to vector<4x32xf32>
    %622 = vector.extract_strided_slice %604 {offsets = [0, 64], sizes = [4, 32], strides = [1, 1]} : vector<4x96xf32> to vector<4x32xf32>
    %623 = arith.addf %622, %600 : vector<4x32xf32>
    %624 = arith.mulf %612, %623 : vector<4x32xf32>
    %625 = arith.addf %621, %624 : vector<4x32xf32>
    %626 = math.tanh %625 : vector<4x32xf32>
    %cst_125 = arith.constant 1.000000e+00 : f32
    %627 = vector.broadcast %cst_125 : f32 to vector<4x32xf32>
    %628 = arith.subf %627, %620 : vector<4x32xf32>
    %629 = arith.mulf %628, %626 : vector<4x32xf32>
    %630 = arith.mulf %620, %601 : vector<4x32xf32>
    %631 = arith.addf %629, %630 : vector<4x32xf32>
    %c0_i32_126 = arith.constant 0 : i32
    %632 = vector.broadcast %c0_i32_126 : i32 to vector<4x1xi32>
    %633 = arith.cmpi eq, %0, %632 : vector<4x1xi32>
    %634 = vector.shape_cast %633 : vector<4x1xi1> to vector<4x1xi1>
    %635 = vector.broadcast %634 : vector<4x1xi1> to vector<4x32xi1>
    %636 = arith.select %635, %631, %602 : vector<4x32xi1>, vector<4x32xf32>
    %637 = vector.extract_strided_slice %596 {offsets = [4, 0], sizes = [4, 96], strides = [1, 1]} : vector<32x96xf32> to vector<4x96xf32>
    %cst_127 = arith.constant dense<0.000000e+00> : vector<4x96xf32>
    %638 = tpu.matmul %631, %597, %cst_127 {dimension_numbers = #tpu.dot_dimension_numbers<[1], [0], [0], [1], [0, 0, 1, 1], [], []>} : vector<4x32xf32>, vector<32x96xf32>, vector<4x96xf32> -> vector<4x96xf32>
    %639 = vector.extract_strided_slice %637 {offsets = [0, 0], sizes = [4, 32], strides = [1, 1]} : vector<4x96xf32> to vector<4x32xf32>
    %640 = vector.extract_strided_slice %638 {offsets = [0, 0], sizes = [4, 32], strides = [1, 1]} : vector<4x96xf32> to vector<4x32xf32>
    %641 = arith.addf %639, %640 : vector<4x32xf32>
    %642 = arith.negf %641 : vector<4x32xf32>
    %643 = math.exp %642 : vector<4x32xf32>
    %cst_128 = arith.constant 1.000000e+00 : f32
    %644 = vector.broadcast %cst_128 : f32 to vector<4x32xf32>
    %645 = arith.addf %644, %643 : vector<4x32xf32>
    %646 = arith.divf %644, %645 : vector<4x32xf32>
    %647 = vector.extract_strided_slice %637 {offsets = [0, 32], sizes = [4, 32], strides = [1, 1]} : vector<4x96xf32> to vector<4x32xf32>
    %648 = vector.extract_strided_slice %638 {offsets = [0, 32], sizes = [4, 32], strides = [1, 1]} : vector<4x96xf32> to vector<4x32xf32>
    %649 = arith.addf %647, %648 : vector<4x32xf32>
    %650 = arith.negf %649 : vector<4x32xf32>
    %651 = math.exp %650 : vector<4x32xf32>
    %cst_129 = arith.constant 1.000000e+00 : f32
    %652 = vector.broadcast %cst_129 : f32 to vector<4x32xf32>
    %653 = arith.addf %652, %651 : vector<4x32xf32>
    %654 = arith.divf %652, %653 : vector<4x32xf32>
    %655 = vector.extract_strided_slice %637 {offsets = [0, 64], sizes = [4, 32], strides = [1, 1]} : vector<4x96xf32> to vector<4x32xf32>
    %656 = vector.extract_strided_slice %638 {offsets = [0, 64], sizes = [4, 32], strides = [1, 1]} : vector<4x96xf32> to vector<4x32xf32>
    %657 = arith.addf %656, %600 : vector<4x32xf32>
    %658 = arith.mulf %646, %657 : vector<4x32xf32>
    %659 = arith.addf %655, %658 : vector<4x32xf32>
    %660 = math.tanh %659 : vector<4x32xf32>
    %cst_130 = arith.constant 1.000000e+00 : f32
    %661 = vector.broadcast %cst_130 : f32 to vector<4x32xf32>
    %662 = arith.subf %661, %654 : vector<4x32xf32>
    %663 = arith.mulf %662, %660 : vector<4x32xf32>
    %664 = arith.mulf %654, %631 : vector<4x32xf32>
    %665 = arith.addf %663, %664 : vector<4x32xf32>
    %c1_i32_131 = arith.constant 1 : i32
    %666 = vector.broadcast %c1_i32_131 : i32 to vector<4x1xi32>
    %667 = arith.cmpi eq, %0, %666 : vector<4x1xi32>
    %668 = vector.shape_cast %667 : vector<4x1xi1> to vector<4x1xi1>
    %669 = vector.broadcast %668 : vector<4x1xi1> to vector<4x32xi1>
    %670 = arith.select %669, %665, %636 : vector<4x32xi1>, vector<4x32xf32>
    %671 = vector.extract_strided_slice %596 {offsets = [8, 0], sizes = [4, 96], strides = [1, 1]} : vector<32x96xf32> to vector<4x96xf32>
    %cst_132 = arith.constant dense<0.000000e+00> : vector<4x96xf32>
    %672 = tpu.matmul %665, %597, %cst_132 {dimension_numbers = #tpu.dot_dimension_numbers<[1], [0], [0], [1], [0, 0, 1, 1], [], []>} : vector<4x32xf32>, vector<32x96xf32>, vector<4x96xf32> -> vector<4x96xf32>
    %673 = vector.extract_strided_slice %671 {offsets = [0, 0], sizes = [4, 32], strides = [1, 1]} : vector<4x96xf32> to vector<4x32xf32>
    %674 = vector.extract_strided_slice %672 {offsets = [0, 0], sizes = [4, 32], strides = [1, 1]} : vector<4x96xf32> to vector<4x32xf32>
    %675 = arith.addf %673, %674 : vector<4x32xf32>
    %676 = arith.negf %675 : vector<4x32xf32>
    %677 = math.exp %676 : vector<4x32xf32>
    %cst_133 = arith.constant 1.000000e+00 : f32
    %678 = vector.broadcast %cst_133 : f32 to vector<4x32xf32>
    %679 = arith.addf %678, %677 : vector<4x32xf32>
    %680 = arith.divf %678, %679 : vector<4x32xf32>
    %681 = vector.extract_strided_slice %671 {offsets = [0, 32], sizes = [4, 32], strides = [1, 1]} : vector<4x96xf32> to vector<4x32xf32>
    %682 = vector.extract_strided_slice %672 {offsets = [0, 32], sizes = [4, 32], strides = [1, 1]} : vector<4x96xf32> to vector<4x32xf32>
    %683 = arith.addf %681, %682 : vector<4x32xf32>
    %684 = arith.negf %683 : vector<4x32xf32>
    %685 = math.exp %684 : vector<4x32xf32>
    %cst_134 = arith.constant 1.000000e+00 : f32
    %686 = vector.broadcast %cst_134 : f32 to vector<4x32xf32>
    %687 = arith.addf %686, %685 : vector<4x32xf32>
    %688 = arith.divf %686, %687 : vector<4x32xf32>
    %689 = vector.extract_strided_slice %671 {offsets = [0, 64], sizes = [4, 32], strides = [1, 1]} : vector<4x96xf32> to vector<4x32xf32>
    %690 = vector.extract_strided_slice %672 {offsets = [0, 64], sizes = [4, 32], strides = [1, 1]} : vector<4x96xf32> to vector<4x32xf32>
    %691 = arith.addf %690, %600 : vector<4x32xf32>
    %692 = arith.mulf %680, %691 : vector<4x32xf32>
    %693 = arith.addf %689, %692 : vector<4x32xf32>
    %694 = math.tanh %693 : vector<4x32xf32>
    %cst_135 = arith.constant 1.000000e+00 : f32
    %695 = vector.broadcast %cst_135 : f32 to vector<4x32xf32>
    %696 = arith.subf %695, %688 : vector<4x32xf32>
    %697 = arith.mulf %696, %694 : vector<4x32xf32>
    %698 = arith.mulf %688, %665 : vector<4x32xf32>
    %699 = arith.addf %697, %698 : vector<4x32xf32>
    %c2_i32_136 = arith.constant 2 : i32
    %700 = vector.broadcast %c2_i32_136 : i32 to vector<4x1xi32>
    %701 = arith.cmpi eq, %0, %700 : vector<4x1xi32>
    %702 = vector.shape_cast %701 : vector<4x1xi1> to vector<4x1xi1>
    %703 = vector.broadcast %702 : vector<4x1xi1> to vector<4x32xi1>
    %704 = arith.select %703, %699, %670 : vector<4x32xi1>, vector<4x32xf32>
    %705 = vector.extract_strided_slice %596 {offsets = [12, 0], sizes = [4, 96], strides = [1, 1]} : vector<32x96xf32> to vector<4x96xf32>
    %cst_137 = arith.constant dense<0.000000e+00> : vector<4x96xf32>
    %706 = tpu.matmul %699, %597, %cst_137 {dimension_numbers = #tpu.dot_dimension_numbers<[1], [0], [0], [1], [0, 0, 1, 1], [], []>} : vector<4x32xf32>, vector<32x96xf32>, vector<4x96xf32> -> vector<4x96xf32>
    %707 = vector.extract_strided_slice %705 {offsets = [0, 0], sizes = [4, 32], strides = [1, 1]} : vector<4x96xf32> to vector<4x32xf32>
    %708 = vector.extract_strided_slice %706 {offsets = [0, 0], sizes = [4, 32], strides = [1, 1]} : vector<4x96xf32> to vector<4x32xf32>
    %709 = arith.addf %707, %708 : vector<4x32xf32>
    %710 = arith.negf %709 : vector<4x32xf32>
    %711 = math.exp %710 : vector<4x32xf32>
    %cst_138 = arith.constant 1.000000e+00 : f32
    %712 = vector.broadcast %cst_138 : f32 to vector<4x32xf32>
    %713 = arith.addf %712, %711 : vector<4x32xf32>
    %714 = arith.divf %712, %713 : vector<4x32xf32>
    %715 = vector.extract_strided_slice %705 {offsets = [0, 32], sizes = [4, 32], strides = [1, 1]} : vector<4x96xf32> to vector<4x32xf32>
    %716 = vector.extract_strided_slice %706 {offsets = [0, 32], sizes = [4, 32], strides = [1, 1]} : vector<4x96xf32> to vector<4x32xf32>
    %717 = arith.addf %715, %716 : vector<4x32xf32>
    %718 = arith.negf %717 : vector<4x32xf32>
    %719 = math.exp %718 : vector<4x32xf32>
    %cst_139 = arith.constant 1.000000e+00 : f32
    %720 = vector.broadcast %cst_139 : f32 to vector<4x32xf32>
    %721 = arith.addf %720, %719 : vector<4x32xf32>
    %722 = arith.divf %720, %721 : vector<4x32xf32>
    %723 = vector.extract_strided_slice %705 {offsets = [0, 64], sizes = [4, 32], strides = [1, 1]} : vector<4x96xf32> to vector<4x32xf32>
    %724 = vector.extract_strided_slice %706 {offsets = [0, 64], sizes = [4, 32], strides = [1, 1]} : vector<4x96xf32> to vector<4x32xf32>
    %725 = arith.addf %724, %600 : vector<4x32xf32>
    %726 = arith.mulf %714, %725 : vector<4x32xf32>
    %727 = arith.addf %723, %726 : vector<4x32xf32>
    %728 = math.tanh %727 : vector<4x32xf32>
    %cst_140 = arith.constant 1.000000e+00 : f32
    %729 = vector.broadcast %cst_140 : f32 to vector<4x32xf32>
    %730 = arith.subf %729, %722 : vector<4x32xf32>
    %731 = arith.mulf %730, %728 : vector<4x32xf32>
    %732 = arith.mulf %722, %699 : vector<4x32xf32>
    %733 = arith.addf %731, %732 : vector<4x32xf32>
    %c3_i32_141 = arith.constant 3 : i32
    %734 = vector.broadcast %c3_i32_141 : i32 to vector<4x1xi32>
    %735 = arith.cmpi eq, %0, %734 : vector<4x1xi32>
    %736 = vector.shape_cast %735 : vector<4x1xi1> to vector<4x1xi1>
    %737 = vector.broadcast %736 : vector<4x1xi1> to vector<4x32xi1>
    %738 = arith.select %737, %733, %704 : vector<4x32xi1>, vector<4x32xf32>
    %739 = vector.extract_strided_slice %596 {offsets = [16, 0], sizes = [4, 96], strides = [1, 1]} : vector<32x96xf32> to vector<4x96xf32>
    %cst_142 = arith.constant dense<0.000000e+00> : vector<4x96xf32>
    %740 = tpu.matmul %733, %597, %cst_142 {dimension_numbers = #tpu.dot_dimension_numbers<[1], [0], [0], [1], [0, 0, 1, 1], [], []>} : vector<4x32xf32>, vector<32x96xf32>, vector<4x96xf32> -> vector<4x96xf32>
    %741 = vector.extract_strided_slice %739 {offsets = [0, 0], sizes = [4, 32], strides = [1, 1]} : vector<4x96xf32> to vector<4x32xf32>
    %742 = vector.extract_strided_slice %740 {offsets = [0, 0], sizes = [4, 32], strides = [1, 1]} : vector<4x96xf32> to vector<4x32xf32>
    %743 = arith.addf %741, %742 : vector<4x32xf32>
    %744 = arith.negf %743 : vector<4x32xf32>
    %745 = math.exp %744 : vector<4x32xf32>
    %cst_143 = arith.constant 1.000000e+00 : f32
    %746 = vector.broadcast %cst_143 : f32 to vector<4x32xf32>
    %747 = arith.addf %746, %745 : vector<4x32xf32>
    %748 = arith.divf %746, %747 : vector<4x32xf32>
    %749 = vector.extract_strided_slice %739 {offsets = [0, 32], sizes = [4, 32], strides = [1, 1]} : vector<4x96xf32> to vector<4x32xf32>
    %750 = vector.extract_strided_slice %740 {offsets = [0, 32], sizes = [4, 32], strides = [1, 1]} : vector<4x96xf32> to vector<4x32xf32>
    %751 = arith.addf %749, %750 : vector<4x32xf32>
    %752 = arith.negf %751 : vector<4x32xf32>
    %753 = math.exp %752 : vector<4x32xf32>
    %cst_144 = arith.constant 1.000000e+00 : f32
    %754 = vector.broadcast %cst_144 : f32 to vector<4x32xf32>
    %755 = arith.addf %754, %753 : vector<4x32xf32>
    %756 = arith.divf %754, %755 : vector<4x32xf32>
    %757 = vector.extract_strided_slice %739 {offsets = [0, 64], sizes = [4, 32], strides = [1, 1]} : vector<4x96xf32> to vector<4x32xf32>
    %758 = vector.extract_strided_slice %740 {offsets = [0, 64], sizes = [4, 32], strides = [1, 1]} : vector<4x96xf32> to vector<4x32xf32>
    %759 = arith.addf %758, %600 : vector<4x32xf32>
    %760 = arith.mulf %748, %759 : vector<4x32xf32>
    %761 = arith.addf %757, %760 : vector<4x32xf32>
    %762 = math.tanh %761 : vector<4x32xf32>
    %cst_145 = arith.constant 1.000000e+00 : f32
    %763 = vector.broadcast %cst_145 : f32 to vector<4x32xf32>
    %764 = arith.subf %763, %756 : vector<4x32xf32>
    %765 = arith.mulf %764, %762 : vector<4x32xf32>
    %766 = arith.mulf %756, %733 : vector<4x32xf32>
    %767 = arith.addf %765, %766 : vector<4x32xf32>
    %c4_i32_146 = arith.constant 4 : i32
    %768 = vector.broadcast %c4_i32_146 : i32 to vector<4x1xi32>
    %769 = arith.cmpi eq, %0, %768 : vector<4x1xi32>
    %770 = vector.shape_cast %769 : vector<4x1xi1> to vector<4x1xi1>
    %771 = vector.broadcast %770 : vector<4x1xi1> to vector<4x32xi1>
    %772 = arith.select %771, %767, %738 : vector<4x32xi1>, vector<4x32xf32>
    %773 = vector.extract_strided_slice %596 {offsets = [20, 0], sizes = [4, 96], strides = [1, 1]} : vector<32x96xf32> to vector<4x96xf32>
    %cst_147 = arith.constant dense<0.000000e+00> : vector<4x96xf32>
    %774 = tpu.matmul %767, %597, %cst_147 {dimension_numbers = #tpu.dot_dimension_numbers<[1], [0], [0], [1], [0, 0, 1, 1], [], []>} : vector<4x32xf32>, vector<32x96xf32>, vector<4x96xf32> -> vector<4x96xf32>
    %775 = vector.extract_strided_slice %773 {offsets = [0, 0], sizes = [4, 32], strides = [1, 1]} : vector<4x96xf32> to vector<4x32xf32>
    %776 = vector.extract_strided_slice %774 {offsets = [0, 0], sizes = [4, 32], strides = [1, 1]} : vector<4x96xf32> to vector<4x32xf32>
    %777 = arith.addf %775, %776 : vector<4x32xf32>
    %778 = arith.negf %777 : vector<4x32xf32>
    %779 = math.exp %778 : vector<4x32xf32>
    %cst_148 = arith.constant 1.000000e+00 : f32
    %780 = vector.broadcast %cst_148 : f32 to vector<4x32xf32>
    %781 = arith.addf %780, %779 : vector<4x32xf32>
    %782 = arith.divf %780, %781 : vector<4x32xf32>
    %783 = vector.extract_strided_slice %773 {offsets = [0, 32], sizes = [4, 32], strides = [1, 1]} : vector<4x96xf32> to vector<4x32xf32>
    %784 = vector.extract_strided_slice %774 {offsets = [0, 32], sizes = [4, 32], strides = [1, 1]} : vector<4x96xf32> to vector<4x32xf32>
    %785 = arith.addf %783, %784 : vector<4x32xf32>
    %786 = arith.negf %785 : vector<4x32xf32>
    %787 = math.exp %786 : vector<4x32xf32>
    %cst_149 = arith.constant 1.000000e+00 : f32
    %788 = vector.broadcast %cst_149 : f32 to vector<4x32xf32>
    %789 = arith.addf %788, %787 : vector<4x32xf32>
    %790 = arith.divf %788, %789 : vector<4x32xf32>
    %791 = vector.extract_strided_slice %773 {offsets = [0, 64], sizes = [4, 32], strides = [1, 1]} : vector<4x96xf32> to vector<4x32xf32>
    %792 = vector.extract_strided_slice %774 {offsets = [0, 64], sizes = [4, 32], strides = [1, 1]} : vector<4x96xf32> to vector<4x32xf32>
    %793 = arith.addf %792, %600 : vector<4x32xf32>
    %794 = arith.mulf %782, %793 : vector<4x32xf32>
    %795 = arith.addf %791, %794 : vector<4x32xf32>
    %796 = math.tanh %795 : vector<4x32xf32>
    %cst_150 = arith.constant 1.000000e+00 : f32
    %797 = vector.broadcast %cst_150 : f32 to vector<4x32xf32>
    %798 = arith.subf %797, %790 : vector<4x32xf32>
    %799 = arith.mulf %798, %796 : vector<4x32xf32>
    %800 = arith.mulf %790, %767 : vector<4x32xf32>
    %801 = arith.addf %799, %800 : vector<4x32xf32>
    %c5_i32_151 = arith.constant 5 : i32
    %802 = vector.broadcast %c5_i32_151 : i32 to vector<4x1xi32>
    %803 = arith.cmpi eq, %0, %802 : vector<4x1xi32>
    %804 = vector.shape_cast %803 : vector<4x1xi1> to vector<4x1xi1>
    %805 = vector.broadcast %804 : vector<4x1xi1> to vector<4x32xi1>
    %806 = arith.select %805, %801, %772 : vector<4x32xi1>, vector<4x32xf32>
    %807 = vector.extract_strided_slice %596 {offsets = [24, 0], sizes = [4, 96], strides = [1, 1]} : vector<32x96xf32> to vector<4x96xf32>
    %cst_152 = arith.constant dense<0.000000e+00> : vector<4x96xf32>
    %808 = tpu.matmul %801, %597, %cst_152 {dimension_numbers = #tpu.dot_dimension_numbers<[1], [0], [0], [1], [0, 0, 1, 1], [], []>} : vector<4x32xf32>, vector<32x96xf32>, vector<4x96xf32> -> vector<4x96xf32>
    %809 = vector.extract_strided_slice %807 {offsets = [0, 0], sizes = [4, 32], strides = [1, 1]} : vector<4x96xf32> to vector<4x32xf32>
    %810 = vector.extract_strided_slice %808 {offsets = [0, 0], sizes = [4, 32], strides = [1, 1]} : vector<4x96xf32> to vector<4x32xf32>
    %811 = arith.addf %809, %810 : vector<4x32xf32>
    %812 = arith.negf %811 : vector<4x32xf32>
    %813 = math.exp %812 : vector<4x32xf32>
    %cst_153 = arith.constant 1.000000e+00 : f32
    %814 = vector.broadcast %cst_153 : f32 to vector<4x32xf32>
    %815 = arith.addf %814, %813 : vector<4x32xf32>
    %816 = arith.divf %814, %815 : vector<4x32xf32>
    %817 = vector.extract_strided_slice %807 {offsets = [0, 32], sizes = [4, 32], strides = [1, 1]} : vector<4x96xf32> to vector<4x32xf32>
    %818 = vector.extract_strided_slice %808 {offsets = [0, 32], sizes = [4, 32], strides = [1, 1]} : vector<4x96xf32> to vector<4x32xf32>
    %819 = arith.addf %817, %818 : vector<4x32xf32>
    %820 = arith.negf %819 : vector<4x32xf32>
    %821 = math.exp %820 : vector<4x32xf32>
    %cst_154 = arith.constant 1.000000e+00 : f32
    %822 = vector.broadcast %cst_154 : f32 to vector<4x32xf32>
    %823 = arith.addf %822, %821 : vector<4x32xf32>
    %824 = arith.divf %822, %823 : vector<4x32xf32>
    %825 = vector.extract_strided_slice %807 {offsets = [0, 64], sizes = [4, 32], strides = [1, 1]} : vector<4x96xf32> to vector<4x32xf32>
    %826 = vector.extract_strided_slice %808 {offsets = [0, 64], sizes = [4, 32], strides = [1, 1]} : vector<4x96xf32> to vector<4x32xf32>
    %827 = arith.addf %826, %600 : vector<4x32xf32>
    %828 = arith.mulf %816, %827 : vector<4x32xf32>
    %829 = arith.addf %825, %828 : vector<4x32xf32>
    %830 = math.tanh %829 : vector<4x32xf32>
    %cst_155 = arith.constant 1.000000e+00 : f32
    %831 = vector.broadcast %cst_155 : f32 to vector<4x32xf32>
    %832 = arith.subf %831, %824 : vector<4x32xf32>
    %833 = arith.mulf %832, %830 : vector<4x32xf32>
    %834 = arith.mulf %824, %801 : vector<4x32xf32>
    %835 = arith.addf %833, %834 : vector<4x32xf32>
    %c6_i32_156 = arith.constant 6 : i32
    %836 = vector.broadcast %c6_i32_156 : i32 to vector<4x1xi32>
    %837 = arith.cmpi eq, %0, %836 : vector<4x1xi32>
    %838 = vector.shape_cast %837 : vector<4x1xi1> to vector<4x1xi1>
    %839 = vector.broadcast %838 : vector<4x1xi1> to vector<4x32xi1>
    %840 = arith.select %839, %835, %806 : vector<4x32xi1>, vector<4x32xf32>
    %841 = vector.extract_strided_slice %596 {offsets = [28, 0], sizes = [4, 96], strides = [1, 1]} : vector<32x96xf32> to vector<4x96xf32>
    %cst_157 = arith.constant dense<0.000000e+00> : vector<4x96xf32>
    %842 = tpu.matmul %835, %597, %cst_157 {dimension_numbers = #tpu.dot_dimension_numbers<[1], [0], [0], [1], [0, 0, 1, 1], [], []>} : vector<4x32xf32>, vector<32x96xf32>, vector<4x96xf32> -> vector<4x96xf32>
    %843 = vector.extract_strided_slice %841 {offsets = [0, 0], sizes = [4, 32], strides = [1, 1]} : vector<4x96xf32> to vector<4x32xf32>
    %844 = vector.extract_strided_slice %842 {offsets = [0, 0], sizes = [4, 32], strides = [1, 1]} : vector<4x96xf32> to vector<4x32xf32>
    %845 = arith.addf %843, %844 : vector<4x32xf32>
    %846 = arith.negf %845 : vector<4x32xf32>
    %847 = math.exp %846 : vector<4x32xf32>
    %cst_158 = arith.constant 1.000000e+00 : f32
    %848 = vector.broadcast %cst_158 : f32 to vector<4x32xf32>
    %849 = arith.addf %848, %847 : vector<4x32xf32>
    %850 = arith.divf %848, %849 : vector<4x32xf32>
    %851 = vector.extract_strided_slice %841 {offsets = [0, 32], sizes = [4, 32], strides = [1, 1]} : vector<4x96xf32> to vector<4x32xf32>
    %852 = vector.extract_strided_slice %842 {offsets = [0, 32], sizes = [4, 32], strides = [1, 1]} : vector<4x96xf32> to vector<4x32xf32>
    %853 = arith.addf %851, %852 : vector<4x32xf32>
    %854 = arith.negf %853 : vector<4x32xf32>
    %855 = math.exp %854 : vector<4x32xf32>
    %cst_159 = arith.constant 1.000000e+00 : f32
    %856 = vector.broadcast %cst_159 : f32 to vector<4x32xf32>
    %857 = arith.addf %856, %855 : vector<4x32xf32>
    %858 = arith.divf %856, %857 : vector<4x32xf32>
    %859 = vector.extract_strided_slice %841 {offsets = [0, 64], sizes = [4, 32], strides = [1, 1]} : vector<4x96xf32> to vector<4x32xf32>
    %860 = vector.extract_strided_slice %842 {offsets = [0, 64], sizes = [4, 32], strides = [1, 1]} : vector<4x96xf32> to vector<4x32xf32>
    %861 = arith.addf %860, %600 : vector<4x32xf32>
    %862 = arith.mulf %850, %861 : vector<4x32xf32>
    %863 = arith.addf %859, %862 : vector<4x32xf32>
    %864 = math.tanh %863 : vector<4x32xf32>
    %cst_160 = arith.constant 1.000000e+00 : f32
    %865 = vector.broadcast %cst_160 : f32 to vector<4x32xf32>
    %866 = arith.subf %865, %858 : vector<4x32xf32>
    %867 = arith.mulf %866, %864 : vector<4x32xf32>
    %868 = arith.mulf %858, %835 : vector<4x32xf32>
    %869 = arith.addf %867, %868 : vector<4x32xf32>
    %c7_i32_161 = arith.constant 7 : i32
    %870 = vector.broadcast %c7_i32_161 : i32 to vector<4x1xi32>
    %871 = arith.cmpi eq, %0, %870 : vector<4x1xi32>
    %872 = vector.shape_cast %871 : vector<4x1xi1> to vector<4x1xi1>
    %873 = vector.broadcast %872 : vector<4x1xi1> to vector<4x32xi1>
    %874 = arith.select %873, %869, %840 : vector<4x32xi1>, vector<4x32xf32>
    %c0_162 = arith.constant 0 : index
    %c0_163 = arith.constant 0 : index
    %875 = vector.load %arg1[%c0_162, %c0_163] : memref<12x16xf32, #tpu.memory_space<vmem>>, vector<12x16xf32>
    %cst_164 = arith.constant dense<0.000000e+00> : vector<4x12xf32>
    %876 = tpu.matmul %292, %875, %cst_164 {dimension_numbers = #tpu.dot_dimension_numbers<[1], [1], [0], [0], [0, 0, 1, 0], [], []>} : vector<4x16xf32>, vector<12x16xf32>, vector<4x12xf32> -> vector<4x12xf32>
    %c0_165 = arith.constant 0 : index
    %c0_166 = arith.constant 0 : index
    %877 = vector.load %arg19[%c0_165, %c0_166] : memref<1x12xf32, #tpu.memory_space<vmem>>, vector<1x12xf32>
    %878 = vector.broadcast %877 : vector<1x12xf32> to vector<4x12xf32>
    %879 = arith.addf %876, %878 : vector<4x12xf32>
    %c0_167 = arith.constant 0 : index
    %c0_168 = arith.constant 0 : index
    %880 = vector.load %arg24[%c0_167, %c0_168] : memref<4x12xf32, #tpu.memory_space<vmem>>, vector<4x12xf32>
    tpu.vector_store %arg24[%c0_167, %c0_168], %879 {strides = array<i32>} : memref<4x12xf32, #tpu.memory_space<vmem>>, vector<4x12xf32>,
    %c0_169 = arith.constant 0 : index
    %c0_170 = arith.constant 0 : index
    %881 = vector.load %arg20[%c0_169, %c0_170] : memref<32x32xf32, #tpu.memory_space<vmem>>, vector<32x32xf32>
    %cst_171 = arith.constant dense<0.000000e+00> : vector<4x32xf32>
    %882 = tpu.matmul %583, %881, %cst_171 {dimension_numbers = #tpu.dot_dimension_numbers<[1], [0], [0], [1], [0, 0, 1, 1], [], []>} : vector<4x32xf32>, vector<32x32xf32>, vector<4x32xf32> -> vector<4x32xf32>
    %c0_172 = arith.constant 0 : index
    %c0_173 = arith.constant 0 : index
    %883 = vector.load %arg21[%c0_172, %c0_173] : memref<32x32xf32, #tpu.memory_space<vmem>>, vector<32x32xf32>
    %cst_174 = arith.constant dense<0.000000e+00> : vector<4x32xf32>
    %884 = tpu.matmul %874, %883, %cst_174 {dimension_numbers = #tpu.dot_dimension_numbers<[1], [0], [0], [1], [0, 0, 1, 1], [], []>} : vector<4x32xf32>, vector<32x32xf32>, vector<4x32xf32> -> vector<4x32xf32>
    %885 = arith.addf %882, %884 : vector<4x32xf32>
    %c0_175 = arith.constant 0 : index
    %c0_176 = arith.constant 0 : index
    %886 = vector.load %arg22[%c0_175, %c0_176] : memref<1x32xf32, #tpu.memory_space<vmem>>, vector<1x32xf32>
    %887 = vector.broadcast %886 : vector<1x32xf32> to vector<4x32xf32>
    %888 = arith.addf %885, %887 : vector<4x32xf32>
    %c0_177 = arith.constant 0 : index
    %c0_178 = arith.constant 0 : index
    %889 = vector.load %arg23[%c0_177, %c0_178] : memref<4x32xf32, #tpu.memory_space<vmem>>, vector<4x32xf32>
    tpu.vector_store %arg23[%c0_177, %c0_178], %888 {strides = array<i32>} : memref<4x32xf32, #tpu.memory_space<vmem>>, vector<4x32xf32>,
    return
  }
}

</mosaic_0001>

<llo_original>
// kernel: _lambda_.1
$region0: #{_lambda_.1}
  #allocation0 [shape = 'u32[]', space=smem, size = 0x4, offset = 0x4, fixed_abs, tag = 'smem constant byte address 0x4 - core index']
  #allocation1 [shape = 'u32[72,128]{1,0:T(1,128)}', space=vmem, size = 0x9000, scoped, tag = 'internal scratch']
  %s0 = inlined_call_operand.vmem [shape: f32[50,32], index: 0, kind: input, shape index: {}]
  %s1 = inlined_call_operand.vmem [shape: f32[12,16], index: 1, kind: input, shape index: {}]
  %s2 = inlined_call_operand.vmem [shape: s32[32,1], index: 2, kind: input, shape index: {}]
  %s3 = inlined_call_operand.vmem [shape: s32[32,1], index: 3, kind: input, shape index: {}]
  %s4 = inlined_call_operand.vmem [shape: s32[32,1], index: 4, kind: input, shape index: {}]
  %s5 = inlined_call_operand.vmem [shape: s32[4,1], index: 5, kind: input, shape index: {}]
  %s6 = inlined_call_operand.vmem [shape: s32[4,1], index: 6, kind: input, shape index: {}]
  %s7 = inlined_call_operand.vmem [shape: f32[16,48], index: 7, kind: input, shape index: {}]
  %s8 = inlined_call_operand.vmem [shape: f32[16,48], index: 8, kind: input, shape index: {}]
  %s9 = inlined_call_operand.vmem [shape: f32[1,48], index: 9, kind: input, shape index: {}]
  %s10 = inlined_call_operand.vmem [shape: f32[1,16], index: 10, kind: input, shape index: {}]
  %s11 = inlined_call_operand.vmem [shape: f32[32,96], index: 11, kind: input, shape index: {}]
  %s12 = inlined_call_operand.vmem [shape: f32[32,96], index: 12, kind: input, shape index: {}]
  %s13 = inlined_call_operand.vmem [shape: f32[1,96], index: 13, kind: input, shape index: {}]
  %s14 = inlined_call_operand.vmem [shape: f32[1,32], index: 14, kind: input, shape index: {}]
  %s15 = inlined_call_operand.vmem [shape: f32[32,96], index: 15, kind: input, shape index: {}]
  %s16 = inlined_call_operand.vmem [shape: f32[32,96], index: 16, kind: input, shape index: {}]
  %s17 = inlined_call_operand.vmem [shape: f32[1,96], index: 17, kind: input, shape index: {}]
  %s18 = inlined_call_operand.vmem [shape: f32[1,32], index: 18, kind: input, shape index: {}]
  %s19 = inlined_call_operand.vmem [shape: f32[1,12], index: 19, kind: input, shape index: {}]
  %s20 = inlined_call_operand.vmem [shape: f32[32,32], index: 20, kind: input, shape index: {}]
  %s21 = inlined_call_operand.vmem [shape: f32[32,32], index: 21, kind: input, shape index: {}]
  %s22 = inlined_call_operand.vmem [shape: f32[1,32], index: 22, kind: input, shape index: {}]
  %s23 = inlined_call_operand.hbm [shape: f32[4,32], index: 23, kind: output, shape index: {0}]
  %s24 = inlined_call_operand.hbm [shape: f32[4,12], index: 24, kind: output, shape index: {1}]
  %25 = xla_tuple %s23, %s24
  %s26 = sld [smem:[#allocation0]]
  $region110: #{_lambda_.1} parent=0
    _
  %s28 = ssub.s32 1, %s26
  %s29 = scalar_select 0, %s28, %s26
  $region1: #{_lambda_.1} parent=0
    #allocation2 [shape = 'u8[2048]{0}', space=vmem, size = 0x800, scoped, tag = 'output window, operand 0, single buffered']
    #allocation3 [shape = 's32[1]{0}', space=sflag, size = 0x4, scoped, tag = 'scoped memory for _lambda_.1']
    #allocation4 [shape = 'u8[2048]{0}', space=vmem, size = 0x800, scoped, tag = 'output window, operand 1, single buffered']
    #allocation5 [shape = 's32[1]{0}', space=sflag, size = 0x4, scoped, tag = 'scoped memory for _lambda_.1']
    %30 = vsyncpa [#allocation3], 0
    %31 = vsyncpa [#allocation5], 0
    // Predicated region
    $region2: #{_lambda_.1} parent=1 // pred_check
      _
    $region3: #{_lambda_.1} parent=1 // pred_check_branch
      %33 = sbr.rel (0) target = $region5
    $region4: #{_lambda_.1} parent=1 // pred_region
      _
    $region5: #{_lambda_.1} parent=1 // pred_fallthru
      _
    // Predicated region
    $region6: #{_lambda_.1} parent=1 // pred_check
      _
    $region7: #{_lambda_.1} parent=1 // pred_check_branch
      %35 = sbr.rel (0) target = $region9
    $region8: #{_lambda_.1} parent=1 // pred_region
      _
    $region9: #{_lambda_.1} parent=1 // pred_fallthru
      _
    // Predicated region
    $region10: #{_lambda_.1} parent=1 // pred_check
      _
    $region11: #{_lambda_.1} parent=1 // pred_check_branch
      %37 = sbr.rel (0) target = $region13
    $region12: #{_lambda_.1} parent=1 // pred_region
      _
    $region13: #{_lambda_.1} parent=1 // pred_fallthru
      _
    // Predicated region
    $region14: #{_lambda_.1} parent=1 // pred_check
      _
    $region15: #{_lambda_.1} parent=1 // pred_check_branch
      %39 = sbr.rel (0) target = $region17
    $region16: #{_lambda_.1} parent=1 // pred_region
      _
    $region17: #{_lambda_.1} parent=1 // pred_fallthru
      _
    // Predicated region
    $region18: #{_lambda_.1} parent=1 // pred_check
      _
    $region19: #{_lambda_.1} parent=1 // pred_check_branch
      %41 = sbr.rel (0) target = $region21
    $region20: #{_lambda_.1} parent=1 // pred_region
      _
    $region21: #{_lambda_.1} parent=1 // pred_fallthru
      _
    // Predicated region
    $region22: #{_lambda_.1} parent=1 // pred_check
      _
    $region23: #{_lambda_.1} parent=1 // pred_check_branch
      %43 = sbr.rel (0) target = $region25
    $region24: #{_lambda_.1} parent=1 // pred_region
      _
    $region25: #{_lambda_.1} parent=1 // pred_fallthru
      _
    // Predicated region
    $region26: #{_lambda_.1} parent=1 // pred_check
      _
    $region27: #{_lambda_.1} parent=1 // pred_check_branch
      %45 = sbr.rel (0) target = $region29
    $region28: #{_lambda_.1} parent=1 // pred_region
      _
    $region29: #{_lambda_.1} parent=1 // pred_fallthru
      _
    // Predicated region
    $region30: #{_lambda_.1} parent=1 // pred_check
      _
    $region31: #{_lambda_.1} parent=1 // pred_check_branch
      %47 = sbr.rel (0) target = $region33
    $region32: #{_lambda_.1} parent=1 // pred_region
      _
    $region33: #{_lambda_.1} parent=1 // pred_fallthru
      _
    // Predicated region
    $region34: #{_lambda_.1} parent=1 // pred_check
      _
    $region35: #{_lambda_.1} parent=1 // pred_check_branch
      %49 = sbr.rel (0) target = $region37
    $region36: #{_lambda_.1} parent=1 // pred_region
      _
    $region37: #{_lambda_.1} parent=1 // pred_fallthru
      _
    // Predicated region
    $region38: #{_lambda_.1} parent=1 // pred_check
      _
    $region39: #{_lambda_.1} parent=1 // pred_check_branch
      %51 = sbr.rel (0) target = $region41
    $region40: #{_lambda_.1} parent=1 // pred_region
      _
    $region41: #{_lambda_.1} parent=1 // pred_fallthru
      _
    // Predicated region
    $region42: #{_lambda_.1} parent=1 // pred_check
      _
    $region43: #{_lambda_.1} parent=1 // pred_check_branch
      %53 = sbr.rel (0) target = $region45
    $region44: #{_lambda_.1} parent=1 // pred_region
      _
    $region45: #{_lambda_.1} parent=1 // pred_fallthru
      _
    // Predicated region
    $region46: #{_lambda_.1} parent=1 // pred_check
      _
    $region47: #{_lambda_.1} parent=1 // pred_check_branch
      %55 = sbr.rel (0) target = $region49
    $region48: #{_lambda_.1} parent=1 // pred_region
      _
    $region49: #{_lambda_.1} parent=1 // pred_fallthru
      _
    // Predicated region
    $region50: #{_lambda_.1} parent=1 // pred_check
      _
    $region51: #{_lambda_.1} parent=1 // pred_check_branch
      %57 = sbr.rel (0) target = $region53
    $region52: #{_lambda_.1} parent=1 // pred_region
      _
    $region53: #{_lambda_.1} parent=1 // pred_fallthru
      _
    // Predicated region
    $region54: #{_lambda_.1} parent=1 // pred_check
      _
    $region55: #{_lambda_.1} parent=1 // pred_check_branch
      %59 = sbr.rel (0) target = $region57
    $region56: #{_lambda_.1} parent=1 // pred_region
      _
    $region57: #{_lambda_.1} parent=1 // pred_fallthru
      _
    // Predicated region
    $region58: #{_lambda_.1} parent=1 // pred_check
      _
    $region59: #{_lambda_.1} parent=1 // pred_check_branch
      %61 = sbr.rel (0) target = $region61
    $region60: #{_lambda_.1} parent=1 // pred_region
      _
    $region61: #{_lambda_.1} parent=1 // pred_fallthru
      _
    // Predicated region
    $region62: #{_lambda_.1} parent=1 // pred_check
      _
    $region63: #{_lambda_.1} parent=1 // pred_check_branch
      %63 = sbr.rel (0) target = $region65
    $region64: #{_lambda_.1} parent=1 // pred_region
      _
    $region65: #{_lambda_.1} parent=1 // pred_fallthru
      _
    // Predicated region
    $region66: #{_lambda_.1} parent=1 // pred_check
      _
    $region67: #{_lambda_.1} parent=1 // pred_check_branch
      %65 = sbr.rel (0) target = $region69
    $region68: #{_lambda_.1} parent=1 // pred_region
      _
    $region69: #{_lambda_.1} parent=1 // pred_fallthru
      _
    // Predicated region
    $region70: #{_lambda_.1} parent=1 // pred_check
      _
    $region71: #{_lambda_.1} parent=1 // pred_check_branch
      %67 = sbr.rel (0) target = $region73
    $region72: #{_lambda_.1} parent=1 // pred_region
      _
    $region73: #{_lambda_.1} parent=1 // pred_fallthru
      _
    // Predicated region
    $region74: #{_lambda_.1} parent=1 // pred_check
      _
    $region75: #{_lambda_.1} parent=1 // pred_check_branch
      %69 = sbr.rel (0) target = $region77
    $region76: #{_lambda_.1} parent=1 // pred_region
      _
    $region77: #{_lambda_.1} parent=1 // pred_fallthru
      _
    // Predicated region
    $region78: #{_lambda_.1} parent=1 // pred_check
      _
    $region79: #{_lambda_.1} parent=1 // pred_check_branch
      %71 = sbr.rel (0) target = $region81
    $region80: #{_lambda_.1} parent=1 // pred_region
      _
    $region81: #{_lambda_.1} parent=1 // pred_fallthru
      _
    // Predicated region
    $region82: #{_lambda_.1} parent=1 // pred_check
      _
    $region83: #{_lambda_.1} parent=1 // pred_check_branch
      %73 = sbr.rel (0) target = $region85
    $region84: #{_lambda_.1} parent=1 // pred_region
      _
    $region85: #{_lambda_.1} parent=1 // pred_fallthru
      _
    // Predicated region
    $region86: #{_lambda_.1} parent=1 // pred_check
      _
    $region87: #{_lambda_.1} parent=1 // pred_check_branch
      %75 = sbr.rel (0) target = $region89
    $region88: #{_lambda_.1} parent=1 // pred_region
      _
    $region89: #{_lambda_.1} parent=1 // pred_fallthru
      _
    // Predicated region
    $region90: #{_lambda_.1} parent=1 // pred_check
      _
    $region91: #{_lambda_.1} parent=1 // pred_check_branch
      %77 = sbr.rel (0) target = $region93
    $region92: #{_lambda_.1} parent=1 // pred_region
      _
    $region93: #{_lambda_.1} parent=1 // pred_fallthru
      _
    %v78 = vld [vmem:[%s5] sm:$0xf]
    %v79 = vld [vmem:[%s6] sm:$0xf]
    %v80 = vlaneseq
    %v81 = vand.u32 %v80, 127
    %v82 = vld [vmem:[%s3] sm:$0xff]
    %v83 = vld [vmem:[%s3 + $0x8] sm:$0xff]
    %v84 = vld [vmem:[%s3 + $0x10] sm:$0xff]
    %v85 = vld [vmem:[%s3 + $0x18] sm:$0xff]
    %86 = vset.pattern.permute.xlu0 0
    %87 = vperm.xlu0 %86, %v82
    %v88 = vpop.permute.xlu0 %87
    %89 = vset.pattern.permute.xlu0 0
    %90 = vperm.xlu0 %89, %v83
    %v91 = vpop.permute.xlu0 %90
    %92 = vset.pattern.permute.xlu0 0
    %93 = vperm.xlu0 %92, %v84
    %v94 = vpop.permute.xlu0 %93
    %95 = vset.pattern.permute.xlu0 0
    %96 = vperm.xlu0 %95, %v85
    %v97 = vpop.permute.xlu0 %96
    %vm98 = vcmp.eq.s32.totalorder %v88, %v81
    %vm99 = vcmp.eq.s32.totalorder %v91, %v81
    %vm100 = vcmp.eq.s32.totalorder %v94, %v81
    %vm101 = vcmp.eq.s32.totalorder %v97, %v81
    %v102 = vsel %vm98, 1, 0
    %v103 = vsel %vm99, 1, 0
    %v104 = vsel %vm100, 1, 0
    %v105 = vsel %vm101, 1, 0
    %v106 = vcvt.s32.f32 %v102
    %v107 = vcvt.s32.f32 %v103
    %v108 = vcvt.s32.f32 %v104
    %v109 = vcvt.s32.f32 %v105
    %v110 = vld [vmem:[%s1] sm:$0xff]
    %v111 = vld [vmem:[%s1 + $0x8] sm:$0xf]
    %vm112 = vcmask 97280
    %v114 = vsel %vm112, %v106, 0
    %v117 = vsel %vm112, %v107, 0
    %v120 = vsel %vm112, %v108, 0
    %v123 = vsel %vm112, %v109, 0
    %vm125 = vcmask 1043456
    %v127 = vsel %vm125, %v111, 0
    %129 = vmatpush.msra.mxu0 0.0
    %130 = vmatpush.msra.mxu0 0.0
    %131 = vmatpush.msra.mxu0 0.0
    %132 = vmatpush.msra.mxu0 0.0
    %133 = vmatpush.msra.mxu0 0.0
    %134 = vmatpush.msra.mxu0 0.0
    %135 = vmatpush.msra.mxu0 0.0
    %136 = vmatpush.msra.mxu0 0.0
    %137 = vmatpush.msra.mxu0 0.0
    %138 = vmatpush.msra.mxu0 0.0
    %139 = vmatpush.msra.mxu0 0.0
    %140 = vmatpush.msra.mxu0 0.0
    %141 = vmatpush.msra.mxu0 0.0
    %142 = vmatpush.msra.mxu0 0.0
    %143 = vmatpush.msra.mxu0 %v127
    %144 = vmatpush.msra.mxu0 %v110
    %145 = vmatmul.f32.gmra.mxu0 %v114
    %v146 = vpop.f32.mrf.mxu0
    %v147 = vadd.f32 0.0, %v146
    %148 = vmatmul.f32.gmra.mxu0 %v117
    %v149 = vpop.f32.mrf.mxu0
    %v150 = vadd.f32 0.0, %v149
    %151 = vmatmul.f32.gmra.mxu0 %v120
    %v152 = vpop.f32.mrf.mxu0
    %v153 = vadd.f32 0.0, %v152
    %154 = vmatmul.f32.gmra.mxu0 %v123
    %v155 = vpop.f32.mrf.mxu0
    %v156 = vadd.f32 0.0, %v155
    %157 = vdwg.mxu0
    %v158 = vld [vmem:[%s7] sm:$0xff]
    %v159 = vld [vmem:[%s7 + $0x8] sm:$0xff]
    %v160 = vld [vmem:[%s9] sm:$0x1]
    %v162 = vperm.slane %v160, 0
    %vm164 = vcmask 130048
    %v166 = vsel %vm164, %v147, 0
    %v169 = vsel %vm164, %v150, 0
    %v172 = vsel %vm164, %v153, 0
    %v175 = vsel %vm164, %v156, 0
    %177 = vmatpush.msra.mxu0 0.0
    %178 = vmatpush.msra.mxu0 0.0
    %179 = vmatpush.msra.mxu0 0.0
    %180 = vmatpush.msra.mxu0 0.0
    %181 = vmatpush.msra.mxu0 0.0
    %182 = vmatpush.msra.mxu0 0.0
    %183 = vmatpush.msra.mxu0 0.0
    %184 = vmatpush.msra.mxu0 0.0
    %185 = vmatpush.msra.mxu0 0.0
    %186 = vmatpush.msra.mxu0 0.0
    %187 = vmatpush.msra.mxu0 0.0
    %188 = vmatpush.msra.mxu0 0.0
    %189 = vmatpush.msra.mxu0 0.0
    %190 = vmatpush.msra.mxu0 0.0
    %191 = vmatpush.msra.mxu0 %v159
    %192 = vmatpush.msra.mxu0 %v158
    %193 = vmatmul.f32.gmra.mxu0 %v166
    %v194 = vpop.f32.mrf.mxu0
    %v195 = vadd.f32 %v162, %v194
    %196 = vmatmul.f32.gmra.mxu0 %v169
    %v197 = vpop.f32.mrf.mxu0
    %v198 = vadd.f32 %v162, %v197
    %199 = vmatmul.f32.gmra.mxu0 %v172
    %v200 = vpop.f32.mrf.mxu0
    %v201 = vadd.f32 %v162, %v200
    %202 = vmatmul.f32.gmra.mxu0 %v175
    %v203 = vpop.f32.mrf.mxu0
    %v204 = vadd.f32 %v162, %v203
    %205 = vdwg.mxu0
    %v206 = vld [vmem:[%s8] sm:$0xff]
    %v207 = vld [vmem:[%s8 + $0x8] sm:$0xff]
    %v208 = vld [vmem:[%s10] sm:$0x1]
    %v210 = vperm.slane %v208, 0
    %v212 = vsel %vm164, 0.0, 0
    %214 = vmatpush.msra.mxu0 0.0
    %215 = vmatpush.msra.mxu0 0.0
    %216 = vmatpush.msra.mxu0 0.0
    %217 = vmatpush.msra.mxu0 0.0
    %218 = vmatpush.msra.mxu0 0.0
    %219 = vmatpush.msra.mxu0 0.0
    %220 = vmatpush.msra.mxu0 0.0
    %221 = vmatpush.msra.mxu0 0.0
    %222 = vmatpush.msra.mxu0 0.0
    %223 = vmatpush.msra.mxu0 0.0
    %224 = vmatpush.msra.mxu0 0.0
    %225 = vmatpush.msra.mxu0 0.0
    %226 = vmatpush.msra.mxu0 0.0
    %227 = vmatpush.msra.mxu0 0.0
    %228 = vmatpush.msra.mxu0 %v207
    %229 = vmatpush.msra.mxu0 %v206
    %230 = vmatmul.f32.gmra.mxu0 %v212
    %v231 = vpop.f32.mrf.mxu0
    %v232 = vadd.f32 0.0, %v231
    %233 = vdwg.mxu0
    %v234 = vadd.f32 %v195, %v232
    %v235 = vxor.u32 %v234, 2147483648
    %v236 = vmul.f32 %v235, 1.442695
    %v237 = vpow.pop %v236
    %v238 = vadd.f32 %v237, 1.0
    %v239 = vrcp.pop %v238
    %v240 = vmul.f32 %v238, %v239
    %v241 = vsub.f32 1.0, %v240
    %v242 = vmul.f32 %v239, %v241
    %v243 = vadd.f32 %v239, %v242
    %vm244 = vweird.f32 %v238
    %vm245 = vweird.f32 %v239
    %vm246 = vmor %vm244, %vm245
    %v247 = vsel %vm246, %v239, %v243
    %v248 = vand.u32 2147483647, %v238
    %vm249 = vcmp.eq.f32.partialorder %v248, 8.507059e+37
    %v250 = vand.u32 %v238, 2147483648
    %v251 = vor.u32 1.1754944e-38, %v250
    %v252 = vsel %vm249, %v251, %v247
    %v253 = vmul.f32 1.0, %v252
    %254 = vrot.lane.b32.xlu0 %v210, 32
    %v255 = vpop.permute.xlu0 %254
    %v257 = vadd.f32 %v232, %v255
    %259 = vrot.lane.b32.xlu0 %v257, 96
    %v260 = vpop.permute.xlu0 %259
    %v262 = vmul.f32 %v253, %v260
    %264 = vrot.lane.b32.xlu0 %v262, 32
    %v265 = vpop.permute.xlu0 %264
    %v267 = vadd.f32 %v195, %v265
    %v268 = vtanh.pop %v267
    %v269 = vsub.f32 1.0, %v253
    %271 = vrot.lane.b32.xlu0 %v268, 112
    %v272 = vpop.permute.xlu0 %271
    %v274 = vmul.f32 %v269, %v272
    %v275 = vmul.f32 %v253, 0.0
    %v276 = vadd.f32 %v274, %v275
    %vm277 = vcmp.eq.s32.totalorder %v78, 0
    %v278 = vsel %vm277, 1, 0
    %279 = vset.pattern.permute.xlu0 0
    %280 = vperm.xlu0 %279, %v278
    %v281 = vpop.permute.xlu0 %280
    %vm282 = vcmp.eq.s32.totalorder %v281, 1
    %v283 = vsel %vm282, %v276, 0.0
    %285 = vrot.lane.b32.xlu0 %v276, 112
    %v286 = vpop.permute.xlu0 %285
    %v287 = vsel %vm164, %v286, 0
    %289 = vmatpush.msra.mxu0 0.0
    %290 = vmatpush.msra.mxu0 0.0
    %291 = vmatpush.msra.mxu0 0.0
    %292 = vmatpush.msra.mxu0 0.0
    %293 = vmatpush.msra.mxu0 0.0
    %294 = vmatpush.msra.mxu0 0.0
    %295 = vmatpush.msra.mxu0 0.0
    %296 = vmatpush.msra.mxu0 0.0
    %297 = vmatpush.msra.mxu0 0.0
    %298 = vmatpush.msra.mxu0 0.0
    %299 = vmatpush.msra.mxu0 0.0
    %300 = vmatpush.msra.mxu0 0.0
    %301 = vmatpush.msra.mxu0 0.0
    %302 = vmatpush.msra.mxu0 0.0
    %303 = vmatpush.msra.mxu0 %v207
    %304 = vmatpush.msra.mxu0 %v206
    %305 = vmatmul.f32.gmra.mxu0 %v287
    %v306 = vpop.f32.mrf.mxu0
    %v307 = vadd.f32 0.0, %v306
    %308 = vdwg.mxu0
    %v310 = vrot.slane %v307, 4
    %v312 = vadd.f32 %v195, %v310
    %v313 = vxor.u32 %v312, 2147483648
    %v314 = vmul.f32 %v313, 1.442695
    %v315 = vpow.pop %v314
    %v316 = vadd.f32 %v315, 1.0
    %v317 = vrcp.pop %v316
    %v318 = vmul.f32 %v316, %v317
    %v319 = vsub.f32 1.0, %v318
    %v320 = vmul.f32 %v317, %v319
    %v321 = vadd.f32 %v317, %v320
    %vm322 = vweird.f32 %v316
    %vm323 = vweird.f32 %v317
    %vm324 = vmor %vm322, %vm323
    %v325 = vsel %vm324, %v317, %v321
    %v326 = vand.u32 2147483647, %v316
    %vm327 = vcmp.eq.f32.partialorder %v326, 8.507059e+37
    %v328 = vand.u32 %v316, 2147483648
    %v329 = vor.u32 1.1754944e-38, %v328
    %v330 = vsel %vm327, %v329, %v325
    %v331 = vmul.f32 1.0, %v330
    %v332 = vadd.f32 %v307, %v255
    %v334 = vrot.slane %v332, 4
    %335 = vrot.lane.b32.xlu0 %v334, 96
    %v336 = vpop.permute.xlu0 %335
    %v338 = vmul.f32 %v331, %v336
    %340 = vrot.lane.b32.xlu0 %v338, 32
    %v341 = vpop.permute.xlu0 %340
    %v343 = vadd.f32 %v195, %v341
    %v344 = vtanh.pop %v343
    %v345 = vsub.f32 1.0, %v331
    %347 = vrot.lane.b32.xlu0 %v344, 112
    %v348 = vpop.permute.xlu0 %347
    %v350 = vmul.f32 %v345, %v348
    %v351 = vrot.slane %v276, 4
    %v353 = vmul.f32 %v331, %v351
    %v354 = vadd.f32 %v350, %v353
    %vm355 = vcmp.eq.s32.totalorder %v78, 1
    %v356 = vsel %vm355, 1, 0
    %357 = vset.pattern.permute.xlu0 0
    %358 = vperm.xlu0 %357, %v356
    %v359 = vpop.permute.xlu0 %358
    %vm360 = vcmp.eq.s32.totalorder %v359, 1
    %v362 = vrot.slane %v354, 4
    %363 = vrot.lane.b32.xlu0 %v362, 112
    %v364 = vpop.permute.xlu0 %363
    %367 = vrot.lane.b32.xlu0 %v283, 112
    %v368 = vpop.permute.xlu0 %367
    %v370 = vsel %vm360, %v364, %v368
    %v371 = vsel %vm164, %v364, 0
    %373 = vmatpush.msra.mxu0 0.0
    %374 = vmatpush.msra.mxu0 0.0
    %375 = vmatpush.msra.mxu0 0.0
    %376 = vmatpush.msra.mxu0 0.0
    %377 = vmatpush.msra.mxu0 0.0
    %378 = vmatpush.msra.mxu0 0.0
    %379 = vmatpush.msra.mxu0 0.0
    %380 = vmatpush.msra.mxu0 0.0
    %381 = vmatpush.msra.mxu0 0.0
    %382 = vmatpush.msra.mxu0 0.0
    %383 = vmatpush.msra.mxu0 0.0
    %384 = vmatpush.msra.mxu0 0.0
    %385 = vmatpush.msra.mxu0 0.0
    %386 = vmatpush.msra.mxu0 0.0
    %387 = vmatpush.msra.mxu0 %v207
    %388 = vmatpush.msra.mxu0 %v206
    %389 = vmatmul.f32.gmra.mxu0 %v371
    %v390 = vpop.f32.mrf.mxu0
    %v391 = vadd.f32 0.0, %v390
    %392 = vdwg.mxu0
    %v393 = vadd.f32 %v198, %v391
    %v394 = vxor.u32 %v393, 2147483648
    %v395 = vmul.f32 %v394, 1.442695
    %v396 = vpow.pop %v395
    %v397 = vadd.f32 %v396, 1.0
    %v398 = vrcp.pop %v397
    %v399 = vmul.f32 %v397, %v398
    %v400 = vsub.f32 1.0, %v399
    %v401 = vmul.f32 %v398, %v400
    %v402 = vadd.f32 %v398, %v401
    %vm403 = vweird.f32 %v397
    %vm404 = vweird.f32 %v398
    %vm405 = vmor %vm403, %vm404
    %v406 = vsel %vm405, %v398, %v402
    %v407 = vand.u32 2147483647, %v397
    %vm408 = vcmp.eq.f32.partialorder %v407, 8.507059e+37
    %v409 = vand.u32 %v397, 2147483648
    %v410 = vor.u32 1.1754944e-38, %v409
    %v411 = vsel %vm408, %v410, %v406
    %v412 = vmul.f32 1.0, %v411
    %v413 = vadd.f32 %v391, %v255
    %415 = vrot.lane.b32.xlu0 %v413, 96
    %v416 = vpop.permute.xlu0 %415
    %v418 = vmul.f32 %v412, %v416
    %420 = vrot.lane.b32.xlu0 %v418, 32
    %v421 = vpop.permute.xlu0 %420
    %v423 = vadd.f32 %v198, %v421
    %v424 = vtanh.pop %v423
    %v425 = vsub.f32 1.0, %v412
    %427 = vrot.lane.b32.xlu0 %v424, 112
    %v428 = vpop.permute.xlu0 %427
    %v430 = vmul.f32 %v425, %v428
    %v432 = vmul.f32 %v412, %v362
    %v433 = vadd.f32 %v430, %v432
    %vm434 = vcmp.eq.s32.totalorder %v78, 2
    %v435 = vsel %vm434, 1, 0
    %436 = vset.pattern.permute.xlu0 0
    %437 = vperm.xlu0 %436, %v435
    %v438 = vpop.permute.xlu0 %437
    %vm439 = vcmp.eq.s32.totalorder %v438, 1
    %441 = vrot.lane.b32.xlu0 %v370, 16
    %v442 = vpop.permute.xlu0 %441
    %v444 = vsel %vm439, %v433, %v442
    %446 = vrot.lane.b32.xlu0 %v433, 112
    %v447 = vpop.permute.xlu0 %446
    %v448 = vsel %vm164, %v447, 0
    %450 = vmatpush.msra.mxu0 0.0
    %451 = vmatpush.msra.mxu0 0.0
    %452 = vmatpush.msra.mxu0 0.0
    %453 = vmatpush.msra.mxu0 0.0
    %454 = vmatpush.msra.mxu0 0.0
    %455 = vmatpush.msra.mxu0 0.0
    %456 = vmatpush.msra.mxu0 0.0
    %457 = vmatpush.msra.mxu0 0.0
    %458 = vmatpush.msra.mxu0 0.0
    %459 = vmatpush.msra.mxu0 0.0
    %460 = vmatpush.msra.mxu0 0.0
    %461 = vmatpush.msra.mxu0 0.0
    %462 = vmatpush.msra.mxu0 0.0
    %463 = vmatpush.msra.mxu0 0.0
    %464 = vmatpush.msra.mxu0 %v207
    %465 = vmatpush.msra.mxu0 %v206
    %466 = vmatmul.f32.gmra.mxu0 %v448
    %v467 = vpop.f32.mrf.mxu0
    %v468 = vadd.f32 0.0, %v467
    %469 = vdwg.mxu0
    %v471 = vrot.slane %v468, 4
    %v473 = vadd.f32 %v198, %v471
    %v474 = vxor.u32 %v473, 2147483648
    %v475 = vmul.f32 %v474, 1.442695
    %v476 = vpow.pop %v475
    %v477 = vadd.f32 %v476, 1.0
    %v478 = vrcp.pop %v477
    %v479 = vmul.f32 %v477, %v478
    %v480 = vsub.f32 1.0, %v479
    %v481 = vmul.f32 %v478, %v480
    %v482 = vadd.f32 %v478, %v481
    %vm483 = vweird.f32 %v477
    %vm484 = vweird.f32 %v478
    %vm485 = vmor %vm483, %vm484
    %v486 = vsel %vm485, %v478, %v482
    %v487 = vand.u32 2147483647, %v477
    %vm488 = vcmp.eq.f32.partialorder %v487, 8.507059e+37
    %v489 = vand.u32 %v477, 2147483648
    %v490 = vor.u32 1.1754944e-38, %v489
    %v491 = vsel %vm488, %v490, %v486
    %v492 = vmul.f32 1.0, %v491
    %v493 = vadd.f32 %v468, %v255
    %v495 = vrot.slane %v493, 4
    %496 = vrot.lane.b32.xlu0 %v495, 96
    %v497 = vpop.permute.xlu0 %496
    %v499 = vmul.f32 %v492, %v497
    %501 = vrot.lane.b32.xlu0 %v499, 32
    %v502 = vpop.permute.xlu0 %501
    %v504 = vadd.f32 %v198, %v502
    %v505 = vtanh.pop %v504
    %v506 = vsub.f32 1.0, %v492
    %508 = vrot.lane.b32.xlu0 %v505, 112
    %v509 = vpop.permute.xlu0 %508
    %v511 = vmul.f32 %v506, %v509
    %v512 = vrot.slane %v433, 4
    %v514 = vmul.f32 %v492, %v512
    %v515 = vadd.f32 %v511, %v514
    %vm516 = vcmp.eq.s32.totalorder %v78, 3
    %v517 = vsel %vm516, 1, 0
    %518 = vset.pattern.permute.xlu0 0
    %519 = vperm.xlu0 %518, %v517
    %v520 = vpop.permute.xlu0 %519
    %vm521 = vcmp.eq.s32.totalorder %v520, 1
    %v523 = vrot.slane %v515, 4
    %524 = vrot.lane.b32.xlu0 %v523, 112
    %v525 = vpop.permute.xlu0 %524
    %528 = vrot.lane.b32.xlu0 %v444, 112
    %v529 = vpop.permute.xlu0 %528
    %v531 = vsel %vm521, %v525, %v529
    %v532 = vsel %vm164, %v525, 0
    %534 = vmatpush.msra.mxu0 0.0
    %535 = vmatpush.msra.mxu0 0.0
    %536 = vmatpush.msra.mxu0 0.0
    %537 = vmatpush.msra.mxu0 0.0
    %538 = vmatpush.msra.mxu0 0.0
    %539 = vmatpush.msra.mxu0 0.0
    %540 = vmatpush.msra.mxu0 0.0
    %541 = vmatpush.msra.mxu0 0.0
    %542 = vmatpush.msra.mxu0 0.0
    %543 = vmatpush.msra.mxu0 0.0
    %544 = vmatpush.msra.mxu0 0.0
    %545 = vmatpush.msra.mxu0 0.0
    %546 = vmatpush.msra.mxu0 0.0
    %547 = vmatpush.msra.mxu0 0.0
    %548 = vmatpush.msra.mxu0 %v207
    %549 = vmatpush.msra.mxu0 %v206
    %550 = vmatmul.f32.gmra.mxu0 %v532
    %v551 = vpop.f32.mrf.mxu0
    %v552 = vadd.f32 0.0, %v551
    %553 = vdwg.mxu0
    %v554 = vadd.f32 %v201, %v552
    %v555 = vxor.u32 %v554, 2147483648
    %v556 = vmul.f32 %v555, 1.442695
    %v557 = vpow.pop %v556
    %v558 = vadd.f32 %v557, 1.0
    %v559 = vrcp.pop %v558
    %v560 = vmul.f32 %v558, %v559
    %v561 = vsub.f32 1.0, %v560
    %v562 = vmul.f32 %v559, %v561
    %v563 = vadd.f32 %v559, %v562
    %vm564 = vweird.f32 %v558
    %vm565 = vweird.f32 %v559
    %vm566 = vmor %vm564, %vm565
    %v567 = vsel %vm566, %v559, %v563
    %v568 = vand.u32 2147483647, %v558
    %vm569 = vcmp.eq.f32.partialorder %v568, 8.507059e+37
    %v570 = vand.u32 %v558, 2147483648
    %v571 = vor.u32 1.1754944e-38, %v570
    %v572 = vsel %vm569, %v571, %v567
    %v573 = vmul.f32 1.0, %v572
    %v574 = vadd.f32 %v552, %v255
    %576 = vrot.lane.b32.xlu0 %v574, 96
    %v577 = vpop.permute.xlu0 %576
    %v579 = vmul.f32 %v573, %v577
    %581 = vrot.lane.b32.xlu0 %v579, 32
    %v582 = vpop.permute.xlu0 %581
    %v584 = vadd.f32 %v201, %v582
    %v585 = vtanh.pop %v584
    %v586 = vsub.f32 1.0, %v573
    %588 = vrot.lane.b32.xlu0 %v585, 112
    %v589 = vpop.permute.xlu0 %588
    %v591 = vmul.f32 %v586, %v589
    %v593 = vmul.f32 %v573, %v523
    %v594 = vadd.f32 %v591, %v593
    %vm595 = vcmp.eq.s32.totalorder %v78, 4
    %v596 = vsel %vm595, 1, 0
    %597 = vset.pattern.permute.xlu0 0
    %598 = vperm.xlu0 %597, %v596
    %v599 = vpop.permute.xlu0 %598
    %vm600 = vcmp.eq.s32.totalorder %v599, 1
    %602 = vrot.lane.b32.xlu0 %v531, 16
    %v603 = vpop.permute.xlu0 %602
    %v605 = vsel %vm600, %v594, %v603
    %607 = vrot.lane.b32.xlu0 %v594, 112
    %v608 = vpop.permute.xlu0 %607
    %v609 = vsel %vm164, %v608, 0
    %611 = vmatpush.msra.mxu0 0.0
    %612 = vmatpush.msra.mxu0 0.0
    %613 = vmatpush.msra.mxu0 0.0
    %614 = vmatpush.msra.mxu0 0.0
    %615 = vmatpush.msra.mxu0 0.0
    %616 = vmatpush.msra.mxu0 0.0
    %617 = vmatpush.msra.mxu0 0.0
    %618 = vmatpush.msra.mxu0 0.0
    %619 = vmatpush.msra.mxu0 0.0
    %620 = vmatpush.msra.mxu0 0.0
    %621 = vmatpush.msra.mxu0 0.0
    %622 = vmatpush.msra.mxu0 0.0
    %623 = vmatpush.msra.mxu0 0.0
    %624 = vmatpush.msra.mxu0 0.0
    %625 = vmatpush.msra.mxu0 %v207
    %626 = vmatpush.msra.mxu0 %v206
    %627 = vmatmul.f32.gmra.mxu0 %v609
    %v628 = vpop.f32.mrf.mxu0
    %v629 = vadd.f32 0.0, %v628
    %630 = vdwg.mxu0
    %v632 = vrot.slane %v629, 4
    %v634 = vadd.f32 %v201, %v632
    %v635 = vxor.u32 %v634, 2147483648
    %v636 = vmul.f32 %v635, 1.442695
    %v637 = vpow.pop %v636
    %v638 = vadd.f32 %v637, 1.0
    %v639 = vrcp.pop %v638
    %v640 = vmul.f32 %v638, %v639
    %v641 = vsub.f32 1.0, %v640
    %v642 = vmul.f32 %v639, %v641
    %v643 = vadd.f32 %v639, %v642
    %vm644 = vweird.f32 %v638
    %vm645 = vweird.f32 %v639
    %vm646 = vmor %vm644, %vm645
    %v647 = vsel %vm646, %v639, %v643
    %v648 = vand.u32 2147483647, %v638
    %vm649 = vcmp.eq.f32.partialorder %v648, 8.507059e+37
    %v650 = vand.u32 %v638, 2147483648
    %v651 = vor.u32 1.1754944e-38, %v650
    %v652 = vsel %vm649, %v651, %v647
    %v653 = vmul.f32 1.0, %v652
    %v654 = vadd.f32 %v629, %v255
    %v656 = vrot.slane %v654, 4
    %657 = vrot.lane.b32.xlu0 %v656, 96
    %v658 = vpop.permute.xlu0 %657
    %v660 = vmul.f32 %v653, %v658
    %662 = vrot.lane.b32.xlu0 %v660, 32
    %v663 = vpop.permute.xlu0 %662
    %v665 = vadd.f32 %v201, %v663
    %v666 = vtanh.pop %v665
    %v667 = vsub.f32 1.0, %v653
    %669 = vrot.lane.b32.xlu0 %v666, 112
    %v670 = vpop.permute.xlu0 %669
    %v672 = vmul.f32 %v667, %v670
    %v673 = vrot.slane %v594, 4
    %v675 = vmul.f32 %v653, %v673
    %v676 = vadd.f32 %v672, %v675
    %vm677 = vcmp.eq.s32.totalorder %v78, 5
    %v678 = vsel %vm677, 1, 0
    %679 = vset.pattern.permute.xlu0 0
    %680 = vperm.xlu0 %679, %v678
    %v681 = vpop.permute.xlu0 %680
    %vm682 = vcmp.eq.s32.totalorder %v681, 1
    %v684 = vrot.slane %v676, 4
    %685 = vrot.lane.b32.xlu0 %v684, 112
    %v686 = vpop.permute.xlu0 %685
    %689 = vrot.lane.b32.xlu0 %v605, 112
    %v690 = vpop.permute.xlu0 %689
    %v692 = vsel %vm682, %v686, %v690
    %v693 = vsel %vm164, %v686, 0
    %695 = vmatpush.msra.mxu0 0.0
    %696 = vmatpush.msra.mxu0 0.0
    %697 = vmatpush.msra.mxu0 0.0
    %698 = vmatpush.msra.mxu0 0.0
    %699 = vmatpush.msra.mxu0 0.0
    %700 = vmatpush.msra.mxu0 0.0
    %701 = vmatpush.msra.mxu0 0.0
    %702 = vmatpush.msra.mxu0 0.0
    %703 = vmatpush.msra.mxu0 0.0
    %704 = vmatpush.msra.mxu0 0.0
    %705 = vmatpush.msra.mxu0 0.0
    %706 = vmatpush.msra.mxu0 0.0
    %707 = vmatpush.msra.mxu0 0.0
    %708 = vmatpush.msra.mxu0 0.0
    %709 = vmatpush.msra.mxu0 %v207
    %710 = vmatpush.msra.mxu0 %v206
    %711 = vmatmul.f32.gmra.mxu0 %v693
    %v712 = vpop.f32.mrf.mxu0
    %v713 = vadd.f32 0.0, %v712
    %714 = vdwg.mxu0
    %v715 = vadd.f32 %v204, %v713
    %v716 = vxor.u32 %v715, 2147483648
    %v717 = vmul.f32 %v716, 1.442695
    %v718 = vpow.pop %v717
    %v719 = vadd.f32 %v718, 1.0
    %v720 = vrcp.pop %v719
    %v721 = vmul.f32 %v719, %v720
    %v722 = vsub.f32 1.0, %v721
    %v723 = vmul.f32 %v720, %v722
    %v724 = vadd.f32 %v720, %v723
    %vm725 = vweird.f32 %v719
    %vm726 = vweird.f32 %v720
    %vm727 = vmor %vm725, %vm726
    %v728 = vsel %vm727, %v720, %v724
    %v729 = vand.u32 2147483647, %v719
    %vm730 = vcmp.eq.f32.partialorder %v729, 8.507059e+37
    %v731 = vand.u32 %v719, 2147483648
    %v732 = vor.u32 1.1754944e-38, %v731
    %v733 = vsel %vm730, %v732, %v728
    %v734 = vmul.f32 1.0, %v733
    %v735 = vadd.f32 %v713, %v255
    %737 = vrot.lane.b32.xlu0 %v735, 96
    %v738 = vpop.permute.xlu0 %737
    %v740 = vmul.f32 %v734, %v738
    %742 = vrot.lane.b32.xlu0 %v740, 32
    %v743 = vpop.permute.xlu0 %742
    %v745 = vadd.f32 %v204, %v743
    %v746 = vtanh.pop %v745
    %v747 = vsub.f32 1.0, %v734
    %749 = vrot.lane.b32.xlu0 %v746, 112
    %v750 = vpop.permute.xlu0 %749
    %v752 = vmul.f32 %v747, %v750
    %v754 = vmul.f32 %v734, %v684
    %v755 = vadd.f32 %v752, %v754
    %vm756 = vcmp.eq.s32.totalorder %v78, 6
    %v757 = vsel %vm756, 1, 0
    %758 = vset.pattern.permute.xlu0 0
    %759 = vperm.xlu0 %758, %v757
    %v760 = vpop.permute.xlu0 %759
    %vm761 = vcmp.eq.s32.totalorder %v760, 1
    %763 = vrot.lane.b32.xlu0 %v692, 16
    %v764 = vpop.permute.xlu0 %763
    %v766 = vsel %vm761, %v755, %v764
    %768 = vrot.lane.b32.xlu0 %v755, 112
    %v769 = vpop.permute.xlu0 %768
    %v770 = vsel %vm164, %v769, 0
    %772 = vmatpush.msra.mxu0 0.0
    %773 = vmatpush.msra.mxu0 0.0
    %774 = vmatpush.msra.mxu0 0.0
    %775 = vmatpush.msra.mxu0 0.0
    %776 = vmatpush.msra.mxu0 0.0
    %777 = vmatpush.msra.mxu0 0.0
    %778 = vmatpush.msra.mxu0 0.0
    %779 = vmatpush.msra.mxu0 0.0
    %780 = vmatpush.msra.mxu0 0.0
    %781 = vmatpush.msra.mxu0 0.0
    %782 = vmatpush.msra.mxu0 0.0
    %783 = vmatpush.msra.mxu0 0.0
    %784 = vmatpush.msra.mxu0 0.0
    %785 = vmatpush.msra.mxu0 0.0
    %786 = vmatpush.msra.mxu0 %v207
    %787 = vmatpush.msra.mxu0 %v206
    %788 = vmatmul.f32.gmra.mxu0 %v770
    %v789 = vpop.f32.mrf.mxu0
    %v790 = vadd.f32 0.0, %v789
    %791 = vdwg.mxu0
    %v793 = vrot.slane %v790, 4
    %v795 = vadd.f32 %v204, %v793
    %v796 = vxor.u32 %v795, 2147483648
    %v797 = vmul.f32 %v796, 1.442695
    %v798 = vpow.pop %v797
    %v799 = vadd.f32 %v798, 1.0
    %v800 = vrcp.pop %v799
    %v801 = vmul.f32 %v799, %v800
    %v802 = vsub.f32 1.0, %v801
    %v803 = vmul.f32 %v800, %v802
    %v804 = vadd.f32 %v800, %v803
    %vm805 = vweird.f32 %v799
    %vm806 = vweird.f32 %v800
    %vm807 = vmor %vm805, %vm806
    %v808 = vsel %vm807, %v800, %v804
    %v809 = vand.u32 2147483647, %v799
    %vm810 = vcmp.eq.f32.partialorder %v809, 8.507059e+37
    %v811 = vand.u32 %v799, 2147483648
    %v812 = vor.u32 1.1754944e-38, %v811
    %v813 = vsel %vm810, %v812, %v808
    %v814 = vmul.f32 1.0, %v813
    %v815 = vadd.f32 %v790, %v255
    %v817 = vrot.slane %v815, 4
    %818 = vrot.lane.b32.xlu0 %v817, 96
    %v819 = vpop.permute.xlu0 %818
    %v821 = vmul.f32 %v814, %v819
    %823 = vrot.lane.b32.xlu0 %v821, 32
    %v824 = vpop.permute.xlu0 %823
    %v826 = vadd.f32 %v204, %v824
    %v827 = vtanh.pop %v826
    %v828 = vsub.f32 1.0, %v814
    %830 = vrot.lane.b32.xlu0 %v827, 112
    %v831 = vpop.permute.xlu0 %830
    %v833 = vmul.f32 %v828, %v831
    %v834 = vrot.slane %v755, 4
    %v836 = vmul.f32 %v814, %v834
    %v837 = vadd.f32 %v833, %v836
    %vm838 = vcmp.eq.s32.totalorder %v78, 7
    %v839 = vsel %vm838, 1, 0
    %840 = vset.pattern.permute.xlu0 0
    %841 = vperm.xlu0 %840, %v839
    %v842 = vpop.permute.xlu0 %841
    %vm843 = vcmp.eq.s32.totalorder %v842, 1
    %v845 = vrot.slane %v837, 4
    %846 = vrot.lane.b32.xlu0 %v845, 112
    %v847 = vpop.permute.xlu0 %846
    %850 = vrot.lane.b32.xlu0 %v766, 112
    %v851 = vpop.permute.xlu0 %850
    %v853 = vsel %vm843, %v847, %v851
    %v854 = vld [vmem:[%s4] sm:$0xff]
    %v855 = vld [vmem:[%s4 + $0x8] sm:$0xff]
    %v856 = vld [vmem:[%s4 + $0x10] sm:$0xff]
    %v857 = vld [vmem:[%s4 + $0x18] sm:$0xff]
    %858 = vset.pattern.permute.xlu0 0
    %859 = vperm.xlu0 %858, %v854
    %v860 = vpop.permute.xlu0 %859
    %861 = vset.pattern.permute.xlu0 0
    %862 = vperm.xlu0 %861, %v855
    %v863 = vpop.permute.xlu0 %862
    %864 = vset.pattern.permute.xlu0 0
    %865 = vperm.xlu0 %864, %v856
    %v866 = vpop.permute.xlu0 %865
    %867 = vset.pattern.permute.xlu0 0
    %868 = vperm.xlu0 %867, %v857
    %v869 = vpop.permute.xlu0 %868
    %vm870 = vcmp.eq.s32.totalorder %v860, %v81
    %vm871 = vcmp.eq.s32.totalorder %v863, %v81
    %vm872 = vcmp.eq.s32.totalorder %v866, %v81
    %vm873 = vcmp.eq.s32.totalorder %v869, %v81
    %v874 = vsel %vm870, 1, 0
    %v875 = vsel %vm871, 1, 0
    %v876 = vsel %vm872, 1, 0
    %v877 = vsel %vm873, 1, 0
    %v878 = vcvt.s32.f32 %v874
    %v879 = vcvt.s32.f32 %v875
    %v880 = vcvt.s32.f32 %v876
    %v881 = vcvt.s32.f32 %v877
    %v882 = vld [vmem:[%s0] sm:$0xff]
    %v883 = vld [vmem:[%s0 + $0x8] sm:$0xff]
    %v884 = vld [vmem:[%s0 + $0x10] sm:$0xff]
    %v885 = vld [vmem:[%s0 + $0x18] sm:$0xff]
    %v886 = vld [vmem:[%s0 + $0x20] sm:$0xff]
    %v887 = vld [vmem:[%s0 + $0x28] sm:$0xff]
    %v888 = vld [vmem:[%s0 + $0x30] sm:$0x3]
    %vm889 = vcmask 408576
    %v891 = vsel %vm889, %v878, 0
    %v894 = vsel %vm889, %v879, 0
    %v897 = vsel %vm889, %v880, 0
    %v900 = vsel %vm889, %v881, 0
    %vm902 = vcmask 1041408
    %v904 = vsel %vm902, %v888, 0
    %906 = vmatpush.msra.mxu0 0.0
    %907 = vmatpush.msra.mxu0 0.0
    %908 = vmatpush.msra.mxu0 0.0
    %909 = vmatpush.msra.mxu0 0.0
    %910 = vmatpush.msra.mxu0 0.0
    %911 = vmatpush.msra.mxu0 0.0
    %912 = vmatpush.msra.mxu0 0.0
    %913 = vmatpush.msra.mxu0 0.0
    %914 = vmatpush.msra.mxu0 0.0
    %915 = vmatpush.msra.mxu0 %v904
    %916 = vmatpush.msra.mxu0 %v887
    %917 = vmatpush.msra.mxu0 %v886
    %918 = vmatpush.msra.mxu0 %v885
    %919 = vmatpush.msra.mxu0 %v884
    %920 = vmatpush.msra.mxu0 %v883
    %921 = vmatpush.msra.mxu0 %v882
    %922 = vmatmul.f32.gmra.mxu0 %v891
    %v923 = vpop.f32.mrf.mxu0
    %v924 = vadd.f32 0.0, %v923
    %925 = vmatmul.f32.gmra.mxu0 %v894
    %v926 = vpop.f32.mrf.mxu0
    %v927 = vadd.f32 0.0, %v926
    %928 = vmatmul.f32.gmra.mxu0 %v897
    %v929 = vpop.f32.mrf.mxu0
    %v930 = vadd.f32 0.0, %v929
    %931 = vmatmul.f32.gmra.mxu0 %v900
    %v932 = vpop.f32.mrf.mxu0
    %v933 = vadd.f32 0.0, %v932
    %934 = vdwg.mxu0
    %v935 = vld [vmem:[%s11] sm:$0xff]
    %v936 = vld [vmem:[%s11 + $0x8] sm:$0xff]
    %v937 = vld [vmem:[%s11 + $0x10] sm:$0xff]
    %v938 = vld [vmem:[%s11 + $0x18] sm:$0xff]
    %v939 = vld [vmem:[%s13] sm:$0x1]
    %v941 = vperm.slane %v939, 0
    %vm943 = vcmask 261120
    %v945 = vsel %vm943, %v924, 0
    %v948 = vsel %vm943, %v927, 0
    %v951 = vsel %vm943, %v930, 0
    %v954 = vsel %vm943, %v933, 0
    %956 = vmatpush.msra.mxu0 0.0
    %957 = vmatpush.msra.mxu0 0.0
    %958 = vmatpush.msra.mxu0 0.0
    %959 = vmatpush.msra.mxu0 0.0
    %960 = vmatpush.msra.mxu0 0.0
    %961 = vmatpush.msra.mxu0 0.0
    %962 = vmatpush.msra.mxu0 0.0
    %963 = vmatpush.msra.mxu0 0.0
    %964 = vmatpush.msra.mxu0 0.0
    %965 = vmatpush.msra.mxu0 0.0
    %966 = vmatpush.msra.mxu0 0.0
    %967 = vmatpush.msra.mxu0 0.0
    %968 = vmatpush.msra.mxu0 %v938
    %969 = vmatpush.msra.mxu0 %v937
    %970 = vmatpush.msra.mxu0 %v936
    %971 = vmatpush.msra.mxu0 %v935
    %972 = vmatmul.f32.gmra.mxu0 %v945
    %v973 = vpop.f32.mrf.mxu0
    %v974 = vadd.f32 %v941, %v973
    %975 = vmatmul.f32.gmra.mxu0 %v948
    %v976 = vpop.f32.mrf.mxu0
    %v977 = vadd.f32 %v941, %v976
    %978 = vmatmul.f32.gmra.mxu0 %v951
    %v979 = vpop.f32.mrf.mxu0
    %v980 = vadd.f32 %v941, %v979
    %981 = vmatmul.f32.gmra.mxu0 %v954
    %v982 = vpop.f32.mrf.mxu0
    %v983 = vadd.f32 %v941, %v982
    %984 = vdwg.mxu0
    %v985 = vld [vmem:[%s12] sm:$0xff]
    %v986 = vld [vmem:[%s12 + $0x8] sm:$0xff]
    %v987 = vld [vmem:[%s12 + $0x10] sm:$0xff]
    %v988 = vld [vmem:[%s12 + $0x18] sm:$0xff]
    %v989 = vld [vmem:[%s14] sm:$0x1]
    %v991 = vperm.slane %v989, 0
    %v992 = vsel %vm943, 0.0, 0
    %994 = vmatpush.msra.mxu0 0.0
    %995 = vmatpush.msra.mxu0 0.0
    %996 = vmatpush.msra.mxu0 0.0
    %997 = vmatpush.msra.mxu0 0.0
    %998 = vmatpush.msra.mxu0 0.0
    %999 = vmatpush.msra.mxu0 0.0
    %1000 = vmatpush.msra.mxu0 0.0
    %1001 = vmatpush.msra.mxu0 0.0
    %1002 = vmatpush.msra.mxu0 0.0
    %1003 = vmatpush.msra.mxu0 0.0
    %1004 = vmatpush.msra.mxu0 0.0
    %1005 = vmatpush.msra.mxu0 0.0
    %1006 = vmatpush.msra.mxu0 %v988
    %1007 = vmatpush.msra.mxu0 %v987
    %1008 = vmatpush.msra.mxu0 %v986
    %1009 = vmatpush.msra.mxu0 %v985
    %1010 = vmatmul.f32.gmra.mxu0 %v992
    %v1011 = vpop.f32.mrf.mxu0
    %v1012 = vadd.f32 0.0, %v1011
    %1013 = vdwg.mxu0
    %v1014 = vadd.f32 %v974, %v1012
    %v1015 = vxor.u32 %v1014, 2147483648
    %v1016 = vmul.f32 %v1015, 1.442695
    %v1017 = vpow.pop %v1016
    %v1018 = vadd.f32 %v1017, 1.0
    %v1019 = vrcp.pop %v1018
    %v1020 = vmul.f32 %v1018, %v1019
    %v1021 = vsub.f32 1.0, %v1020
    %v1022 = vmul.f32 %v1019, %v1021
    %v1023 = vadd.f32 %v1019, %v1022
    %vm1024 = vweird.f32 %v1018
    %vm1025 = vweird.f32 %v1019
    %vm1026 = vmor %vm1024, %vm1025
    %v1027 = vsel %vm1026, %v1019, %v1023
    %v1028 = vand.u32 2147483647, %v1018
    %vm1029 = vcmp.eq.f32.partialorder %v1028, 8.507059e+37
    %v1030 = vand.u32 %v1018, 2147483648
    %v1031 = vor.u32 1.1754944e-38, %v1030
    %v1032 = vsel %vm1029, %v1031, %v1027
    %v1033 = vmul.f32 1.0, %v1032
    %1034 = vrot.lane.b32.xlu0 %v991, 64
    %v1035 = vpop.permute.xlu0 %1034
    %v1037 = vadd.f32 %v1012, %v1035
    %1039 = vrot.lane.b32.xlu0 %v1037, 64
    %v1040 = vpop.permute.xlu0 %1039
    %v1042 = vmul.f32 %v1033, %v1040
    %1044 = vrot.lane.b32.xlu0 %v1042, 64
    %v1045 = vpop.permute.xlu0 %1044
    %v1047 = vadd.f32 %v974, %v1045
    %v1048 = vtanh.pop %v1047
    %v1049 = vsub.f32 1.0, %v1033
    %1051 = vrot.lane.b32.xlu0 %v1048, 96
    %v1052 = vpop.permute.xlu0 %1051
    %v1054 = vmul.f32 %v1049, %v1052
    %v1055 = vmul.f32 %v1033, 0.0
    %v1056 = vadd.f32 %v1054, %v1055
    %vm1057 = vcmp.eq.s32.totalorder %v79, 0
    %v1058 = vsel %vm1057, 1, 0
    %1059 = vset.pattern.permute.xlu0 0
    %1060 = vperm.xlu0 %1059, %v1058
    %v1061 = vpop.permute.xlu0 %1060
    %vm1062 = vcmp.eq.s32.totalorder %v1061, 1
    %v1063 = vsel %vm1062, %v1056, 0.0
    %1065 = vrot.lane.b32.xlu0 %v1056, 96
    %v1066 = vpop.permute.xlu0 %1065
    %v1067 = vsel %vm943, %v1066, 0
    %1069 = vmatpush.msra.mxu0 0.0
    %1070 = vmatpush.msra.mxu0 0.0
    %1071 = vmatpush.msra.mxu0 0.0
    %1072 = vmatpush.msra.mxu0 0.0
    %1073 = vmatpush.msra.mxu0 0.0
    %1074 = vmatpush.msra.mxu0 0.0
    %1075 = vmatpush.msra.mxu0 0.0
    %1076 = vmatpush.msra.mxu0 0.0
    %1077 = vmatpush.msra.mxu0 0.0
    %1078 = vmatpush.msra.mxu0 0.0
    %1079 = vmatpush.msra.mxu0 0.0
    %1080 = vmatpush.msra.mxu0 0.0
    %1081 = vmatpush.msra.mxu0 %v988
    %1082 = vmatpush.msra.mxu0 %v987
    %1083 = vmatpush.msra.mxu0 %v986
    %1084 = vmatpush.msra.mxu0 %v985
    %1085 = vmatmul.f32.gmra.mxu0 %v1067
    %v1086 = vpop.f32.mrf.mxu0
    %v1087 = vadd.f32 0.0, %v1086
    %1088 = vdwg.mxu0
    %v1090 = vrot.slane %v1087, 4
    %v1092 = vadd.f32 %v974, %v1090
    %v1093 = vxor.u32 %v1092, 2147483648
    %v1094 = vmul.f32 %v1093, 1.442695
    %v1095 = vpow.pop %v1094
    %v1096 = vadd.f32 %v1095, 1.0
    %v1097 = vrcp.pop %v1096
    %v1098 = vmul.f32 %v1096, %v1097
    %v1099 = vsub.f32 1.0, %v1098
    %v1100 = vmul.f32 %v1097, %v1099
    %v1101 = vadd.f32 %v1097, %v1100
    %vm1102 = vweird.f32 %v1096
    %vm1103 = vweird.f32 %v1097
    %vm1104 = vmor %vm1102, %vm1103
    %v1105 = vsel %vm1104, %v1097, %v1101
    %v1106 = vand.u32 2147483647, %v1096
    %vm1107 = vcmp.eq.f32.partialorder %v1106, 8.507059e+37
    %v1108 = vand.u32 %v1096, 2147483648
    %v1109 = vor.u32 1.1754944e-38, %v1108
    %v1110 = vsel %vm1107, %v1109, %v1105
    %v1111 = vmul.f32 1.0, %v1110
    %v1112 = vadd.f32 %v1087, %v1035
    %v1114 = vrot.slane %v1112, 4
    %1115 = vrot.lane.b32.xlu0 %v1114, 64
    %v1116 = vpop.permute.xlu0 %1115
    %v1118 = vmul.f32 %v1111, %v1116
    %1120 = vrot.lane.b32.xlu0 %v1118, 64
    %v1121 = vpop.permute.xlu0 %1120
    %v1123 = vadd.f32 %v974, %v1121
    %v1124 = vtanh.pop %v1123
    %v1125 = vsub.f32 1.0, %v1111
    %1127 = vrot.lane.b32.xlu0 %v1124, 96
    %v1128 = vpop.permute.xlu0 %1127
    %v1130 = vmul.f32 %v1125, %v1128
    %v1131 = vrot.slane %v1056, 4
    %v1133 = vmul.f32 %v1111, %v1131
    %v1134 = vadd.f32 %v1130, %v1133
    %vm1135 = vcmp.eq.s32.totalorder %v79, 1
    %v1136 = vsel %vm1135, 1, 0
    %1137 = vset.pattern.permute.xlu0 0
    %1138 = vperm.xlu0 %1137, %v1136
    %v1139 = vpop.permute.xlu0 %1138
    %vm1140 = vcmp.eq.s32.totalorder %v1139, 1
    %v1142 = vrot.slane %v1134, 4
    %1143 = vrot.lane.b32.xlu0 %v1142, 96
    %v1144 = vpop.permute.xlu0 %1143
    %1147 = vrot.lane.b32.xlu0 %v1063, 96
    %v1148 = vpop.permute.xlu0 %1147
    %v1150 = vsel %vm1140, %v1144, %v1148
    %v1151 = vsel %vm943, %v1144, 0
    %1153 = vmatpush.msra.mxu0 0.0
    %1154 = vmatpush.msra.mxu0 0.0
    %1155 = vmatpush.msra.mxu0 0.0
    %1156 = vmatpush.msra.mxu0 0.0
    %1157 = vmatpush.msra.mxu0 0.0
    %1158 = vmatpush.msra.mxu0 0.0
    %1159 = vmatpush.msra.mxu0 0.0
    %1160 = vmatpush.msra.mxu0 0.0
    %1161 = vmatpush.msra.mxu0 0.0
    %1162 = vmatpush.msra.mxu0 0.0
    %1163 = vmatpush.msra.mxu0 0.0
    %1164 = vmatpush.msra.mxu0 0.0
    %1165 = vmatpush.msra.mxu0 %v988
    %1166 = vmatpush.msra.mxu0 %v987
    %1167 = vmatpush.msra.mxu0 %v986
    %1168 = vmatpush.msra.mxu0 %v985
    %1169 = vmatmul.f32.gmra.mxu0 %v1151
    %v1170 = vpop.f32.mrf.mxu0
    %v1171 = vadd.f32 0.0, %v1170
    %1172 = vdwg.mxu0
    %v1173 = vadd.f32 %v977, %v1171
    %v1174 = vxor.u32 %v1173, 2147483648
    %v1175 = vmul.f32 %v1174, 1.442695
    %v1176 = vpow.pop %v1175
    %v1177 = vadd.f32 %v1176, 1.0
    %v1178 = vrcp.pop %v1177
    %v1179 = vmul.f32 %v1177, %v1178
    %v1180 = vsub.f32 1.0, %v1179
    %v1181 = vmul.f32 %v1178, %v1180
    %v1182 = vadd.f32 %v1178, %v1181
    %vm1183 = vweird.f32 %v1177
    %vm1184 = vweird.f32 %v1178
    %vm1185 = vmor %vm1183, %vm1184
    %v1186 = vsel %vm1185, %v1178, %v1182
    %v1187 = vand.u32 2147483647, %v1177
    %vm1188 = vcmp.eq.f32.partialorder %v1187, 8.507059e+37
    %v1189 = vand.u32 %v1177, 2147483648
    %v1190 = vor.u32 1.1754944e-38, %v1189
    %v1191 = vsel %vm1188, %v1190, %v1186
    %v1192 = vmul.f32 1.0, %v1191
    %v1193 = vadd.f32 %v1171, %v1035
    %1195 = vrot.lane.b32.xlu0 %v1193, 64
    %v1196 = vpop.permute.xlu0 %1195
    %v1198 = vmul.f32 %v1192, %v1196
    %1200 = vrot.lane.b32.xlu0 %v1198, 64
    %v1201 = vpop.permute.xlu0 %1200
    %v1203 = vadd.f32 %v977, %v1201
    %v1204 = vtanh.pop %v1203
    %v1205 = vsub.f32 1.0, %v1192
    %1207 = vrot.lane.b32.xlu0 %v1204, 96
    %v1208 = vpop.permute.xlu0 %1207
    %v1210 = vmul.f32 %v1205, %v1208
    %v1212 = vmul.f32 %v1192, %v1142
    %v1213 = vadd.f32 %v1210, %v1212
    %vm1214 = vcmp.eq.s32.totalorder %v79, 2
    %v1215 = vsel %vm1214, 1, 0
    %1216 = vset.pattern.permute.xlu0 0
    %1217 = vperm.xlu0 %1216, %v1215
    %v1218 = vpop.permute.xlu0 %1217
    %vm1219 = vcmp.eq.s32.totalorder %v1218, 1
    %1221 = vrot.lane.b32.xlu0 %v1150, 32
    %v1222 = vpop.permute.xlu0 %1221
    %v1224 = vsel %vm1219, %v1213, %v1222
    %1226 = vrot.lane.b32.xlu0 %v1213, 96
    %v1227 = vpop.permute.xlu0 %1226
    %v1228 = vsel %vm943, %v1227, 0
    %1230 = vmatpush.msra.mxu0 0.0
    %1231 = vmatpush.msra.mxu0 0.0
    %1232 = vmatpush.msra.mxu0 0.0
    %1233 = vmatpush.msra.mxu0 0.0
    %1234 = vmatpush.msra.mxu0 0.0
    %1235 = vmatpush.msra.mxu0 0.0
    %1236 = vmatpush.msra.mxu0 0.0
    %1237 = vmatpush.msra.mxu0 0.0
    %1238 = vmatpush.msra.mxu0 0.0
    %1239 = vmatpush.msra.mxu0 0.0
    %1240 = vmatpush.msra.mxu0 0.0
    %1241 = vmatpush.msra.mxu0 0.0
    %1242 = vmatpush.msra.mxu0 %v988
    %1243 = vmatpush.msra.mxu0 %v987
    %1244 = vmatpush.msra.mxu0 %v986
    %1245 = vmatpush.msra.mxu0 %v985
    %1246 = vmatmul.f32.gmra.mxu0 %v1228
    %v1247 = vpop.f32.mrf.mxu0
    %v1248 = vadd.f32 0.0, %v1247
    %1249 = vdwg.mxu0
    %v1251 = vrot.slane %v1248, 4
    %v1253 = vadd.f32 %v977, %v1251
    %v1254 = vxor.u32 %v1253, 2147483648
    %v1255 = vmul.f32 %v1254, 1.442695
    %v1256 = vpow.pop %v1255
    %v1257 = vadd.f32 %v1256, 1.0
    %v1258 = vrcp.pop %v1257
    %v1259 = vmul.f32 %v1257, %v1258
    %v1260 = vsub.f32 1.0, %v1259
    %v1261 = vmul.f32 %v1258, %v1260
    %v1262 = vadd.f32 %v1258, %v1261
    %vm1263 = vweird.f32 %v1257
    %vm1264 = vweird.f32 %v1258
    %vm1265 = vmor %vm1263, %vm1264
    %v1266 = vsel %vm1265, %v1258, %v1262
    %v1267 = vand.u32 2147483647, %v1257
    %vm1268 = vcmp.eq.f32.partialorder %v1267, 8.507059e+37
    %v1269 = vand.u32 %v1257, 2147483648
    %v1270 = vor.u32 1.1754944e-38, %v1269
    %v1271 = vsel %vm1268, %v1270, %v1266
    %v1272 = vmul.f32 1.0, %v1271
    %v1273 = vadd.f32 %v1248, %v1035
    %v1275 = vrot.slane %v1273, 4
    %1276 = vrot.lane.b32.xlu0 %v1275, 64
    %v1277 = vpop.permute.xlu0 %1276
    %v1279 = vmul.f32 %v1272, %v1277
    %1281 = vrot.lane.b32.xlu0 %v1279, 64
    %v1282 = vpop.permute.xlu0 %1281
    %v1284 = vadd.f32 %v977, %v1282
    %v1285 = vtanh.pop %v1284
    %v1286 = vsub.f32 1.0, %v1272
    %1288 = vrot.lane.b32.xlu0 %v1285, 96
    %v1289 = vpop.permute.xlu0 %1288
    %v1291 = vmul.f32 %v1286, %v1289
    %v1292 = vrot.slane %v1213, 4
    %v1294 = vmul.f32 %v1272, %v1292
    %v1295 = vadd.f32 %v1291, %v1294
    %vm1296 = vcmp.eq.s32.totalorder %v79, 3
    %v1297 = vsel %vm1296, 1, 0
    %1298 = vset.pattern.permute.xlu0 0
    %1299 = vperm.xlu0 %1298, %v1297
    %v1300 = vpop.permute.xlu0 %1299
    %vm1301 = vcmp.eq.s32.totalorder %v1300, 1
    %v1303 = vrot.slane %v1295, 4
    %1304 = vrot.lane.b32.xlu0 %v1303, 96
    %v1305 = vpop.permute.xlu0 %1304
    %1308 = vrot.lane.b32.xlu0 %v1224, 96
    %v1309 = vpop.permute.xlu0 %1308
    %v1311 = vsel %vm1301, %v1305, %v1309
    %v1312 = vsel %vm943, %v1305, 0
    %1314 = vmatpush.msra.mxu0 0.0
    %1315 = vmatpush.msra.mxu0 0.0
    %1316 = vmatpush.msra.mxu0 0.0
    %1317 = vmatpush.msra.mxu0 0.0
    %1318 = vmatpush.msra.mxu0 0.0
    %1319 = vmatpush.msra.mxu0 0.0
    %1320 = vmatpush.msra.mxu0 0.0
    %1321 = vmatpush.msra.mxu0 0.0
    %1322 = vmatpush.msra.mxu0 0.0
    %1323 = vmatpush.msra.mxu0 0.0
    %1324 = vmatpush.msra.mxu0 0.0
    %1325 = vmatpush.msra.mxu0 0.0
    %1326 = vmatpush.msra.mxu0 %v988
    %1327 = vmatpush.msra.mxu0 %v987
    %1328 = vmatpush.msra.mxu0 %v986
    %1329 = vmatpush.msra.mxu0 %v985
    %1330 = vmatmul.f32.gmra.mxu0 %v1312
    %v1331 = vpop.f32.mrf.mxu0
    %v1332 = vadd.f32 0.0, %v1331
    %1333 = vdwg.mxu0
    %v1334 = vadd.f32 %v980, %v1332
    %v1335 = vxor.u32 %v1334, 2147483648
    %v1336 = vmul.f32 %v1335, 1.442695
    %v1337 = vpow.pop %v1336
    %v1338 = vadd.f32 %v1337, 1.0
    %v1339 = vrcp.pop %v1338
    %v1340 = vmul.f32 %v1338, %v1339
    %v1341 = vsub.f32 1.0, %v1340
    %v1342 = vmul.f32 %v1339, %v1341
    %v1343 = vadd.f32 %v1339, %v1342
    %vm1344 = vweird.f32 %v1338
    %vm1345 = vweird.f32 %v1339
    %vm1346 = vmor %vm1344, %vm1345
    %v1347 = vsel %vm1346, %v1339, %v1343
    %v1348 = vand.u32 2147483647, %v1338
    %vm1349 = vcmp.eq.f32.partialorder %v1348, 8.507059e+37
    %v1350 = vand.u32 %v1338, 2147483648
    %v1351 = vor.u32 1.1754944e-38, %v1350
    %v1352 = vsel %vm1349, %v1351, %v1347
    %v1353 = vmul.f32 1.0, %v1352
    %v1354 = vadd.f32 %v1332, %v1035
    %1356 = vrot.lane.b32.xlu0 %v1354, 64
    %v1357 = vpop.permute.xlu0 %1356
    %v1359 = vmul.f32 %v1353, %v1357
    %1361 = vrot.lane.b32.xlu0 %v1359, 64
    %v1362 = vpop.permute.xlu0 %1361
    %v1364 = vadd.f32 %v980, %v1362
    %v1365 = vtanh.pop %v1364
    %v1366 = vsub.f32 1.0, %v1353
    %1368 = vrot.lane.b32.xlu0 %v1365, 96
    %v1369 = vpop.permute.xlu0 %1368
    %v1371 = vmul.f32 %v1366, %v1369
    %v1373 = vmul.f32 %v1353, %v1303
    %v1374 = vadd.f32 %v1371, %v1373
    %vm1375 = vcmp.eq.s32.totalorder %v79, 4
    %v1376 = vsel %vm1375, 1, 0
    %1377 = vset.pattern.permute.xlu0 0
    %1378 = vperm.xlu0 %1377, %v1376
    %v1379 = vpop.permute.xlu0 %1378
    %vm1380 = vcmp.eq.s32.totalorder %v1379, 1
    %1382 = vrot.lane.b32.xlu0 %v1311, 32
    %v1383 = vpop.permute.xlu0 %1382
    %v1385 = vsel %vm1380, %v1374, %v1383
    %1387 = vrot.lane.b32.xlu0 %v1374, 96
    %v1388 = vpop.permute.xlu0 %1387
    %v1389 = vsel %vm943, %v1388, 0
    %1391 = vmatpush.msra.mxu0 0.0
    %1392 = vmatpush.msra.mxu0 0.0
    %1393 = vmatpush.msra.mxu0 0.0
    %1394 = vmatpush.msra.mxu0 0.0
    %1395 = vmatpush.msra.mxu0 0.0
    %1396 = vmatpush.msra.mxu0 0.0
    %1397 = vmatpush.msra.mxu0 0.0
    %1398 = vmatpush.msra.mxu0 0.0
    %1399 = vmatpush.msra.mxu0 0.0
    %1400 = vmatpush.msra.mxu0 0.0
    %1401 = vmatpush.msra.mxu0 0.0
    %1402 = vmatpush.msra.mxu0 0.0
    %1403 = vmatpush.msra.mxu0 %v988
    %1404 = vmatpush.msra.mxu0 %v987
    %1405 = vmatpush.msra.mxu0 %v986
    %1406 = vmatpush.msra.mxu0 %v985
    %1407 = vmatmul.f32.gmra.mxu0 %v1389
    %v1408 = vpop.f32.mrf.mxu0
    %v1409 = vadd.f32 0.0, %v1408
    %1410 = vdwg.mxu0
    %v1412 = vrot.slane %v1409, 4
    %v1414 = vadd.f32 %v980, %v1412
    %v1415 = vxor.u32 %v1414, 2147483648
    %v1416 = vmul.f32 %v1415, 1.442695
    %v1417 = vpow.pop %v1416
    %v1418 = vadd.f32 %v1417, 1.0
    %v1419 = vrcp.pop %v1418
    %v1420 = vmul.f32 %v1418, %v1419
    %v1421 = vsub.f32 1.0, %v1420
    %v1422 = vmul.f32 %v1419, %v1421
    %v1423 = vadd.f32 %v1419, %v1422
    %vm1424 = vweird.f32 %v1418
    %vm1425 = vweird.f32 %v1419
    %vm1426 = vmor %vm1424, %vm1425
    %v1427 = vsel %vm1426, %v1419, %v1423
    %v1428 = vand.u32 2147483647, %v1418
    %vm1429 = vcmp.eq.f32.partialorder %v1428, 8.507059e+37
    %v1430 = vand.u32 %v1418, 2147483648
    %v1431 = vor.u32 1.1754944e-38, %v1430
    %v1432 = vsel %vm1429, %v1431, %v1427
    %v1433 = vmul.f32 1.0, %v1432
    %v1434 = vadd.f32 %v1409, %v1035
    %v1436 = vrot.slane %v1434, 4
    %1437 = vrot.lane.b32.xlu0 %v1436, 64
    %v1438 = vpop.permute.xlu0 %1437
    %v1440 = vmul.f32 %v1433, %v1438
    %1442 = vrot.lane.b32.xlu0 %v1440, 64
    %v1443 = vpop.permute.xlu0 %1442
    %v1445 = vadd.f32 %v980, %v1443
    %v1446 = vtanh.pop %v1445
    %v1447 = vsub.f32 1.0, %v1433
    %1449 = vrot.lane.b32.xlu0 %v1446, 96
    %v1450 = vpop.permute.xlu0 %1449
    %v1452 = vmul.f32 %v1447, %v1450
    %v1453 = vrot.slane %v1374, 4
    %v1455 = vmul.f32 %v1433, %v1453
    %v1456 = vadd.f32 %v1452, %v1455
    %vm1457 = vcmp.eq.s32.totalorder %v79, 5
    %v1458 = vsel %vm1457, 1, 0
    %1459 = vset.pattern.permute.xlu0 0
    %1460 = vperm.xlu0 %1459, %v1458
    %v1461 = vpop.permute.xlu0 %1460
    %vm1462 = vcmp.eq.s32.totalorder %v1461, 1
    %v1464 = vrot.slane %v1456, 4
    %1465 = vrot.lane.b32.xlu0 %v1464, 96
    %v1466 = vpop.permute.xlu0 %1465
    %1469 = vrot.lane.b32.xlu0 %v1385, 96
    %v1470 = vpop.permute.xlu0 %1469
    %v1472 = vsel %vm1462, %v1466, %v1470
    %v1473 = vsel %vm943, %v1466, 0
    %1475 = vmatpush.msra.mxu0 0.0
    %1476 = vmatpush.msra.mxu0 0.0
    %1477 = vmatpush.msra.mxu0 0.0
    %1478 = vmatpush.msra.mxu0 0.0
    %1479 = vmatpush.msra.mxu0 0.0
    %1480 = vmatpush.msra.mxu0 0.0
    %1481 = vmatpush.msra.mxu0 0.0
    %1482 = vmatpush.msra.mxu0 0.0
    %1483 = vmatpush.msra.mxu0 0.0
    %1484 = vmatpush.msra.mxu0 0.0
    %1485 = vmatpush.msra.mxu0 0.0
    %1486 = vmatpush.msra.mxu0 0.0
    %1487 = vmatpush.msra.mxu0 %v988
    %1488 = vmatpush.msra.mxu0 %v987
    %1489 = vmatpush.msra.mxu0 %v986
    %1490 = vmatpush.msra.mxu0 %v985
    %1491 = vmatmul.f32.gmra.mxu0 %v1473
    %v1492 = vpop.f32.mrf.mxu0
    %v1493 = vadd.f32 0.0, %v1492
    %1494 = vdwg.mxu0
    %v1495 = vadd.f32 %v983, %v1493
    %v1496 = vxor.u32 %v1495, 2147483648
    %v1497 = vmul.f32 %v1496, 1.442695
    %v1498 = vpow.pop %v1497
    %v1499 = vadd.f32 %v1498, 1.0
    %v1500 = vrcp.pop %v1499
    %v1501 = vmul.f32 %v1499, %v1500
    %v1502 = vsub.f32 1.0, %v1501
    %v1503 = vmul.f32 %v1500, %v1502
    %v1504 = vadd.f32 %v1500, %v1503
    %vm1505 = vweird.f32 %v1499
    %vm1506 = vweird.f32 %v1500
    %vm1507 = vmor %vm1505, %vm1506
    %v1508 = vsel %vm1507, %v1500, %v1504
    %v1509 = vand.u32 2147483647, %v1499
    %vm1510 = vcmp.eq.f32.partialorder %v1509, 8.507059e+37
    %v1511 = vand.u32 %v1499, 2147483648
    %v1512 = vor.u32 1.1754944e-38, %v1511
    %v1513 = vsel %vm1510, %v1512, %v1508
    %v1514 = vmul.f32 1.0, %v1513
    %v1515 = vadd.f32 %v1493, %v1035
    %1517 = vrot.lane.b32.xlu0 %v1515, 64
    %v1518 = vpop.permute.xlu0 %1517
    %v1520 = vmul.f32 %v1514, %v1518
    %1522 = vrot.lane.b32.xlu0 %v1520, 64
    %v1523 = vpop.permute.xlu0 %1522
    %v1525 = vadd.f32 %v983, %v1523
    %v1526 = vtanh.pop %v1525
    %v1527 = vsub.f32 1.0, %v1514
    %1529 = vrot.lane.b32.xlu0 %v1526, 96
    %v1530 = vpop.permute.xlu0 %1529
    %v1532 = vmul.f32 %v1527, %v1530
    %v1534 = vmul.f32 %v1514, %v1464
    %v1535 = vadd.f32 %v1532, %v1534
    %vm1536 = vcmp.eq.s32.totalorder %v79, 6
    %v1537 = vsel %vm1536, 1, 0
    %1538 = vset.pattern.permute.xlu0 0
    %1539 = vperm.xlu0 %1538, %v1537
    %v1540 = vpop.permute.xlu0 %1539
    %vm1541 = vcmp.eq.s32.totalorder %v1540, 1
    %1543 = vrot.lane.b32.xlu0 %v1472, 32
    %v1544 = vpop.permute.xlu0 %1543
    %v1546 = vsel %vm1541, %v1535, %v1544
    %1548 = vrot.lane.b32.xlu0 %v1535, 96
    %v1549 = vpop.permute.xlu0 %1548
    %v1550 = vsel %vm943, %v1549, 0
    %1552 = vmatpush.msra.mxu0 0.0
    %1553 = vmatpush.msra.mxu0 0.0
    %1554 = vmatpush.msra.mxu0 0.0
    %1555 = vmatpush.msra.mxu0 0.0
    %1556 = vmatpush.msra.mxu0 0.0
    %1557 = vmatpush.msra.mxu0 0.0
    %1558 = vmatpush.msra.mxu0 0.0
    %1559 = vmatpush.msra.mxu0 0.0
    %1560 = vmatpush.msra.mxu0 0.0
    %1561 = vmatpush.msra.mxu0 0.0
    %1562 = vmatpush.msra.mxu0 0.0
    %1563 = vmatpush.msra.mxu0 0.0
    %1564 = vmatpush.msra.mxu0 %v988
    %1565 = vmatpush.msra.mxu0 %v987
    %1566 = vmatpush.msra.mxu0 %v986
    %1567 = vmatpush.msra.mxu0 %v985
    %1568 = vmatmul.f32.gmra.mxu0 %v1550
    %v1569 = vpop.f32.mrf.mxu0
    %v1570 = vadd.f32 0.0, %v1569
    %1571 = vdwg.mxu0
    %v1573 = vrot.slane %v1570, 4
    %v1575 = vadd.f32 %v983, %v1573
    %v1576 = vxor.u32 %v1575, 2147483648
    %v1577 = vmul.f32 %v1576, 1.442695
    %v1578 = vpow.pop %v1577
    %v1579 = vadd.f32 %v1578, 1.0
    %v1580 = vrcp.pop %v1579
    %v1581 = vmul.f32 %v1579, %v1580
    %v1582 = vsub.f32 1.0, %v1581
    %v1583 = vmul.f32 %v1580, %v1582
    %v1584 = vadd.f32 %v1580, %v1583
    %vm1585 = vweird.f32 %v1579
    %vm1586 = vweird.f32 %v1580
    %vm1587 = vmor %vm1585, %vm1586
    %v1588 = vsel %vm1587, %v1580, %v1584
    %v1589 = vand.u32 2147483647, %v1579
    %vm1590 = vcmp.eq.f32.partialorder %v1589, 8.507059e+37
    %v1591 = vand.u32 %v1579, 2147483648
    %v1592 = vor.u32 1.1754944e-38, %v1591
    %v1593 = vsel %vm1590, %v1592, %v1588
    %v1594 = vmul.f32 1.0, %v1593
    %v1595 = vadd.f32 %v1570, %v1035
    %v1597 = vrot.slane %v1595, 4
    %1598 = vrot.lane.b32.xlu0 %v1597, 64
    %v1599 = vpop.permute.xlu0 %1598
    %v1601 = vmul.f32 %v1594, %v1599
    %1603 = vrot.lane.b32.xlu0 %v1601, 64
    %v1604 = vpop.permute.xlu0 %1603
    %v1606 = vadd.f32 %v983, %v1604
    %v1607 = vtanh.pop %v1606
    %v1608 = vsub.f32 1.0, %v1594
    %1610 = vrot.lane.b32.xlu0 %v1607, 96
    %v1611 = vpop.permute.xlu0 %1610
    %v1613 = vmul.f32 %v1608, %v1611
    %v1614 = vrot.slane %v1535, 4
    %v1616 = vmul.f32 %v1594, %v1614
    %v1617 = vadd.f32 %v1613, %v1616
    %vm1618 = vcmp.eq.s32.totalorder %v79, 7
    %v1619 = vsel %vm1618, 1, 0
    %1620 = vset.pattern.permute.xlu0 0
    %1621 = vperm.xlu0 %1620, %v1619
    %v1622 = vpop.permute.xlu0 %1621
    %vm1623 = vcmp.eq.s32.totalorder %v1622, 1
    %v1625 = vrot.slane %v1617, 4
    %1626 = vrot.lane.b32.xlu0 %v1625, 96
    %v1627 = vpop.permute.xlu0 %1626
    %1630 = vrot.lane.b32.xlu0 %v1546, 96
    %v1631 = vpop.permute.xlu0 %1630
    %v1633 = vsel %vm1623, %v1627, %v1631
    %v1634 = vld [vmem:[%s2] sm:$0xff]
    %v1635 = vld [vmem:[%s2 + $0x8] sm:$0xff]
    %v1636 = vld [vmem:[%s2 + $0x10] sm:$0xff]
    %v1637 = vld [vmem:[%s2 + $0x18] sm:$0xff]
    %1638 = vset.pattern.permute.xlu0 0
    %1639 = vperm.xlu0 %1638, %v1634
    %v1640 = vpop.permute.xlu0 %1639
    %1641 = vset.pattern.permute.xlu0 0
    %1642 = vperm.xlu0 %1641, %v1635
    %v1643 = vpop.permute.xlu0 %1642
    %1644 = vset.pattern.permute.xlu0 0
    %1645 = vperm.xlu0 %1644, %v1636
    %v1646 = vpop.permute.xlu0 %1645
    %1647 = vset.pattern.permute.xlu0 0
    %1648 = vperm.xlu0 %1647, %v1637
    %v1649 = vpop.permute.xlu0 %1648
    %vm1650 = vcmp.eq.s32.totalorder %v1640, %v81
    %vm1651 = vcmp.eq.s32.totalorder %v1643, %v81
    %vm1652 = vcmp.eq.s32.totalorder %v1646, %v81
    %vm1653 = vcmp.eq.s32.totalorder %v1649, %v81
    %v1654 = vsel %vm1650, 1, 0
    %v1655 = vsel %vm1651, 1, 0
    %v1656 = vsel %vm1652, 1, 0
    %v1657 = vsel %vm1653, 1, 0
    %v1658 = vcvt.s32.f32 %v1654
    %v1659 = vcvt.s32.f32 %v1655
    %v1660 = vcvt.s32.f32 %v1656
    %v1661 = vcvt.s32.f32 %v1657
    %v1663 = vsel %vm889, %v1658, 0
    %v1666 = vsel %vm889, %v1659, 0
    %v1669 = vsel %vm889, %v1660, 0
    %v1672 = vsel %vm889, %v1661, 0
    %1674 = vmatpush.msra.mxu0 0.0
    %1675 = vmatpush.msra.mxu0 0.0
    %1676 = vmatpush.msra.mxu0 0.0
    %1677 = vmatpush.msra.mxu0 0.0
    %1678 = vmatpush.msra.mxu0 0.0
    %1679 = vmatpush.msra.mxu0 0.0
    %1680 = vmatpush.msra.mxu0 0.0
    %1681 = vmatpush.msra.mxu0 0.0
    %1682 = vmatpush.msra.mxu0 0.0
    %1683 = vmatpush.msra.mxu0 %v904
    %1684 = vmatpush.msra.mxu0 %v887
    %1685 = vmatpush.msra.mxu0 %v886
    %1686 = vmatpush.msra.mxu0 %v885
    %1687 = vmatpush.msra.mxu0 %v884
    %1688 = vmatpush.msra.mxu0 %v883
    %1689 = vmatpush.msra.mxu0 %v882
    %1690 = vmatmul.f32.gmra.mxu0 %v1663
    %v1691 = vpop.f32.mrf.mxu0
    %v1692 = vadd.f32 0.0, %v1691
    %1693 = vmatmul.f32.gmra.mxu0 %v1666
    %v1694 = vpop.f32.mrf.mxu0
    %v1695 = vadd.f32 0.0, %v1694
    %1696 = vmatmul.f32.gmra.mxu0 %v1669
    %v1697 = vpop.f32.mrf.mxu0
    %v1698 = vadd.f32 0.0, %v1697
    %1699 = vmatmul.f32.gmra.mxu0 %v1672
    %v1700 = vpop.f32.mrf.mxu0
    %v1701 = vadd.f32 0.0, %v1700
    %1702 = vdwg.mxu0
    %v1703 = vld [vmem:[%s15] sm:$0xff]
    %v1704 = vld [vmem:[%s15 + $0x8] sm:$0xff]
    %v1705 = vld [vmem:[%s15 + $0x10] sm:$0xff]
    %v1706 = vld [vmem:[%s15 + $0x18] sm:$0xff]
    %v1707 = vld [vmem:[%s17] sm:$0x1]
    %v1709 = vperm.slane %v1707, 0
    %v1712 = vsel %vm943, %v1692, 0
    %v1715 = vsel %vm943, %v1695, 0
    %v1718 = vsel %vm943, %v1698, 0
    %v1721 = vsel %vm943, %v1701, 0
    %1723 = vmatpush.msra.mxu0 0.0
    %1724 = vmatpush.msra.mxu0 0.0
    %1725 = vmatpush.msra.mxu0 0.0
    %1726 = vmatpush.msra.mxu0 0.0
    %1727 = vmatpush.msra.mxu0 0.0
    %1728 = vmatpush.msra.mxu0 0.0
    %1729 = vmatpush.msra.mxu0 0.0
    %1730 = vmatpush.msra.mxu0 0.0
    %1731 = vmatpush.msra.mxu0 0.0
    %1732 = vmatpush.msra.mxu0 0.0
    %1733 = vmatpush.msra.mxu0 0.0
    %1734 = vmatpush.msra.mxu0 0.0
    %1735 = vmatpush.msra.mxu0 %v1706
    %1736 = vmatpush.msra.mxu0 %v1705
    %1737 = vmatpush.msra.mxu0 %v1704
    %1738 = vmatpush.msra.mxu0 %v1703
    %1739 = vmatmul.f32.gmra.mxu0 %v1712
    %v1740 = vpop.f32.mrf.mxu0
    %v1741 = vadd.f32 %v1709, %v1740
    %1742 = vmatmul.f32.gmra.mxu0 %v1715
    %v1743 = vpop.f32.mrf.mxu0
    %v1744 = vadd.f32 %v1709, %v1743
    %1745 = vmatmul.f32.gmra.mxu0 %v1718
    %v1746 = vpop.f32.mrf.mxu0
    %v1747 = vadd.f32 %v1709, %v1746
    %1748 = vmatmul.f32.gmra.mxu0 %v1721
    %v1749 = vpop.f32.mrf.mxu0
    %v1750 = vadd.f32 %v1709, %v1749
    %1751 = vdwg.mxu0
    %v1752 = vld [vmem:[%s16] sm:$0xff]
    %v1753 = vld [vmem:[%s16 + $0x8] sm:$0xff]
    %v1754 = vld [vmem:[%s16 + $0x10] sm:$0xff]
    %v1755 = vld [vmem:[%s16 + $0x18] sm:$0xff]
    %v1756 = vld [vmem:[%s18] sm:$0x1]
    %v1758 = vperm.slane %v1756, 0
    %1759 = vmatpush.msra.mxu0 0.0
    %1760 = vmatpush.msra.mxu0 0.0
    %1761 = vmatpush.msra.mxu0 0.0
    %1762 = vmatpush.msra.mxu0 0.0
    %1763 = vmatpush.msra.mxu0 0.0
    %1764 = vmatpush.msra.mxu0 0.0
    %1765 = vmatpush.msra.mxu0 0.0
    %1766 = vmatpush.msra.mxu0 0.0
    %1767 = vmatpush.msra.mxu0 0.0
    %1768 = vmatpush.msra.mxu0 0.0
    %1769 = vmatpush.msra.mxu0 0.0
    %1770 = vmatpush.msra.mxu0 0.0
    %1771 = vmatpush.msra.mxu0 %v1755
    %1772 = vmatpush.msra.mxu0 %v1754
    %1773 = vmatpush.msra.mxu0 %v1753
    %1774 = vmatpush.msra.mxu0 %v1752
    %1775 = vmatmul.f32.gmra.mxu0 %v992
    %v1776 = vpop.f32.mrf.mxu0
    %v1777 = vadd.f32 0.0, %v1776
    %1778 = vdwg.mxu0
    %v1779 = vadd.f32 %v1741, %v1777
    %v1780 = vxor.u32 %v1779, 2147483648
    %v1781 = vmul.f32 %v1780, 1.442695
    %v1782 = vpow.pop %v1781
    %v1783 = vadd.f32 %v1782, 1.0
    %v1784 = vrcp.pop %v1783
    %v1785 = vmul.f32 %v1783, %v1784
    %v1786 = vsub.f32 1.0, %v1785
    %v1787 = vmul.f32 %v1784, %v1786
    %v1788 = vadd.f32 %v1784, %v1787
    %vm1789 = vweird.f32 %v1783
    %vm1790 = vweird.f32 %v1784
    %vm1791 = vmor %vm1789, %vm1790
    %v1792 = vsel %vm1791, %v1784, %v1788
    %v1793 = vand.u32 2147483647, %v1783
    %vm1794 = vcmp.eq.f32.partialorder %v1793, 8.507059e+37
    %v1795 = vand.u32 %v1783, 2147483648
    %v1796 = vor.u32 1.1754944e-38, %v1795
    %v1797 = vsel %vm1794, %v1796, %v1792
    %v1798 = vmul.f32 1.0, %v1797
    %1799 = vrot.lane.b32.xlu0 %v1758, 64
    %v1800 = vpop.permute.xlu0 %1799
    %v1802 = vadd.f32 %v1777, %v1800
    %1804 = vrot.lane.b32.xlu0 %v1802, 64
    %v1805 = vpop.permute.xlu0 %1804
    %v1807 = vmul.f32 %v1798, %v1805
    %1809 = vrot.lane.b32.xlu0 %v1807, 64
    %v1810 = vpop.permute.xlu0 %1809
    %v1812 = vadd.f32 %v1741, %v1810
    %v1813 = vtanh.pop %v1812
    %v1814 = vsub.f32 1.0, %v1798
    %1816 = vrot.lane.b32.xlu0 %v1813, 96
    %v1817 = vpop.permute.xlu0 %1816
    %v1819 = vmul.f32 %v1814, %v1817
    %v1820 = vmul.f32 %v1798, 0.0
    %v1821 = vadd.f32 %v1819, %v1820
    %v1822 = vsel %vm282, %v1821, 0.0
    %1824 = vrot.lane.b32.xlu0 %v1821, 96
    %v1825 = vpop.permute.xlu0 %1824
    %v1826 = vsel %vm943, %v1825, 0
    %1828 = vmatpush.msra.mxu0 0.0
    %1829 = vmatpush.msra.mxu0 0.0
    %1830 = vmatpush.msra.mxu0 0.0
    %1831 = vmatpush.msra.mxu0 0.0
    %1832 = vmatpush.msra.mxu0 0.0
    %1833 = vmatpush.msra.mxu0 0.0
    %1834 = vmatpush.msra.mxu0 0.0
    %1835 = vmatpush.msra.mxu0 0.0
    %1836 = vmatpush.msra.mxu0 0.0
    %1837 = vmatpush.msra.mxu0 0.0
    %1838 = vmatpush.msra.mxu0 0.0
    %1839 = vmatpush.msra.mxu0 0.0
    %1840 = vmatpush.msra.mxu0 %v1755
    %1841 = vmatpush.msra.mxu0 %v1754
    %1842 = vmatpush.msra.mxu0 %v1753
    %1843 = vmatpush.msra.mxu0 %v1752
    %1844 = vmatmul.f32.gmra.mxu0 %v1826
    %v1845 = vpop.f32.mrf.mxu0
    %v1846 = vadd.f32 0.0, %v1845
    %1847 = vdwg.mxu0
    %v1849 = vrot.slane %v1846, 4
    %v1851 = vadd.f32 %v1741, %v1849
    %v1852 = vxor.u32 %v1851, 2147483648
    %v1853 = vmul.f32 %v1852, 1.442695
    %v1854 = vpow.pop %v1853
    %v1855 = vadd.f32 %v1854, 1.0
    %v1856 = vrcp.pop %v1855
    %v1857 = vmul.f32 %v1855, %v1856
    %v1858 = vsub.f32 1.0, %v1857
    %v1859 = vmul.f32 %v1856, %v1858
    %v1860 = vadd.f32 %v1856, %v1859
    %vm1861 = vweird.f32 %v1855
    %vm1862 = vweird.f32 %v1856
    %vm1863 = vmor %vm1861, %vm1862
    %v1864 = vsel %vm1863, %v1856, %v1860
    %v1865 = vand.u32 2147483647, %v1855
    %vm1866 = vcmp.eq.f32.partialorder %v1865, 8.507059e+37
    %v1867 = vand.u32 %v1855, 2147483648
    %v1868 = vor.u32 1.1754944e-38, %v1867
    %v1869 = vsel %vm1866, %v1868, %v1864
    %v1870 = vmul.f32 1.0, %v1869
    %v1871 = vadd.f32 %v1846, %v1800
    %v1873 = vrot.slane %v1871, 4
    %1874 = vrot.lane.b32.xlu0 %v1873, 64
    %v1875 = vpop.permute.xlu0 %1874
    %v1877 = vmul.f32 %v1870, %v1875
    %1879 = vrot.lane.b32.xlu0 %v1877, 64
    %v1880 = vpop.permute.xlu0 %1879
    %v1882 = vadd.f32 %v1741, %v1880
    %v1883 = vtanh.pop %v1882
    %v1884 = vsub.f32 1.0, %v1870
    %1886 = vrot.lane.b32.xlu0 %v1883, 96
    %v1887 = vpop.permute.xlu0 %1886
    %v1889 = vmul.f32 %v1884, %v1887
    %v1890 = vrot.slane %v1821, 4
    %v1892 = vmul.f32 %v1870, %v1890
    %v1893 = vadd.f32 %v1889, %v1892
    %v1895 = vrot.slane %v1893, 4
    %1896 = vrot.lane.b32.xlu0 %v1895, 96
    %v1897 = vpop.permute.xlu0 %1896
    %1900 = vrot.lane.b32.xlu0 %v1822, 96
    %v1901 = vpop.permute.xlu0 %1900
    %v1903 = vsel %vm360, %v1897, %v1901
    %v1904 = vsel %vm943, %v1897, 0
    %1906 = vmatpush.msra.mxu0 0.0
    %1907 = vmatpush.msra.mxu0 0.0
    %1908 = vmatpush.msra.mxu0 0.0
    %1909 = vmatpush.msra.mxu0 0.0
    %1910 = vmatpush.msra.mxu0 0.0
    %1911 = vmatpush.msra.mxu0 0.0
    %1912 = vmatpush.msra.mxu0 0.0
    %1913 = vmatpush.msra.mxu0 0.0
    %1914 = vmatpush.msra.mxu0 0.0
    %1915 = vmatpush.msra.mxu0 0.0
    %1916 = vmatpush.msra.mxu0 0.0
    %1917 = vmatpush.msra.mxu0 0.0
    %1918 = vmatpush.msra.mxu0 %v1755
    %1919 = vmatpush.msra.mxu0 %v1754
    %1920 = vmatpush.msra.mxu0 %v1753
    %1921 = vmatpush.msra.mxu0 %v1752
    %1922 = vmatmul.f32.gmra.mxu0 %v1904
    %v1923 = vpop.f32.mrf.mxu0
    %v1924 = vadd.f32 0.0, %v1923
    %1925 = vdwg.mxu0
    %v1926 = vadd.f32 %v1744, %v1924
    %v1927 = vxor.u32 %v1926, 2147483648
    %v1928 = vmul.f32 %v1927, 1.442695
    %v1929 = vpow.pop %v1928
    %v1930 = vadd.f32 %v1929, 1.0
    %v1931 = vrcp.pop %v1930
    %v1932 = vmul.f32 %v1930, %v1931
    %v1933 = vsub.f32 1.0, %v1932
    %v1934 = vmul.f32 %v1931, %v1933
    %v1935 = vadd.f32 %v1931, %v1934
    %vm1936 = vweird.f32 %v1930
    %vm1937 = vweird.f32 %v1931
    %vm1938 = vmor %vm1936, %vm1937
    %v1939 = vsel %vm1938, %v1931, %v1935
    %v1940 = vand.u32 2147483647, %v1930
    %vm1941 = vcmp.eq.f32.partialorder %v1940, 8.507059e+37
    %v1942 = vand.u32 %v1930, 2147483648
    %v1943 = vor.u32 1.1754944e-38, %v1942
    %v1944 = vsel %vm1941, %v1943, %v1939
    %v1945 = vmul.f32 1.0, %v1944
    %v1946 = vadd.f32 %v1924, %v1800
    %1948 = vrot.lane.b32.xlu0 %v1946, 64
    %v1949 = vpop.permute.xlu0 %1948
    %v1951 = vmul.f32 %v1945, %v1949
    %1953 = vrot.lane.b32.xlu0 %v1951, 64
    %v1954 = vpop.permute.xlu0 %1953
    %v1956 = vadd.f32 %v1744, %v1954
    %v1957 = vtanh.pop %v1956
    %v1958 = vsub.f32 1.0, %v1945
    %1960 = vrot.lane.b32.xlu0 %v1957, 96
    %v1961 = vpop.permute.xlu0 %1960
    %v1963 = vmul.f32 %v1958, %v1961
    %v1965 = vmul.f32 %v1945, %v1895
    %v1966 = vadd.f32 %v1963, %v1965
    %1968 = vrot.lane.b32.xlu0 %v1903, 32
    %v1969 = vpop.permute.xlu0 %1968
    %v1971 = vsel %vm439, %v1966, %v1969
    %1973 = vrot.lane.b32.xlu0 %v1966, 96
    %v1974 = vpop.permute.xlu0 %1973
    %v1975 = vsel %vm943, %v1974, 0
    %1977 = vmatpush.msra.mxu0 0.0
    %1978 = vmatpush.msra.mxu0 0.0
    %1979 = vmatpush.msra.mxu0 0.0
    %1980 = vmatpush.msra.mxu0 0.0
    %1981 = vmatpush.msra.mxu0 0.0
    %1982 = vmatpush.msra.mxu0 0.0
    %1983 = vmatpush.msra.mxu0 0.0
    %1984 = vmatpush.msra.mxu0 0.0
    %1985 = vmatpush.msra.mxu0 0.0
    %1986 = vmatpush.msra.mxu0 0.0
    %1987 = vmatpush.msra.mxu0 0.0
    %1988 = vmatpush.msra.mxu0 0.0
    %1989 = vmatpush.msra.mxu0 %v1755
    %1990 = vmatpush.msra.mxu0 %v1754
    %1991 = vmatpush.msra.mxu0 %v1753
    %1992 = vmatpush.msra.mxu0 %v1752
    %1993 = vmatmul.f32.gmra.mxu0 %v1975
    %v1994 = vpop.f32.mrf.mxu0
    %v1995 = vadd.f32 0.0, %v1994
    %1996 = vdwg.mxu0
    %v1998 = vrot.slane %v1995, 4
    %v2000 = vadd.f32 %v1744, %v1998
    %v2001 = vxor.u32 %v2000, 2147483648
    %v2002 = vmul.f32 %v2001, 1.442695
    %v2003 = vpow.pop %v2002
    %v2004 = vadd.f32 %v2003, 1.0
    %v2005 = vrcp.pop %v2004
    %v2006 = vmul.f32 %v2004, %v2005
    %v2007 = vsub.f32 1.0, %v2006
    %v2008 = vmul.f32 %v2005, %v2007
    %v2009 = vadd.f32 %v2005, %v2008
    %vm2010 = vweird.f32 %v2004
    %vm2011 = vweird.f32 %v2005
    %vm2012 = vmor %vm2010, %vm2011
    %v2013 = vsel %vm2012, %v2005, %v2009
    %v2014 = vand.u32 2147483647, %v2004
    %vm2015 = vcmp.eq.f32.partialorder %v2014, 8.507059e+37
    %v2016 = vand.u32 %v2004, 2147483648
    %v2017 = vor.u32 1.1754944e-38, %v2016
    %v2018 = vsel %vm2015, %v2017, %v2013
    %v2019 = vmul.f32 1.0, %v2018
    %v2020 = vadd.f32 %v1995, %v1800
    %v2022 = vrot.slane %v2020, 4
    %2023 = vrot.lane.b32.xlu0 %v2022, 64
    %v2024 = vpop.permute.xlu0 %2023
    %v2026 = vmul.f32 %v2019, %v2024
    %2028 = vrot.lane.b32.xlu0 %v2026, 64
    %v2029 = vpop.permute.xlu0 %2028
    %v2031 = vadd.f32 %v1744, %v2029
    %v2032 = vtanh.pop %v2031
    %v2033 = vsub.f32 1.0, %v2019
    %2035 = vrot.lane.b32.xlu0 %v2032, 96
    %v2036 = vpop.permute.xlu0 %2035
    %v2038 = vmul.f32 %v2033, %v2036
    %v2039 = vrot.slane %v1966, 4
    %v2041 = vmul.f32 %v2019, %v2039
    %v2042 = vadd.f32 %v2038, %v2041
    %v2044 = vrot.slane %v2042, 4
    %2045 = vrot.lane.b32.xlu0 %v2044, 96
    %v2046 = vpop.permute.xlu0 %2045
    %2049 = vrot.lane.b32.xlu0 %v1971, 96
    %v2050 = vpop.permute.xlu0 %2049
    %v2052 = vsel %vm521, %v2046, %v2050
    %v2053 = vsel %vm943, %v2046, 0
    %2055 = vmatpush.msra.mxu0 0.0
    %2056 = vmatpush.msra.mxu0 0.0
    %2057 = vmatpush.msra.mxu0 0.0
    %2058 = vmatpush.msra.mxu0 0.0
    %2059 = vmatpush.msra.mxu0 0.0
    %2060 = vmatpush.msra.mxu0 0.0
    %2061 = vmatpush.msra.mxu0 0.0
    %2062 = vmatpush.msra.mxu0 0.0
    %2063 = vmatpush.msra.mxu0 0.0
    %2064 = vmatpush.msra.mxu0 0.0
    %2065 = vmatpush.msra.mxu0 0.0
    %2066 = vmatpush.msra.mxu0 0.0
    %2067 = vmatpush.msra.mxu0 %v1755
    %2068 = vmatpush.msra.mxu0 %v1754
    %2069 = vmatpush.msra.mxu0 %v1753
    %2070 = vmatpush.msra.mxu0 %v1752
    %2071 = vmatmul.f32.gmra.mxu0 %v2053
    %v2072 = vpop.f32.mrf.mxu0
    %v2073 = vadd.f32 0.0, %v2072
    %2074 = vdwg.mxu0
    %v2075 = vadd.f32 %v1747, %v2073
    %v2076 = vxor.u32 %v2075, 2147483648
    %v2077 = vmul.f32 %v2076, 1.442695
    %v2078 = vpow.pop %v2077
    %v2079 = vadd.f32 %v2078, 1.0
    %v2080 = vrcp.pop %v2079
    %v2081 = vmul.f32 %v2079, %v2080
    %v2082 = vsub.f32 1.0, %v2081
    %v2083 = vmul.f32 %v2080, %v2082
    %v2084 = vadd.f32 %v2080, %v2083
    %vm2085 = vweird.f32 %v2079
    %vm2086 = vweird.f32 %v2080
    %vm2087 = vmor %vm2085, %vm2086
    %v2088 = vsel %vm2087, %v2080, %v2084
    %v2089 = vand.u32 2147483647, %v2079
    %vm2090 = vcmp.eq.f32.partialorder %v2089, 8.507059e+37
    %v2091 = vand.u32 %v2079, 2147483648
    %v2092 = vor.u32 1.1754944e-38, %v2091
    %v2093 = vsel %vm2090, %v2092, %v2088
    %v2094 = vmul.f32 1.0, %v2093
    %v2095 = vadd.f32 %v2073, %v1800
    %2097 = vrot.lane.b32.xlu0 %v2095, 64
    %v2098 = vpop.permute.xlu0 %2097
    %v2100 = vmul.f32 %v2094, %v2098
    %2102 = vrot.lane.b32.xlu0 %v2100, 64
    %v2103 = vpop.permute.xlu0 %2102
    %v2105 = vadd.f32 %v1747, %v2103
    %v2106 = vtanh.pop %v2105
    %v2107 = vsub.f32 1.0, %v2094
    %2109 = vrot.lane.b32.xlu0 %v2106, 96
    %v2110 = vpop.permute.xlu0 %2109
    %v2112 = vmul.f32 %v2107, %v2110
    %v2114 = vmul.f32 %v2094, %v2044
    %v2115 = vadd.f32 %v2112, %v2114
    %2117 = vrot.lane.b32.xlu0 %v2052, 32
    %v2118 = vpop.permute.xlu0 %2117
    %v2120 = vsel %vm600, %v2115, %v2118
    %2122 = vrot.lane.b32.xlu0 %v2115, 96
    %v2123 = vpop.permute.xlu0 %2122
    %v2124 = vsel %vm943, %v2123, 0
    %2126 = vmatpush.msra.mxu0 0.0
    %2127 = vmatpush.msra.mxu0 0.0
    %2128 = vmatpush.msra.mxu0 0.0
    %2129 = vmatpush.msra.mxu0 0.0
    %2130 = vmatpush.msra.mxu0 0.0
    %2131 = vmatpush.msra.mxu0 0.0
    %2132 = vmatpush.msra.mxu0 0.0
    %2133 = vmatpush.msra.mxu0 0.0
    %2134 = vmatpush.msra.mxu0 0.0
    %2135 = vmatpush.msra.mxu0 0.0
    %2136 = vmatpush.msra.mxu0 0.0
    %2137 = vmatpush.msra.mxu0 0.0
    %2138 = vmatpush.msra.mxu0 %v1755
    %2139 = vmatpush.msra.mxu0 %v1754
    %2140 = vmatpush.msra.mxu0 %v1753
    %2141 = vmatpush.msra.mxu0 %v1752
    %2142 = vmatmul.f32.gmra.mxu0 %v2124
    %v2143 = vpop.f32.mrf.mxu0
    %v2144 = vadd.f32 0.0, %v2143
    %2145 = vdwg.mxu0
    %v2147 = vrot.slane %v2144, 4
    %v2149 = vadd.f32 %v1747, %v2147
    %v2150 = vxor.u32 %v2149, 2147483648
    %v2151 = vmul.f32 %v2150, 1.442695
    %v2152 = vpow.pop %v2151
    %v2153 = vadd.f32 %v2152, 1.0
    %v2154 = vrcp.pop %v2153
    %v2155 = vmul.f32 %v2153, %v2154
    %v2156 = vsub.f32 1.0, %v2155
    %v2157 = vmul.f32 %v2154, %v2156
    %v2158 = vadd.f32 %v2154, %v2157
    %vm2159 = vweird.f32 %v2153
    %vm2160 = vweird.f32 %v2154
    %vm2161 = vmor %vm2159, %vm2160
    %v2162 = vsel %vm2161, %v2154, %v2158
    %v2163 = vand.u32 2147483647, %v2153
    %vm2164 = vcmp.eq.f32.partialorder %v2163, 8.507059e+37
    %v2165 = vand.u32 %v2153, 2147483648
    %v2166 = vor.u32 1.1754944e-38, %v2165
    %v2167 = vsel %vm2164, %v2166, %v2162
    %v2168 = vmul.f32 1.0, %v2167
    %v2169 = vadd.f32 %v2144, %v1800
    %v2171 = vrot.slane %v2169, 4
    %2172 = vrot.lane.b32.xlu0 %v2171, 64
    %v2173 = vpop.permute.xlu0 %2172
    %v2175 = vmul.f32 %v2168, %v2173
    %2177 = vrot.lane.b32.xlu0 %v2175, 64
    %v2178 = vpop.permute.xlu0 %2177
    %v2180 = vadd.f32 %v1747, %v2178
    %v2181 = vtanh.pop %v2180
    %v2182 = vsub.f32 1.0, %v2168
    %2184 = vrot.lane.b32.xlu0 %v2181, 96
    %v2185 = vpop.permute.xlu0 %2184
    %v2187 = vmul.f32 %v2182, %v2185
    %v2188 = vrot.slane %v2115, 4
    %v2190 = vmul.f32 %v2168, %v2188
    %v2191 = vadd.f32 %v2187, %v2190
    %v2193 = vrot.slane %v2191, 4
    %2194 = vrot.lane.b32.xlu0 %v2193, 96
    %v2195 = vpop.permute.xlu0 %2194
    %2198 = vrot.lane.b32.xlu0 %v2120, 96
    %v2199 = vpop.permute.xlu0 %2198
    %v2201 = vsel %vm682, %v2195, %v2199
    %v2202 = vsel %vm943, %v2195, 0
    %2204 = vmatpush.msra.mxu0 0.0
    %2205 = vmatpush.msra.mxu0 0.0
    %2206 = vmatpush.msra.mxu0 0.0
    %2207 = vmatpush.msra.mxu0 0.0
    %2208 = vmatpush.msra.mxu0 0.0
    %2209 = vmatpush.msra.mxu0 0.0
    %2210 = vmatpush.msra.mxu0 0.0
    %2211 = vmatpush.msra.mxu0 0.0
    %2212 = vmatpush.msra.mxu0 0.0
    %2213 = vmatpush.msra.mxu0 0.0
    %2214 = vmatpush.msra.mxu0 0.0
    %2215 = vmatpush.msra.mxu0 0.0
    %2216 = vmatpush.msra.mxu0 %v1755
    %2217 = vmatpush.msra.mxu0 %v1754
    %2218 = vmatpush.msra.mxu0 %v1753
    %2219 = vmatpush.msra.mxu0 %v1752
    %2220 = vmatmul.f32.gmra.mxu0 %v2202
    %v2221 = vpop.f32.mrf.mxu0
    %v2222 = vadd.f32 0.0, %v2221
    %2223 = vdwg.mxu0
    %v2224 = vadd.f32 %v1750, %v2222
    %v2225 = vxor.u32 %v2224, 2147483648
    %v2226 = vmul.f32 %v2225, 1.442695
    %v2227 = vpow.pop %v2226
    %v2228 = vadd.f32 %v2227, 1.0
    %v2229 = vrcp.pop %v2228
    %v2230 = vmul.f32 %v2228, %v2229
    %v2231 = vsub.f32 1.0, %v2230
    %v2232 = vmul.f32 %v2229, %v2231
    %v2233 = vadd.f32 %v2229, %v2232
    %vm2234 = vweird.f32 %v2228
    %vm2235 = vweird.f32 %v2229
    %vm2236 = vmor %vm2234, %vm2235
    %v2237 = vsel %vm2236, %v2229, %v2233
    %v2238 = vand.u32 2147483647, %v2228
    %vm2239 = vcmp.eq.f32.partialorder %v2238, 8.507059e+37
    %v2240 = vand.u32 %v2228, 2147483648
    %v2241 = vor.u32 1.1754944e-38, %v2240
    %v2242 = vsel %vm2239, %v2241, %v2237
    %v2243 = vmul.f32 1.0, %v2242
    %v2244 = vadd.f32 %v2222, %v1800
    %2246 = vrot.lane.b32.xlu0 %v2244, 64
    %v2247 = vpop.permute.xlu0 %2246
    %v2249 = vmul.f32 %v2243, %v2247
    %2251 = vrot.lane.b32.xlu0 %v2249, 64
    %v2252 = vpop.permute.xlu0 %2251
    %v2254 = vadd.f32 %v1750, %v2252
    %v2255 = vtanh.pop %v2254
    %v2256 = vsub.f32 1.0, %v2243
    %2258 = vrot.lane.b32.xlu0 %v2255, 96
    %v2259 = vpop.permute.xlu0 %2258
    %v2261 = vmul.f32 %v2256, %v2259
    %v2263 = vmul.f32 %v2243, %v2193
    %v2264 = vadd.f32 %v2261, %v2263
    %2266 = vrot.lane.b32.xlu0 %v2201, 32
    %v2267 = vpop.permute.xlu0 %2266
    %v2269 = vsel %vm761, %v2264, %v2267
    %2271 = vrot.lane.b32.xlu0 %v2264, 96
    %v2272 = vpop.permute.xlu0 %2271
    %v2273 = vsel %vm943, %v2272, 0
    %2275 = vmatpush.msra.mxu0 0.0
    %2276 = vmatpush.msra.mxu0 0.0
    %2277 = vmatpush.msra.mxu0 0.0
    %2278 = vmatpush.msra.mxu0 0.0
    %2279 = vmatpush.msra.mxu0 0.0
    %2280 = vmatpush.msra.mxu0 0.0
    %2281 = vmatpush.msra.mxu0 0.0
    %2282 = vmatpush.msra.mxu0 0.0
    %2283 = vmatpush.msra.mxu0 0.0
    %2284 = vmatpush.msra.mxu0 0.0
    %2285 = vmatpush.msra.mxu0 0.0
    %2286 = vmatpush.msra.mxu0 0.0
    %2287 = vmatpush.msra.mxu0 %v1755
    %2288 = vmatpush.msra.mxu0 %v1754
    %2289 = vmatpush.msra.mxu0 %v1753
    %2290 = vmatpush.msra.mxu0 %v1752
    %2291 = vmatmul.f32.gmra.mxu0 %v2273
    %v2292 = vpop.f32.mrf.mxu0
    %v2293 = vadd.f32 0.0, %v2292
    %2294 = vdwg.mxu0
    %v2296 = vrot.slane %v2293, 4
    %v2298 = vadd.f32 %v1750, %v2296
    %v2299 = vxor.u32 %v2298, 2147483648
    %v2300 = vmul.f32 %v2299, 1.442695
    %v2301 = vpow.pop %v2300
    %v2302 = vadd.f32 %v2301, 1.0
    %v2303 = vrcp.pop %v2302
    %v2304 = vmul.f32 %v2302, %v2303
    %v2305 = vsub.f32 1.0, %v2304
    %v2306 = vmul.f32 %v2303, %v2305
    %v2307 = vadd.f32 %v2303, %v2306
    %vm2308 = vweird.f32 %v2302
    %vm2309 = vweird.f32 %v2303
    %vm2310 = vmor %vm2308, %vm2309
    %v2311 = vsel %vm2310, %v2303, %v2307
    %v2312 = vand.u32 2147483647, %v2302
    %vm2313 = vcmp.eq.f32.partialorder %v2312, 8.507059e+37
    %v2314 = vand.u32 %v2302, 2147483648
    %v2315 = vor.u32 1.1754944e-38, %v2314
    %v2316 = vsel %vm2313, %v2315, %v2311
    %v2317 = vmul.f32 1.0, %v2316
    %v2318 = vadd.f32 %v2293, %v1800
    %v2320 = vrot.slane %v2318, 4
    %2321 = vrot.lane.b32.xlu0 %v2320, 64
    %v2322 = vpop.permute.xlu0 %2321
    %v2324 = vmul.f32 %v2317, %v2322
    %2326 = vrot.lane.b32.xlu0 %v2324, 64
    %v2327 = vpop.permute.xlu0 %2326
    %v2329 = vadd.f32 %v1750, %v2327
    %v2330 = vtanh.pop %v2329
    %v2331 = vsub.f32 1.0, %v2317
    %2333 = vrot.lane.b32.xlu0 %v2330, 96
    %v2334 = vpop.permute.xlu0 %2333
    %v2336 = vmul.f32 %v2331, %v2334
    %v2337 = vrot.slane %v2264, 4
    %v2339 = vmul.f32 %v2317, %v2337
    %v2340 = vadd.f32 %v2336, %v2339
    %v2342 = vrot.slane %v2340, 4
    %2343 = vrot.lane.b32.xlu0 %v2342, 96
    %v2344 = vpop.permute.xlu0 %2343
    %2347 = vrot.lane.b32.xlu0 %v2269, 96
    %v2348 = vpop.permute.xlu0 %2347
    %v2350 = vsel %vm843, %v2344, %v2348
    %v2351 = vld [vmem:[%s19] sm:$0x1]
    %v2353 = vperm.slane %v2351, 0
    %v2356 = vsel %vm164, %v853, 0
    %v2359 = vsel %vm164, %v110, 0
    %v2361 = vsel %vm164, %v111, 0
    %2363 = vmatpush.xpose.msra.mxu0 0.0
    %2364 = vmatpush.xpose.msra.mxu0 0.0
    %2365 = vmatpush.xpose.msra.mxu0 0.0
    %2366 = vmatpush.xpose.msra.mxu0 0.0
    %2367 = vmatpush.xpose.msra.mxu0 0.0
    %2368 = vmatpush.xpose.msra.mxu0 0.0
    %2369 = vmatpush.xpose.msra.mxu0 0.0
    %2370 = vmatpush.xpose.msra.mxu0 0.0
    %2371 = vmatpush.xpose.msra.mxu0 0.0
    %2372 = vmatpush.xpose.msra.mxu0 0.0
    %2373 = vmatpush.xpose.msra.mxu0 0.0
    %2374 = vmatpush.xpose.msra.mxu0 0.0
    %2375 = vmatpush.xpose.msra.mxu0 0.0
    %2376 = vmatpush.xpose.msra.mxu0 0.0
    %2377 = vmatpush.xpose.msra.mxu0 %v2361
    %2378 = vmatpush.xpose.msra.mxu0 %v2359
    %2379 = vmatmul.f32.gmra.mxu0 %v2356
    %v2380 = vpop.f32.mrf.mxu0
    %v2381 = vadd.f32 %v2353, %v2380
    %2382 = vdwg.mxu0
    %vm2383 = vcmask 93184
    %2384 = vst.msk [vmem:[#allocation4] sm:$0xf] %vm2383, %v2381
    %v2385 = vld [vmem:[%s20] sm:$0xff]
    %v2386 = vld [vmem:[%s20 + $0x8] sm:$0xff]
    %v2387 = vld [vmem:[%s20 + $0x10] sm:$0xff]
    %v2388 = vld [vmem:[%s20 + $0x18] sm:$0xff]
    %v2389 = vld [vmem:[%s21] sm:$0xff]
    %v2390 = vld [vmem:[%s21 + $0x8] sm:$0xff]
    %v2391 = vld [vmem:[%s21 + $0x10] sm:$0xff]
    %v2392 = vld [vmem:[%s21 + $0x18] sm:$0xff]
    %v2394 = vsel %vm943, %v2350, 0
    %2396 = vmatpush.msra.mxu0 0.0
    %2397 = vmatpush.msra.mxu0 0.0
    %2398 = vmatpush.msra.mxu0 0.0
    %2399 = vmatpush.msra.mxu0 0.0
    %2400 = vmatpush.msra.mxu0 0.0
    %2401 = vmatpush.msra.mxu0 0.0
    %2402 = vmatpush.msra.mxu0 0.0
    %2403 = vmatpush.msra.mxu0 0.0
    %2404 = vmatpush.msra.mxu0 0.0
    %2405 = vmatpush.msra.mxu0 0.0
    %2406 = vmatpush.msra.mxu0 0.0
    %2407 = vmatpush.msra.mxu0 0.0
    %2408 = vmatpush.msra.mxu0 %v2392
    %2409 = vmatpush.msra.mxu0 %v2391
    %2410 = vmatpush.msra.mxu0 %v2390
    %2411 = vmatpush.msra.mxu0 %v2389
    %2412 = vmatmul.f32.gmra.mxu0 %v2394
    %v2413 = vpop.f32.mrf.mxu0
    %v2414 = vadd.f32 0.0, %v2413
    %2415 = vdwg.mxu0
    %v2417 = vsel %vm943, %v1633, 0
    %2419 = vmatpush.msra.mxu0 0.0
    %2420 = vmatpush.msra.mxu0 0.0
    %2421 = vmatpush.msra.mxu0 0.0
    %2422 = vmatpush.msra.mxu0 0.0
    %2423 = vmatpush.msra.mxu0 0.0
    %2424 = vmatpush.msra.mxu0 0.0
    %2425 = vmatpush.msra.mxu0 0.0
    %2426 = vmatpush.msra.mxu0 0.0
    %2427 = vmatpush.msra.mxu0 0.0
    %2428 = vmatpush.msra.mxu0 0.0
    %2429 = vmatpush.msra.mxu0 0.0
    %2430 = vmatpush.msra.mxu0 0.0
    %2431 = vmatpush.msra.mxu0 %v2388
    %2432 = vmatpush.msra.mxu0 %v2387
    %2433 = vmatpush.msra.mxu0 %v2386
    %2434 = vmatpush.msra.mxu0 %v2385
    %2435 = vmatmul.f32.gmra.mxu0 %v2417
    %v2436 = vpop.f32.mrf.mxu0
    %v2437 = vadd.f32 %v2414, %v2436
    %2438 = vdwg.mxu0
    %v2439 = vld [vmem:[%s22] sm:$0x1]
    %v2441 = vperm.slane %v2439, 0
    %v2443 = vadd.f32 %v2437, %v2441
    %vm2444 = vcmask 257024
    %2445 = vst.msk [vmem:[#allocation2] sm:$0xf] %vm2444, %v2443
    // Predicated region
    $region94: #{_lambda_.1} parent=1 // pred_check
      _
    $region95: #{_lambda_.1} parent=1 // pred_check_branch
      %2447 = sbr.rel (0) target = $region97
    $region96: #{_lambda_.1} parent=1 // pred_region
      %2449 = vsyncadd [#allocation3], 0
      %s2451 = sshll.u32 [#allocation2], 4
      %s2452 = int_to_ptr.vmem [resolvable:$true] %s2451
      %s2453 = sshll.u32 %s23, 4
      %s2454 = int_to_ptr.hbm [resolvable:$true] %s2453
      %2456 = dma.vmem_to_hbm [thread:$0]  %s2452, 64, %s2454, [#allocation3]
    $region97: #{_lambda_.1} parent=1 // pred_fallthru
      _
    // Predicated region
    $region98: #{_lambda_.1} parent=1 // pred_check
      _
    $region99: #{_lambda_.1} parent=1 // pred_check_branch
      %2458 = sbr.rel (0) target = $region101
    $region100: #{_lambda_.1} parent=1 // pred_region
      %2460 = vsyncadd [#allocation5], 0
      %s2462 = sshll.u32 [#allocation4], 4
      %s2463 = int_to_ptr.vmem [resolvable:$true] %s2462
      %s2464 = sshll.u32 %s24, 4
      %s2465 = int_to_ptr.hbm [resolvable:$true] %s2464
      %2467 = dma.vmem_to_hbm [thread:$0]  %s2463, 64, %s2465, [#allocation5]
    $region101: #{_lambda_.1} parent=1 // pred_fallthru
      _
    // Predicated region
    $region102: #{_lambda_.1} parent=1 // pred_check
      _
    $region103: #{_lambda_.1} parent=1 // pred_check_branch
      %2469 = sbr.rel (0) target = $region105
    $region104: #{_lambda_.1} parent=1 // pred_region
      %2471 = dma.done [#allocation3], 64
    $region105: #{_lambda_.1} parent=1 // pred_fallthru
      _
    // Predicated region
    $region106: #{_lambda_.1} parent=1 // pred_check
      _
    $region107: #{_lambda_.1} parent=1 // pred_check_branch
      %2473 = sbr.rel (0) target = $region109
    $region108: #{_lambda_.1} parent=1 // pred_region
      %2475 = dma.done [#allocation5], 64
    $region109: #{_lambda_.1} parent=1 // pred_fallthru
      _
    %2476 = vsyncpa [#allocation3], 1
    %2477 = vsyncpa [#allocation5], 1

</llo_original>
